<compile_context>
chip_gen: v7x
topology: tpu7x:2x2x1
jax: 0.10.0
libtpu: 0.0.40
codegen_flags: <defaults>
</compile_context>

<pallas_src>
import functools

import jax
import jax.numpy as jnp
from jax import lax
from jax.experimental import pallas as pl
from jax.experimental.pallas import tpu as pltpu

NUM_CLASSES = 5
HIDDEN = 128          # LSTM hidden size (per direction)
CONV_OUT = 128        # conv out_channels
KH, KW = 5, 3         # conv kernel size
CIN = 3               # conv in_channels


# ------------------------------ fused kernel --------------------------------

def fused_net_kernel(patches_ref, wc_ref, bc_ref, wl_ref, bl_ref,
                     w1_ref, b1_ref, w2_ref, b2_ref,
                     logits_ref, probas_ref,
                     pool_ref, feat_ref, *, batch, pool_pos, hidden):
    chans = pool_ref.shape[1]                 # conv out channels (lane dim)
    m = pool_ref.shape[0]                     # batch * pool_positions

    # --- Conv2d as a single im2col matmul over all four 2x2-pool candidates.
    #     Patch rows are ordered (candidate, b, oh2, ow2), so MaxPool2d(2,2) is
    #     an elementwise max of four aligned m-row blocks.  Bias is added after
    #     the max (constant per window), then ReLU.
    y = jnp.dot(patches_ref[...], wc_ref[...], preferred_element_type=jnp.float32)
    pooled = jnp.maximum(jnp.maximum(y[0 * m:1 * m], y[1 * m:2 * m]),
                         jnp.maximum(y[2 * m:3 * m], y[3 * m:4 * m]))
    pool_ref[...] = jnp.maximum(pooled + bc_ref[...], 0.0)    # rows=(b,p), lanes=c

    # --- Repack pooled rows into one lane-dense (batch, feat_dim) activation.
    #     The LSTM weight rows were permuted once at load time to the matching
    #     (p, c) feature order, so no NHWC->NCHW activation transpose is needed.
    for b in range(batch):
        for p in range(pool_pos):
            feat_ref[pl.ds(b, 1), pl.ds(p * chans, chans)] = \
                pool_ref[pl.ds(b * pool_pos + p, 1), :]

    # --- Single-timestep bidirectional LSTM with h0 = c0 = 0.
    #     Both directions and only the live gates (i, g, o) are fused into ONE
    #     (feat_dim, 6*hidden) matmul.  The forget gate and W_hh are dropped:
    #     with seq_len == 1 and zero initial state they cannot affect the output.
    #     Gate-column layout: [i_f | i_b | g_f | g_b | o_f | o_b].
    gates = (jnp.dot(feat_ref[...], wl_ref[...], preferred_element_type=jnp.float32)
             + bl_ref[...])
    h2 = 2 * hidden
    i_all = jax.nn.sigmoid(gates[:, 0:h2])
    g_all = jnp.tanh(gates[:, h2:2 * h2])
    o_all = jax.nn.sigmoid(gates[:, 2 * h2:3 * h2])
    h = o_all * jnp.tanh(i_all * g_all)                       # (batch, 2*hidden) = [fwd|bwd]

    # --- ReLU -> fc1 -> fc2 -> softmax(dim=1).
    h = jnp.maximum(h, 0.0)
    z1 = jnp.dot(h, w1_ref[...], preferred_element_type=jnp.float32) + b1_ref[...]
    logits = jnp.dot(z1, w2_ref[...], preferred_element_type=jnp.float32) + b2_ref[...]
    logits_ref[...] = logits
    mx = jnp.max(logits, axis=1, keepdims=True)
    e = jnp.exp(logits - mx)
    probas_ref[...] = e * pl.reciprocal(jnp.sum(e, axis=1, keepdims=True), approx=True)


# ------------------------------- forward ------------------------------------

def net_forward(x, prep):
    B, Cin, H, W = x.shape
    OH, OW = H - KH + 1, W - KW + 1
    OH2, OW2 = OH // 2, OW // 2
    P = OH2 * OW2
    K = Cin * KH * KW
    C = CONV_OUT

    # im2col on the (tiny) input: rows ordered (pool_candidate, b, oh2, ow2),
    # cols ordered (c, kh, kw) to match the reshaped conv weight.
    # TODO(synk): for large images this glue should also move inside the kernel
    # (manual DMA of shifted windows); at these shapes it touches <3 KiB of input.
    cols = [x[:, :, kh:kh + OH, kw:kw + OW] for kh in range(KH) for kw in range(KW)]
    pat = jnp.stack(cols, axis=2).reshape(B, K, OH, OW)
    pat = pat[:, :, :2 * OH2, :2 * OW2]                       # MaxPool drops odd remainders
    pat = pat.reshape(B, K, OH2, 2, OW2, 2).transpose(3, 5, 0, 2, 4, 1)
    patches = pat.reshape(4 * B * P, K)

    kernel = functools.partial(fused_net_kernel, batch=B, pool_pos=P, hidden=HIDDEN)

    def fs(shape):
        nd = len(shape)
        return pl.BlockSpec(shape, lambda i, nd=nd: (0,) * nd)

    args = (patches, prep["conv_w"], prep["conv_b"], prep["lstm_w"], prep["lstm_b"],
            prep["fc1_w"], prep["fc1_b"], prep["fc2_w"], prep["fc2_b"])
    out_shape = (jax.ShapeDtypeStruct((B, NUM_CLASSES), jnp.float32),
                 jax.ShapeDtypeStruct((B, NUM_CLASSES), jnp.float32))

    logits, probas = pl.pallas_call(
        kernel,
        grid=(1,),
        in_specs=[fs(a.shape) for a in args],
        out_specs=tuple(fs(s.shape) for s in out_shape),
        out_shape=out_shape,
        scratch_shapes=[pltpu.VMEM((B * P, C), jnp.float32),   # pooled rows (b, p)
                        pltpu.VMEM((B, P * C), jnp.float32)],  # lane-dense features
        compiler_params=pltpu.CompilerParams(
            dimension_semantics=("arbitrary",),
            # the 6 MiB fused LSTM weight is double-buffered by the pipeline;
            # raise the scoped-VMEM cap so v5e's 16 MiB default is not a limit
            # (48 MiB is below physical VMEM on v5e/v6e/v7x).
            vmem_limit_bytes=48 * 1024 * 1024),
    )(*args)
    return logits, probas


# -------------------------- parameter preparation ----------------------------

def prepare_params(params, oh2, ow2):
    """One-time repack of PyTorch-layout parameters into kernel layout (cold path).

    Drops the dead LSTM forget-gate columns, fuses fwd/bwd directions into one
    matmul, and permutes LSTM feature rows from NCHW-flatten (c, oh2, ow2) order
    to the kernel's pooled (oh2, ow2, c) order (replaces the activation transpose).
    NOTE: exact only because seq_len == 1 and h0 = c0 = 0 in this model.
    """
    hid, chans, pos = HIDDEN, CONV_OUT, oh2 * ow2
    k = CIN * KH * KW

    def igo(a):  # torch gate order is (i, f, g, o); keep only i, g, o blocks
        return a[0:hid], a[2 * hid:3 * hid], a[3 * hid:4 * hid]

    i_f, g_f, o_f = igo(params["w_ih_f"])
    i_b, g_b, o_b = igo(params["w_ih_b"])
    w_cat = jnp.concatenate([i_f, i_b, g_f, g_b, o_f, o_b], axis=0)   # (6H, F)
    bi_f, bg_f, bo_f = igo(params["b_ih_f"] + params["b_hh_f"])
    bi_b, bg_b, bo_b = igo(params["b_ih_b"] + params["b_hh_b"])
    b_cat = jnp.concatenate([bi_f, bi_b, bg_f, bg_b, bo_f, bo_b])     # (6H,)

    # torch feature index = c*pos + p  ->  kernel feature index = p*chans + c
    w_lstm = (w_cat.reshape(6 * hid, chans, pos)
              .transpose(2, 1, 0)
              .reshape(pos * chans, 6 * hid))

    return dict(
        conv_w=params["conv_w"].reshape(CONV_OUT, k).T,               # (K, Cout)
        conv_b=params["conv_b"].reshape(1, CONV_OUT),
        lstm_w=w_lstm,                                                # (feat_dim, 6H)
        lstm_b=b_cat.reshape(1, 6 * hid),
        fc1_w=params["fc1_w"].T, fc1_b=params["fc1_b"].reshape(1, -1),
        fc2_w=params["fc2_w"].T, fc2_b=params["fc2_b"].reshape(1, -1),
    )


def init_params(key, feat_dim):
    ks = jax.random.split(key, 14)

    def u(k, shape, fan_in):
        bound = 1.0 / float(fan_in) ** 0.5
        return jax.random.uniform(k, shape, jnp.float32, -bound, bound)

    return dict(
        conv_w=u(ks[0], (CONV_OUT, CIN, KH, KW), CIN * KH * KW),
        conv_b=u(ks[1], (CONV_OUT,), CIN * KH * KW),
        w_ih_f=u(ks[2], (4 * HIDDEN, feat_dim), feat_dim),
        w_hh_f=u(ks[3], (4 * HIDDEN, HIDDEN), HIDDEN),
        b_ih_f=u(ks[4], (4 * HIDDEN,), HIDDEN),
        b_hh_f=u(ks[5], (4 * HIDDEN,), HIDDEN),
        w_ih_b=u(ks[6], (4 * HIDDEN, feat_dim), feat_dim),
        w_hh_b=u(ks[7], (4 * HIDDEN, HIDDEN), HIDDEN),
        b_ih_b=u(ks[8], (4 * HIDDEN,), HIDDEN),
        b_hh_b=u(ks[9], (4 * HIDDEN,), HIDDEN),
        fc1_w=u(ks[10], (64, 2 * HIDDEN), 2 * HIDDEN),
        fc1_b=u(ks[11], (64,), 2 * HIDDEN),
        fc2_w=u(ks[12], (NUM_CLASSES, 64), 64),
        fc2_b=u(ks[13], (NUM_CLASSES,), 64),
    )


# ------------------------- pure-JAX reference (check) ------------------------

def reference_forward(x, params):
    """Straightforward XLA implementation of the PyTorch module (full LSTM math)."""
    B = x.shape[0]
    conv = lax.conv_general_dilated(
        x, params["conv_w"], window_strides=(1, 1), padding="VALID",
        dimension_numbers=("NCHW", "OIHW", "NCHW"))
    conv = conv + params["conv_b"].reshape(1, CONV_OUT, 1, 1)
    pooled = lax.reduce_window(conv, -jnp.inf, lax.max,
                               (1, 1, 2, 2), (1, 1, 2, 2), "VALID")
    feat = jnp.maximum(pooled, 0.0).reshape(B, -1)     # NCHW flatten == out.view(B,1,-1)

    def lstm_dir(w_ih, w_hh, b_ih, b_hh):
        h0 = jnp.zeros((B, HIDDEN), jnp.float32)
        c0 = jnp.zeros((B, HIDDEN), jnp.float32)
        g = feat @ w_ih.T + h0 @ w_hh.T + b_ih + b_hh
        i = jax.nn.sigmoid(g[:, 0:HIDDEN])
        f = jax.nn.sigmoid(g[:, HIDDEN:2 * HIDDEN])
        gg = jnp.tanh(g[:, 2 * HIDDEN:3 * HIDDEN])
        o = jax.nn.sigmoid(g[:, 3 * HIDDEN:4 * HIDDEN])
        c = f * c0 + i * gg
        return o * jnp.tanh(c)

    h = jnp.concatenate(
        [lstm_dir(params["w_ih_f"], params["w_hh_f"], params["b_ih_f"], params["b_hh_f"]),
         lstm_dir(params["w_ih_b"], params["w_hh_b"], params["b_ih_b"], params["b_hh_b"])],
        axis=1)
    h = jnp.maximum(h, 0.0)
    z = h @ params["fc1_w"].T + params["fc1_b"]
    logits = z @ params["fc2_w"].T + params["fc2_b"]
    return logits, jax.nn.softmax(logits, axis=1)


# --------------------------------- main --------------------------------------

if __name__ == "__main__":
    key = jax.random.PRNGKey(0)
    kx, kp = jax.random.split(key)

    B, H, W = 2, 12, 10                              # small NCHW input (B, 3, H, W)
    x = jax.random.normal(kx, (B, CIN, H, W), jnp.float32)

    OH, OW = H - KH + 1, W - KW + 1
    OH2, OW2 = OH // 2, OW // 2
    feat_dim = CONV_OUT * OH2 * OW2                  # small analog of 9574656
    params = init_params(kp, feat_dim)
    prep = prepare_params(params, OH2, OW2)          # one-time weight repack (cold path)

    fwd = jax.jit(net_forward)
    logits, probas = fwd(x, prep)
    jax.block_until_ready((logits, probas))

    ref_logits, ref_probas = jax.jit(reference_forward)(x, params)
    jax.block_until_ready((ref_logits, ref_probas))

    assert logits.shape == (B, NUM_CLASSES) and probas.shape == (B, NUM_CLASSES)
    assert bool(jnp.all(jnp.isfinite(logits)))
    assert bool(jnp.allclose(jnp.sum(probas, axis=1), 1.0, atol=1e-2))
    assert bool(jnp.allclose(logits, ref_logits, atol=5e-3, rtol=5e-3))
    assert bool(jnp.allclose(probas, ref_probas, atol=1e-2))
    print("KERNEL_OK")
</pallas_src>

<mosaic_0001>
module attributes {stable_mosaic.version = 11 : i64} {
  func.func @fused_net_kernel(%arg0: i32, %arg1: memref<128x45xf32, #tpu.memory_space<vmem>>, %arg2: memref<45x128xf32, #tpu.memory_space<vmem>>, %arg3: memref<1x128xf32, #tpu.memory_space<vmem>>, %arg4: memref<2048x768xf32, #tpu.memory_space<vmem>>, %arg5: memref<1x768xf32, #tpu.memory_space<vmem>>, %arg6: memref<256x64xf32, #tpu.memory_space<vmem>>, %arg7: memref<1x64xf32, #tpu.memory_space<vmem>>, %arg8: memref<64x5xf32, #tpu.memory_space<vmem>>, %arg9: memref<1x5xf32, #tpu.memory_space<vmem>>, %arg10: memref<2x5xf32, #tpu.memory_space<vmem>>, %arg11: memref<2x5xf32, #tpu.memory_space<vmem>>, %arg12: memref<32x128xf32, #tpu.memory_space<vmem>>, %arg13: memref<2x2048xf32, #tpu.memory_space<vmem>>) attributes {dimension_semantics = [#tpu.dimension_semantics<arbitrary>], iteration_bounds = array<i64: 1>, scalar_prefetch = 0 : i64, scratch_operands = 2 : i64, tpu.core_type = #tpu.core_type<tc>, window_params = [{pipeline_mode = #tpu.pipeline_mode<synchronous>, transform_indices = @transform_0, window_bounds = array<i64: 128, 45>}, {pipeline_mode = #tpu.pipeline_mode<synchronous>, transform_indices = @transform_1, window_bounds = array<i64: 45, 128>}, {pipeline_mode = #tpu.pipeline_mode<synchronous>, transform_indices = @transform_2, window_bounds = array<i64: 1, 128>}, {pipeline_mode = #tpu.pipeline_mode<synchronous>, transform_indices = @transform_3, window_bounds = array<i64: 2048, 768>}, {pipeline_mode = #tpu.pipeline_mode<synchronous>, transform_indices = @transform_4, window_bounds = array<i64: 1, 768>}, {pipeline_mode = #tpu.pipeline_mode<synchronous>, transform_indices = @transform_5, window_bounds = array<i64: 256, 64>}, {pipeline_mode = #tpu.pipeline_mode<synchronous>, transform_indices = @transform_6, window_bounds = array<i64: 1, 64>}, {pipeline_mode = #tpu.pipeline_mode<synchronous>, transform_indices = @transform_7, window_bounds = array<i64: 64, 5>}, {pipeline_mode = #tpu.pipeline_mode<synchronous>, transform_indices = @transform_8, window_bounds = array<i64: 1, 5>}, {pipeline_mode = #tpu.pipeline_mode<synchronous>, transform_indices = @transform_9, window_bounds = array<i64: 2, 5>}, {pipeline_mode = #tpu.pipeline_mode<synchronous>, transform_indices = @transform_10, window_bounds = array<i64: 2, 5>}]} {
    %c0 = arith.constant 0 : index
    %c0_0 = arith.constant 0 : index
    %0 = vector.load %arg1[%c0, %c0_0] : memref<128x45xf32, #tpu.memory_space<vmem>>, vector<128x45xf32>
    %c0_1 = arith.constant 0 : index
    %c0_2 = arith.constant 0 : index
    %1 = vector.load %arg2[%c0_1, %c0_2] : memref<45x128xf32, #tpu.memory_space<vmem>>, vector<45x128xf32>
    %cst = arith.constant dense<0.000000e+00> : vector<128x128xf32>
    %2 = tpu.matmul %0, %1, %cst {dimension_numbers = #tpu.dot_dimension_numbers<[1], [0], [0], [1], [0, 0, 1, 1], [], []>} : vector<128x45xf32>, vector<45x128xf32>, vector<128x128xf32> -> vector<128x128xf32>
    %3 = vector.extract_strided_slice %2 {offsets = [0, 0], sizes = [32, 128], strides = [1, 1]} : vector<128x128xf32> to vector<32x128xf32>
    %4 = vector.extract_strided_slice %2 {offsets = [32, 0], sizes = [32, 128], strides = [1, 1]} : vector<128x128xf32> to vector<32x128xf32>
    %5 = arith.maximumf %3, %4 : vector<32x128xf32>
    %6 = vector.extract_strided_slice %2 {offsets = [64, 0], sizes = [32, 128], strides = [1, 1]} : vector<128x128xf32> to vector<32x128xf32>
    %7 = vector.extract_strided_slice %2 {offsets = [96, 0], sizes = [32, 128], strides = [1, 1]} : vector<128x128xf32> to vector<32x128xf32>
    %8 = arith.maximumf %6, %7 : vector<32x128xf32>
    %9 = arith.maximumf %5, %8 : vector<32x128xf32>
    %c0_3 = arith.constant 0 : index
    %c0_4 = arith.constant 0 : index
    %10 = vector.load %arg3[%c0_3, %c0_4] : memref<1x128xf32, #tpu.memory_space<vmem>>, vector<1x128xf32>
    %11 = vector.broadcast %10 : vector<1x128xf32> to vector<32x128xf32>
    %12 = arith.addf %9, %11 : vector<32x128xf32>
    %cst_5 = arith.constant 0.000000e+00 : f32
    %13 = vector.broadcast %cst_5 : f32 to vector<32x128xf32>
    %14 = arith.maximumf %12, %13 : vector<32x128xf32>
    %c0_6 = arith.constant 0 : index
    %c0_7 = arith.constant 0 : index
    %15 = vector.load %arg12[%c0_6, %c0_7] : memref<32x128xf32, #tpu.memory_space<vmem>>, vector<32x128xf32>
    tpu.vector_store %arg12[%c0_6, %c0_7], %14 {strides = array<i32>} : memref<32x128xf32, #tpu.memory_space<vmem>>, vector<32x128xf32>,
    %c0_8 = arith.constant 0 : index
    %c0_9 = arith.constant 0 : index
    %16 = vector.load %arg12[%c0_8, %c0_9] : memref<32x128xf32, #tpu.memory_space<vmem>>, vector<1x128xf32>
    %c0_10 = arith.constant 0 : index
    %c0_11 = arith.constant 0 : index
    %17 = vector.load %arg13[%c0_10, %c0_11] : memref<2x2048xf32, #tpu.memory_space<vmem>>, vector<1x128xf32>
    tpu.vector_store %arg13[%c0_10, %c0_11], %16 {strides = array<i32>} : memref<2x2048xf32, #tpu.memory_space<vmem>>, vector<1x128xf32>,
    %c1 = arith.constant 1 : index
    %c0_12 = arith.constant 0 : index
    %18 = vector.load %arg12[%c1, %c0_12] : memref<32x128xf32, #tpu.memory_space<vmem>>, vector<1x128xf32>
    %c0_13 = arith.constant 0 : index
    %c128 = arith.constant 128 : index
    %19 = vector.load %arg13[%c0_13, %c128] : memref<2x2048xf32, #tpu.memory_space<vmem>>, vector<1x128xf32>
    tpu.vector_store %arg13[%c0_13, %c128], %18 {strides = array<i32>} : memref<2x2048xf32, #tpu.memory_space<vmem>>, vector<1x128xf32>,
    %c2 = arith.constant 2 : index
    %c0_14 = arith.constant 0 : index
    %20 = vector.load %arg12[%c2, %c0_14] : memref<32x128xf32, #tpu.memory_space<vmem>>, vector<1x128xf32>
    %c0_15 = arith.constant 0 : index
    %c256 = arith.constant 256 : index
    %21 = vector.load %arg13[%c0_15, %c256] : memref<2x2048xf32, #tpu.memory_space<vmem>>, vector<1x128xf32>
    tpu.vector_store %arg13[%c0_15, %c256], %20 {strides = array<i32>} : memref<2x2048xf32, #tpu.memory_space<vmem>>, vector<1x128xf32>,
    %c3 = arith.constant 3 : index
    %c0_16 = arith.constant 0 : index
    %22 = vector.load %arg12[%c3, %c0_16] : memref<32x128xf32, #tpu.memory_space<vmem>>, vector<1x128xf32>
    %c0_17 = arith.constant 0 : index
    %c384 = arith.constant 384 : index
    %23 = vector.load %arg13[%c0_17, %c384] : memref<2x2048xf32, #tpu.memory_space<vmem>>, vector<1x128xf32>
    tpu.vector_store %arg13[%c0_17, %c384], %22 {strides = array<i32>} : memref<2x2048xf32, #tpu.memory_space<vmem>>, vector<1x128xf32>,
    %c4 = arith.constant 4 : index
    %c0_18 = arith.constant 0 : index
    %24 = vector.load %arg12[%c4, %c0_18] : memref<32x128xf32, #tpu.memory_space<vmem>>, vector<1x128xf32>
    %c0_19 = arith.constant 0 : index
    %c512 = arith.constant 512 : index
    %25 = vector.load %arg13[%c0_19, %c512] : memref<2x2048xf32, #tpu.memory_space<vmem>>, vector<1x128xf32>
    tpu.vector_store %arg13[%c0_19, %c512], %24 {strides = array<i32>} : memref<2x2048xf32, #tpu.memory_space<vmem>>, vector<1x128xf32>,
    %c5 = arith.constant 5 : index
    %c0_20 = arith.constant 0 : index
    %26 = vector.load %arg12[%c5, %c0_20] : memref<32x128xf32, #tpu.memory_space<vmem>>, vector<1x128xf32>
    %c0_21 = arith.constant 0 : index
    %c640 = arith.constant 640 : index
    %27 = vector.load %arg13[%c0_21, %c640] : memref<2x2048xf32, #tpu.memory_space<vmem>>, vector<1x128xf32>
    tpu.vector_store %arg13[%c0_21, %c640], %26 {strides = array<i32>} : memref<2x2048xf32, #tpu.memory_space<vmem>>, vector<1x128xf32>,
    %c6 = arith.constant 6 : index
    %c0_22 = arith.constant 0 : index
    %28 = vector.load %arg12[%c6, %c0_22] : memref<32x128xf32, #tpu.memory_space<vmem>>, vector<1x128xf32>
    %c0_23 = arith.constant 0 : index
    %c768 = arith.constant 768 : index
    %29 = vector.load %arg13[%c0_23, %c768] : memref<2x2048xf32, #tpu.memory_space<vmem>>, vector<1x128xf32>
    tpu.vector_store %arg13[%c0_23, %c768], %28 {strides = array<i32>} : memref<2x2048xf32, #tpu.memory_space<vmem>>, vector<1x128xf32>,
    %c7 = arith.constant 7 : index
    %c0_24 = arith.constant 0 : index
    %30 = vector.load %arg12[%c7, %c0_24] : memref<32x128xf32, #tpu.memory_space<vmem>>, vector<1x128xf32>
    %c0_25 = arith.constant 0 : index
    %c896 = arith.constant 896 : index
    %31 = vector.load %arg13[%c0_25, %c896] : memref<2x2048xf32, #tpu.memory_space<vmem>>, vector<1x128xf32>
    tpu.vector_store %arg13[%c0_25, %c896], %30 {strides = array<i32>} : memref<2x2048xf32, #tpu.memory_space<vmem>>, vector<1x128xf32>,
    %c8 = arith.constant 8 : index
    %c0_26 = arith.constant 0 : index
    %32 = vector.load %arg12[%c8, %c0_26] : memref<32x128xf32, #tpu.memory_space<vmem>>, vector<1x128xf32>
    %c0_27 = arith.constant 0 : index
    %c1024 = arith.constant 1024 : index
    %33 = vector.load %arg13[%c0_27, %c1024] : memref<2x2048xf32, #tpu.memory_space<vmem>>, vector<1x128xf32>
    tpu.vector_store %arg13[%c0_27, %c1024], %32 {strides = array<i32>} : memref<2x2048xf32, #tpu.memory_space<vmem>>, vector<1x128xf32>,
    %c9 = arith.constant 9 : index
    %c0_28 = arith.constant 0 : index
    %34 = vector.load %arg12[%c9, %c0_28] : memref<32x128xf32, #tpu.memory_space<vmem>>, vector<1x128xf32>
    %c0_29 = arith.constant 0 : index
    %c1152 = arith.constant 1152 : index
    %35 = vector.load %arg13[%c0_29, %c1152] : memref<2x2048xf32, #tpu.memory_space<vmem>>, vector<1x128xf32>
    tpu.vector_store %arg13[%c0_29, %c1152], %34 {strides = array<i32>} : memref<2x2048xf32, #tpu.memory_space<vmem>>, vector<1x128xf32>,
    %c10 = arith.constant 10 : index
    %c0_30 = arith.constant 0 : index
    %36 = vector.load %arg12[%c10, %c0_30] : memref<32x128xf32, #tpu.memory_space<vmem>>, vector<1x128xf32>
    %c0_31 = arith.constant 0 : index
    %c1280 = arith.constant 1280 : index
    %37 = vector.load %arg13[%c0_31, %c1280] : memref<2x2048xf32, #tpu.memory_space<vmem>>, vector<1x128xf32>
    tpu.vector_store %arg13[%c0_31, %c1280], %36 {strides = array<i32>} : memref<2x2048xf32, #tpu.memory_space<vmem>>, vector<1x128xf32>,
    %c11 = arith.constant 11 : index
    %c0_32 = arith.constant 0 : index
    %38 = vector.load %arg12[%c11, %c0_32] : memref<32x128xf32, #tpu.memory_space<vmem>>, vector<1x128xf32>
    %c0_33 = arith.constant 0 : index
    %c1408 = arith.constant 1408 : index
    %39 = vector.load %arg13[%c0_33, %c1408] : memref<2x2048xf32, #tpu.memory_space<vmem>>, vector<1x128xf32>
    tpu.vector_store %arg13[%c0_33, %c1408], %38 {strides = array<i32>} : memref<2x2048xf32, #tpu.memory_space<vmem>>, vector<1x128xf32>,
    %c12 = arith.constant 12 : index
    %c0_34 = arith.constant 0 : index
    %40 = vector.load %arg12[%c12, %c0_34] : memref<32x128xf32, #tpu.memory_space<vmem>>, vector<1x128xf32>
    %c0_35 = arith.constant 0 : index
    %c1536 = arith.constant 1536 : index
    %41 = vector.load %arg13[%c0_35, %c1536] : memref<2x2048xf32, #tpu.memory_space<vmem>>, vector<1x128xf32>
    tpu.vector_store %arg13[%c0_35, %c1536], %40 {strides = array<i32>} : memref<2x2048xf32, #tpu.memory_space<vmem>>, vector<1x128xf32>,
    %c13 = arith.constant 13 : index
    %c0_36 = arith.constant 0 : index
    %42 = vector.load %arg12[%c13, %c0_36] : memref<32x128xf32, #tpu.memory_space<vmem>>, vector<1x128xf32>
    %c0_37 = arith.constant 0 : index
    %c1664 = arith.constant 1664 : index
    %43 = vector.load %arg13[%c0_37, %c1664] : memref<2x2048xf32, #tpu.memory_space<vmem>>, vector<1x128xf32>
    tpu.vector_store %arg13[%c0_37, %c1664], %42 {strides = array<i32>} : memref<2x2048xf32, #tpu.memory_space<vmem>>, vector<1x128xf32>,
    %c14 = arith.constant 14 : index
    %c0_38 = arith.constant 0 : index
    %44 = vector.load %arg12[%c14, %c0_38] : memref<32x128xf32, #tpu.memory_space<vmem>>, vector<1x128xf32>
    %c0_39 = arith.constant 0 : index
    %c1792 = arith.constant 1792 : index
    %45 = vector.load %arg13[%c0_39, %c1792] : memref<2x2048xf32, #tpu.memory_space<vmem>>, vector<1x128xf32>
    tpu.vector_store %arg13[%c0_39, %c1792], %44 {strides = array<i32>} : memref<2x2048xf32, #tpu.memory_space<vmem>>, vector<1x128xf32>,
    %c15 = arith.constant 15 : index
    %c0_40 = arith.constant 0 : index
    %46 = vector.load %arg12[%c15, %c0_40] : memref<32x128xf32, #tpu.memory_space<vmem>>, vector<1x128xf32>
    %c0_41 = arith.constant 0 : index
    %c1920 = arith.constant 1920 : index
    %47 = vector.load %arg13[%c0_41, %c1920] : memref<2x2048xf32, #tpu.memory_space<vmem>>, vector<1x128xf32>
    tpu.vector_store %arg13[%c0_41, %c1920], %46 {strides = array<i32>} : memref<2x2048xf32, #tpu.memory_space<vmem>>, vector<1x128xf32>,
    %c16 = arith.constant 16 : index
    %c0_42 = arith.constant 0 : index
    %48 = vector.load %arg12[%c16, %c0_42] : memref<32x128xf32, #tpu.memory_space<vmem>>, vector<1x128xf32>
    %c1_43 = arith.constant 1 : index
    %c0_44 = arith.constant 0 : index
    %49 = vector.load %arg13[%c1_43, %c0_44] : memref<2x2048xf32, #tpu.memory_space<vmem>>, vector<1x128xf32>
    tpu.vector_store %arg13[%c1_43, %c0_44], %48 {strides = array<i32>} : memref<2x2048xf32, #tpu.memory_space<vmem>>, vector<1x128xf32>,
    %c17 = arith.constant 17 : index
    %c0_45 = arith.constant 0 : index
    %50 = vector.load %arg12[%c17, %c0_45] : memref<32x128xf32, #tpu.memory_space<vmem>>, vector<1x128xf32>
    %c1_46 = arith.constant 1 : index
    %c128_47 = arith.constant 128 : index
    %51 = vector.load %arg13[%c1_46, %c128_47] : memref<2x2048xf32, #tpu.memory_space<vmem>>, vector<1x128xf32>
    tpu.vector_store %arg13[%c1_46, %c128_47], %50 {strides = array<i32>} : memref<2x2048xf32, #tpu.memory_space<vmem>>, vector<1x128xf32>,
    %c18 = arith.constant 18 : index
    %c0_48 = arith.constant 0 : index
    %52 = vector.load %arg12[%c18, %c0_48] : memref<32x128xf32, #tpu.memory_space<vmem>>, vector<1x128xf32>
    %c1_49 = arith.constant 1 : index
    %c256_50 = arith.constant 256 : index
    %53 = vector.load %arg13[%c1_49, %c256_50] : memref<2x2048xf32, #tpu.memory_space<vmem>>, vector<1x128xf32>
    tpu.vector_store %arg13[%c1_49, %c256_50], %52 {strides = array<i32>} : memref<2x2048xf32, #tpu.memory_space<vmem>>, vector<1x128xf32>,
    %c19 = arith.constant 19 : index
    %c0_51 = arith.constant 0 : index
    %54 = vector.load %arg12[%c19, %c0_51] : memref<32x128xf32, #tpu.memory_space<vmem>>, vector<1x128xf32>
    %c1_52 = arith.constant 1 : index
    %c384_53 = arith.constant 384 : index
    %55 = vector.load %arg13[%c1_52, %c384_53] : memref<2x2048xf32, #tpu.memory_space<vmem>>, vector<1x128xf32>
    tpu.vector_store %arg13[%c1_52, %c384_53], %54 {strides = array<i32>} : memref<2x2048xf32, #tpu.memory_space<vmem>>, vector<1x128xf32>,
    %c20 = arith.constant 20 : index
    %c0_54 = arith.constant 0 : index
    %56 = vector.load %arg12[%c20, %c0_54] : memref<32x128xf32, #tpu.memory_space<vmem>>, vector<1x128xf32>
    %c1_55 = arith.constant 1 : index
    %c512_56 = arith.constant 512 : index
    %57 = vector.load %arg13[%c1_55, %c512_56] : memref<2x2048xf32, #tpu.memory_space<vmem>>, vector<1x128xf32>
    tpu.vector_store %arg13[%c1_55, %c512_56], %56 {strides = array<i32>} : memref<2x2048xf32, #tpu.memory_space<vmem>>, vector<1x128xf32>,
    %c21 = arith.constant 21 : index
    %c0_57 = arith.constant 0 : index
    %58 = vector.load %arg12[%c21, %c0_57] : memref<32x128xf32, #tpu.memory_space<vmem>>, vector<1x128xf32>
    %c1_58 = arith.constant 1 : index
    %c640_59 = arith.constant 640 : index
    %59 = vector.load %arg13[%c1_58, %c640_59] : memref<2x2048xf32, #tpu.memory_space<vmem>>, vector<1x128xf32>
    tpu.vector_store %arg13[%c1_58, %c640_59], %58 {strides = array<i32>} : memref<2x2048xf32, #tpu.memory_space<vmem>>, vector<1x128xf32>,
    %c22 = arith.constant 22 : index
    %c0_60 = arith.constant 0 : index
    %60 = vector.load %arg12[%c22, %c0_60] : memref<32x128xf32, #tpu.memory_space<vmem>>, vector<1x128xf32>
    %c1_61 = arith.constant 1 : index
    %c768_62 = arith.constant 768 : index
    %61 = vector.load %arg13[%c1_61, %c768_62] : memref<2x2048xf32, #tpu.memory_space<vmem>>, vector<1x128xf32>
    tpu.vector_store %arg13[%c1_61, %c768_62], %60 {strides = array<i32>} : memref<2x2048xf32, #tpu.memory_space<vmem>>, vector<1x128xf32>,
    %c23 = arith.constant 23 : index
    %c0_63 = arith.constant 0 : index
    %62 = vector.load %arg12[%c23, %c0_63] : memref<32x128xf32, #tpu.memory_space<vmem>>, vector<1x128xf32>
    %c1_64 = arith.constant 1 : index
    %c896_65 = arith.constant 896 : index
    %63 = vector.load %arg13[%c1_64, %c896_65] : memref<2x2048xf32, #tpu.memory_space<vmem>>, vector<1x128xf32>
    tpu.vector_store %arg13[%c1_64, %c896_65], %62 {strides = array<i32>} : memref<2x2048xf32, #tpu.memory_space<vmem>>, vector<1x128xf32>,
    %c24 = arith.constant 24 : index
    %c0_66 = arith.constant 0 : index
    %64 = vector.load %arg12[%c24, %c0_66] : memref<32x128xf32, #tpu.memory_space<vmem>>, vector<1x128xf32>
    %c1_67 = arith.constant 1 : index
    %c1024_68 = arith.constant 1024 : index
    %65 = vector.load %arg13[%c1_67, %c1024_68] : memref<2x2048xf32, #tpu.memory_space<vmem>>, vector<1x128xf32>
    tpu.vector_store %arg13[%c1_67, %c1024_68], %64 {strides = array<i32>} : memref<2x2048xf32, #tpu.memory_space<vmem>>, vector<1x128xf32>,
    %c25 = arith.constant 25 : index
    %c0_69 = arith.constant 0 : index
    %66 = vector.load %arg12[%c25, %c0_69] : memref<32x128xf32, #tpu.memory_space<vmem>>, vector<1x128xf32>
    %c1_70 = arith.constant 1 : index
    %c1152_71 = arith.constant 1152 : index
    %67 = vector.load %arg13[%c1_70, %c1152_71] : memref<2x2048xf32, #tpu.memory_space<vmem>>, vector<1x128xf32>
    tpu.vector_store %arg13[%c1_70, %c1152_71], %66 {strides = array<i32>} : memref<2x2048xf32, #tpu.memory_space<vmem>>, vector<1x128xf32>,
    %c26 = arith.constant 26 : index
    %c0_72 = arith.constant 0 : index
    %68 = vector.load %arg12[%c26, %c0_72] : memref<32x128xf32, #tpu.memory_space<vmem>>, vector<1x128xf32>
    %c1_73 = arith.constant 1 : index
    %c1280_74 = arith.constant 1280 : index
    %69 = vector.load %arg13[%c1_73, %c1280_74] : memref<2x2048xf32, #tpu.memory_space<vmem>>, vector<1x128xf32>
    tpu.vector_store %arg13[%c1_73, %c1280_74], %68 {strides = array<i32>} : memref<2x2048xf32, #tpu.memory_space<vmem>>, vector<1x128xf32>,
    %c27 = arith.constant 27 : index
    %c0_75 = arith.constant 0 : index
    %70 = vector.load %arg12[%c27, %c0_75] : memref<32x128xf32, #tpu.memory_space<vmem>>, vector<1x128xf32>
    %c1_76 = arith.constant 1 : index
    %c1408_77 = arith.constant 1408 : index
    %71 = vector.load %arg13[%c1_76, %c1408_77] : memref<2x2048xf32, #tpu.memory_space<vmem>>, vector<1x128xf32>
    tpu.vector_store %arg13[%c1_76, %c1408_77], %70 {strides = array<i32>} : memref<2x2048xf32, #tpu.memory_space<vmem>>, vector<1x128xf32>,
    %c28 = arith.constant 28 : index
    %c0_78 = arith.constant 0 : index
    %72 = vector.load %arg12[%c28, %c0_78] : memref<32x128xf32, #tpu.memory_space<vmem>>, vector<1x128xf32>
    %c1_79 = arith.constant 1 : index
    %c1536_80 = arith.constant 1536 : index
    %73 = vector.load %arg13[%c1_79, %c1536_80] : memref<2x2048xf32, #tpu.memory_space<vmem>>, vector<1x128xf32>
    tpu.vector_store %arg13[%c1_79, %c1536_80], %72 {strides = array<i32>} : memref<2x2048xf32, #tpu.memory_space<vmem>>, vector<1x128xf32>,
    %c29 = arith.constant 29 : index
    %c0_81 = arith.constant 0 : index
    %74 = vector.load %arg12[%c29, %c0_81] : memref<32x128xf32, #tpu.memory_space<vmem>>, vector<1x128xf32>
    %c1_82 = arith.constant 1 : index
    %c1664_83 = arith.constant 1664 : index
    %75 = vector.load %arg13[%c1_82, %c1664_83] : memref<2x2048xf32, #tpu.memory_space<vmem>>, vector<1x128xf32>
    tpu.vector_store %arg13[%c1_82, %c1664_83], %74 {strides = array<i32>} : memref<2x2048xf32, #tpu.memory_space<vmem>>, vector<1x128xf32>,
    %c30 = arith.constant 30 : index
    %c0_84 = arith.constant 0 : index
    %76 = vector.load %arg12[%c30, %c0_84] : memref<32x128xf32, #tpu.memory_space<vmem>>, vector<1x128xf32>
    %c1_85 = arith.constant 1 : index
    %c1792_86 = arith.constant 1792 : index
    %77 = vector.load %arg13[%c1_85, %c1792_86] : memref<2x2048xf32, #tpu.memory_space<vmem>>, vector<1x128xf32>
    tpu.vector_store %arg13[%c1_85, %c1792_86], %76 {strides = array<i32>} : memref<2x2048xf32, #tpu.memory_space<vmem>>, vector<1x128xf32>,
    %c31 = arith.constant 31 : index
    %c0_87 = arith.constant 0 : index
    %78 = vector.load %arg12[%c31, %c0_87] : memref<32x128xf32, #tpu.memory_space<vmem>>, vector<1x128xf32>
    %c1_88 = arith.constant 1 : index
    %c1920_89 = arith.constant 1920 : index
    %79 = vector.load %arg13[%c1_88, %c1920_89] : memref<2x2048xf32, #tpu.memory_space<vmem>>, vector<1x128xf32>
    tpu.vector_store %arg13[%c1_88, %c1920_89], %78 {strides = array<i32>} : memref<2x2048xf32, #tpu.memory_space<vmem>>, vector<1x128xf32>,
    %c0_90 = arith.constant 0 : index
    %c0_91 = arith.constant 0 : index
    %80 = vector.load %arg13[%c0_90, %c0_91] : memref<2x2048xf32, #tpu.memory_space<vmem>>, vector<2x2048xf32>
    %c0_92 = arith.constant 0 : index
    %c0_93 = arith.constant 0 : index
    %81 = vector.load %arg4[%c0_92, %c0_93] : memref<2048x768xf32, #tpu.memory_space<vmem>>, vector<2048x768xf32>
    %cst_94 = arith.constant dense<0.000000e+00> : vector<2x768xf32>
    %82 = tpu.matmul %80, %81, %cst_94 {dimension_numbers = #tpu.dot_dimension_numbers<[1], [0], [0], [1], [0, 0, 1, 1], [], []>} : vector<2x2048xf32>, vector<2048x768xf32>, vector<2x768xf32> -> vector<2x768xf32>
    %c0_95 = arith.constant 0 : index
    %c0_96 = arith.constant 0 : index
    %83 = vector.load %arg5[%c0_95, %c0_96] : memref<1x768xf32, #tpu.memory_space<vmem>>, vector<1x768xf32>
    %84 = vector.broadcast %83 : vector<1x768xf32> to vector<2x768xf32>
    %85 = arith.addf %82, %84 : vector<2x768xf32>
    %86 = vector.extract_strided_slice %85 {offsets = [0, 0], sizes = [2, 256], strides = [1, 1]} : vector<2x768xf32> to vector<2x256xf32>
    %87 = arith.negf %86 : vector<2x256xf32>
    %88 = math.exp %87 : vector<2x256xf32>
    %cst_97 = arith.constant 1.000000e+00 : f32
    %89 = vector.broadcast %cst_97 : f32 to vector<2x256xf32>
    %90 = arith.addf %89, %88 : vector<2x256xf32>
    %91 = arith.divf %89, %90 : vector<2x256xf32>
    %92 = vector.extract_strided_slice %85 {offsets = [0, 256], sizes = [2, 256], strides = [1, 1]} : vector<2x768xf32> to vector<2x256xf32>
    %93 = math.tanh %92 : vector<2x256xf32>
    %94 = vector.extract_strided_slice %85 {offsets = [0, 512], sizes = [2, 256], strides = [1, 1]} : vector<2x768xf32> to vector<2x256xf32>
    %95 = arith.negf %94 : vector<2x256xf32>
    %96 = math.exp %95 : vector<2x256xf32>
    %cst_98 = arith.constant 1.000000e+00 : f32
    %97 = vector.broadcast %cst_98 : f32 to vector<2x256xf32>
    %98 = arith.addf %97, %96 : vector<2x256xf32>
    %99 = arith.divf %97, %98 : vector<2x256xf32>
    %100 = arith.mulf %91, %93 : vector<2x256xf32>
    %101 = math.tanh %100 : vector<2x256xf32>
    %102 = arith.mulf %99, %101 : vector<2x256xf32>
    %cst_99 = arith.constant 0.000000e+00 : f32
    %103 = vector.broadcast %cst_99 : f32 to vector<2x256xf32>
    %104 = arith.maximumf %102, %103 : vector<2x256xf32>
    %c0_100 = arith.constant 0 : index
    %c0_101 = arith.constant 0 : index
    %105 = vector.load %arg6[%c0_100, %c0_101] : memref<256x64xf32, #tpu.memory_space<vmem>>, vector<256x64xf32>
    %cst_102 = arith.constant dense<0.000000e+00> : vector<2x64xf32>
    %106 = tpu.matmul %104, %105, %cst_102 {dimension_numbers = #tpu.dot_dimension_numbers<[1], [0], [0], [1], [0, 0, 1, 1], [], []>} : vector<2x256xf32>, vector<256x64xf32>, vector<2x64xf32> -> vector<2x64xf32>
    %c0_103 = arith.constant 0 : index
    %c0_104 = arith.constant 0 : index
    %107 = vector.load %arg7[%c0_103, %c0_104] : memref<1x64xf32, #tpu.memory_space<vmem>>, vector<1x64xf32>
    %108 = vector.broadcast %107 : vector<1x64xf32> to vector<2x64xf32>
    %109 = arith.addf %106, %108 : vector<2x64xf32>
    %c0_105 = arith.constant 0 : index
    %c0_106 = arith.constant 0 : index
    %110 = vector.load %arg8[%c0_105, %c0_106] : memref<64x5xf32, #tpu.memory_space<vmem>>, vector<64x5xf32>
    %cst_107 = arith.constant dense<0.000000e+00> : vector<2x5xf32>
    %111 = tpu.matmul %109, %110, %cst_107 {dimension_numbers = #tpu.dot_dimension_numbers<[1], [0], [0], [1], [0, 0, 1, 1], [], []>} : vector<2x64xf32>, vector<64x5xf32>, vector<2x5xf32> -> vector<2x5xf32>
    %c0_108 = arith.constant 0 : index
    %c0_109 = arith.constant 0 : index
    %112 = vector.load %arg9[%c0_108, %c0_109] : memref<1x5xf32, #tpu.memory_space<vmem>>, vector<1x5xf32>
    %113 = vector.broadcast %112 : vector<1x5xf32> to vector<2x5xf32>
    %114 = arith.addf %111, %113 : vector<2x5xf32>
    %c0_110 = arith.constant 0 : index
    %c0_111 = arith.constant 0 : index
    %115 = vector.load %arg10[%c0_110, %c0_111] : memref<2x5xf32, #tpu.memory_space<vmem>>, vector<2x5xf32>
    tpu.vector_store %arg10[%c0_110, %c0_111], %114 {strides = array<i32>} : memref<2x5xf32, #tpu.memory_space<vmem>>, vector<2x5xf32>,
    %cst_112 = arith.constant dense<0xFF800000> : vector<2xf32>
    %116 = vector.multi_reduction <maximumf>, %114, %cst_112 [1] : vector<2x5xf32> to vector<2xf32>
    %117 = vector.shape_cast %116 : vector<2xf32> to vector<2x1xf32>
    %118 = vector.broadcast %117 : vector<2x1xf32> to vector<2x5xf32>
    %119 = arith.subf %114, %118 : vector<2x5xf32>
    %120 = math.exp %119 : vector<2x5xf32>
    %cst_113 = arith.constant dense<0.000000e+00> : vector<2xf32>
    %121 = vector.multi_reduction <add>, %120, %cst_113 [1] : vector<2x5xf32> to vector<2xf32>
    %122 = vector.shape_cast %121 : vector<2xf32> to vector<2x1xf32>
    %123 = tpu.reciprocal %122 {approx = true} : vector<2x1xf32> -> vector<2x1xf32>
    %124 = vector.broadcast %123 : vector<2x1xf32> to vector<2x5xf32>
    %125 = arith.mulf %120, %124 : vector<2x5xf32>
    %c0_114 = arith.constant 0 : index
    %c0_115 = arith.constant 0 : index
    %126 = vector.load %arg11[%c0_114, %c0_115] : memref<2x5xf32, #tpu.memory_space<vmem>>, vector<2x5xf32>
    tpu.vector_store %arg11[%c0_114, %c0_115], %125 {strides = array<i32>} : memref<2x5xf32, #tpu.memory_space<vmem>>, vector<2x5xf32>,
    return
  }
  func.func @transform_0(%arg0: i32) -> (i32, i32) {
    %c0_i32 = arith.constant 0 : i32
    %c0_i32_0 = arith.constant 0 : i32
    %c0_i32_1 = arith.constant 0 : i32
    return %c0_i32, %c0_i32_0 : i32, i32
  }
  func.func @transform_1(%arg0: i32) -> (i32, i32) {
    %c0_i32 = arith.constant 0 : i32
    %c0_i32_0 = arith.constant 0 : i32
    %c0_i32_1 = arith.constant 0 : i32
    return %c0_i32, %c0_i32_0 : i32, i32
  }
  func.func @transform_2(%arg0: i32) -> (i32, i32) {
    %c0_i32 = arith.constant 0 : i32
    %c0_i32_0 = arith.constant 0 : i32
    %c0_i32_1 = arith.constant 0 : i32
    return %c0_i32, %c0_i32_0 : i32, i32
  }
  func.func @transform_3(%arg0: i32) -> (i32, i32) {
    %c0_i32 = arith.constant 0 : i32
    %c0_i32_0 = arith.constant 0 : i32
    %c0_i32_1 = arith.constant 0 : i32
    return %c0_i32, %c0_i32_0 : i32, i32
  }
  func.func @transform_4(%arg0: i32) -> (i32, i32) {
    %c0_i32 = arith.constant 0 : i32
    %c0_i32_0 = arith.constant 0 : i32
    %c0_i32_1 = arith.constant 0 : i32
    return %c0_i32, %c0_i32_0 : i32, i32
  }
  func.func @transform_5(%arg0: i32) -> (i32, i32) {
    %c0_i32 = arith.constant 0 : i32
    %c0_i32_0 = arith.constant 0 : i32
    %c0_i32_1 = arith.constant 0 : i32
    return %c0_i32, %c0_i32_0 : i32, i32
  }
  func.func @transform_6(%arg0: i32) -> (i32, i32) {
    %c0_i32 = arith.constant 0 : i32
    %c0_i32_0 = arith.constant 0 : i32
    %c0_i32_1 = arith.constant 0 : i32
    return %c0_i32, %c0_i32_0 : i32, i32
  }
  func.func @transform_7(%arg0: i32) -> (i32, i32) {
    %c0_i32 = arith.constant 0 : i32
    %c0_i32_0 = arith.constant 0 : i32
    %c0_i32_1 = arith.constant 0 : i32
    return %c0_i32, %c0_i32_0 : i32, i32
  }
  func.func @transform_8(%arg0: i32) -> (i32, i32) {
    %c0_i32 = arith.constant 0 : i32
    %c0_i32_0 = arith.constant 0 : i32
    %c0_i32_1 = arith.constant 0 : i32
    return %c0_i32, %c0_i32_0 : i32, i32
  }
  func.func @transform_9(%arg0: i32) -> (i32, i32) {
    %c0_i32 = arith.constant 0 : i32
    %c0_i32_0 = arith.constant 0 : i32
    %c0_i32_1 = arith.constant 0 : i32
    return %c0_i32, %c0_i32_0 : i32, i32
  }
  func.func @transform_10(%arg0: i32) -> (i32, i32) {
    %c0_i32 = arith.constant 0 : i32
    %c0_i32_0 = arith.constant 0 : i32
    %c0_i32_1 = arith.constant 0 : i32
    return %c0_i32, %c0_i32_0 : i32, i32
  }
}

</mosaic_0001>

<llo_original>
// kernel: net_forward.1
$region0: #{net_forward.1}
  #allocation0 [shape = 'u32[]', space=smem, size = 0x4, offset = 0x4, fixed_abs, tag = 'smem constant byte address 0x4 - core index']
  #allocation1 [shape = 'u32[144,128]{1,0:T(1,128)}', space=vmem, size = 0x12000, scoped, tag = 'internal scratch']
  #allocation2 [shape = 'f32[32,128]{1,0:T(8,128)}', space=vmem, size = 0x4000, scoped, tag = 'scratch operand']
  #allocation3 [shape = 'f32[2,2048]{1,0:T(2,128)}', space=vmem, size = 0x4000, scoped, tag = 'scratch operand']
  %s0 = inlined_call_operand.vmem [shape: f32[128,45], index: 0, kind: input, shape index: {}]
  %s1 = inlined_call_operand.hbm [shape: f32[45,128], index: 1, kind: input, shape index: {}]
  %s2 = inlined_call_operand.hbm [shape: f32[1,128], index: 2, kind: input, shape index: {}]
  %s3 = inlined_call_operand.hbm [shape: f32[2048,768], index: 3, kind: input, shape index: {}]
  %s4 = inlined_call_operand.hbm [shape: f32[1,768], index: 4, kind: input, shape index: {}]
  %s5 = inlined_call_operand.vmem [shape: f32[256,64], index: 5, kind: input, shape index: {}]
  %s6 = inlined_call_operand.hbm [shape: f32[1,64], index: 6, kind: input, shape index: {}]
  %s7 = inlined_call_operand.vmem [shape: f32[64,5], index: 7, kind: input, shape index: {}]
  %s8 = inlined_call_operand.hbm [shape: f32[1,5], index: 8, kind: input, shape index: {}]
  %s9 = inlined_call_operand.hbm [shape: f32[2,5], index: 9, kind: output, shape index: {0}]
  %s10 = inlined_call_operand.hbm [shape: f32[2,5], index: 10, kind: output, shape index: {1}]
  %11 = xla_tuple %s9, %s10
  %s12 = sld [smem:[#allocation0]]
  $region78: #{net_forward.1} parent=0
    _
  %s14 = ssub.s32 1, %s12
  %s15 = scalar_select 0, %s14, %s12
  $region1: #{net_forward.1} parent=0
    #allocation4 [shape = 'u8[24576]{0}', space=vmem, size = 0x6000, scoped, tag = 'input window, operand 1, single buffered']
    #allocation5 [shape = 's32[1]{0}', space=sflag, size = 0x4, scoped, tag = 'scoped memory for net_forward.1']
    #allocation6 [shape = 's32[1]{0}', space=sflag, size = 0x4, scoped, tag = 'scoped memory for net_forward.1']
    #allocation7 [shape = 'u8[512]{0}', space=vmem, size = 0x400, scoped, tag = 'input window, operand 2, single buffered']
    #allocation8 [shape = 's32[1]{0}', space=sflag, size = 0x4, scoped, tag = 'scoped memory for net_forward.1']
    #allocation9 [shape = 'u8[6291456]{0}', space=vmem, size = 0x600000, scoped, tag = 'input window, operand 3, single buffered']
    #allocation10 [shape = 'u8[3072]{0}', space=vmem, size = 0xc00, scoped, tag = 'input window, operand 4, single buffered']
    #allocation11 [shape = 's32[1]{0}', space=sflag, size = 0x4, scoped, tag = 'scoped memory for net_forward.1']
    #allocation12 [shape = 'u8[512]{0}', space=vmem, size = 0x400, scoped, tag = 'input window, operand 6, single buffered']
    #allocation13 [shape = 'u8[512]{0}', space=vmem, size = 0x400, scoped, tag = 'input window, operand 8, single buffered']
    #allocation14 [shape = 's32[1]{0}', space=sflag, size = 0x4, scoped, tag = 'scoped memory for net_forward.1']
    #allocation15 [shape = 'u8[1024]{0}', space=vmem, size = 0x400, scoped, tag = 'output window, operand 0, single buffered']
    #allocation16 [shape = 'u8[1024]{0}', space=vmem, size = 0x400, scoped, tag = 'output window, operand 1, single buffered']
    #allocation17 [shape = 's32[1]{0}', space=sflag, size = 0x4, scoped, tag = 'scoped memory for net_forward.1']
    %16 = vsyncpa [#allocation5], 0
    %17 = vsyncpa [#allocation8], 0
    %18 = vsyncpa [#allocation11], 0
    %19 = vsyncpa [#allocation14], 0
    %20 = vsyncpa [#allocation6], 0
    %21 = vsyncpa [#allocation17], 0
    // Predicated region
    $region2: #{net_forward.1} parent=1 // pred_check
      _
    $region3: #{net_forward.1} parent=1 // pred_check_branch
      %23 = sbr.rel (0) target = $region5
    $region4: #{net_forward.1} parent=1 // pred_region
      _
    $region5: #{net_forward.1} parent=1 // pred_fallthru
      _
    // Predicated region
    $region6: #{net_forward.1} parent=1 // pred_check
      _
    $region7: #{net_forward.1} parent=1 // pred_check_branch
      %25 = sbr.rel (0) target = $region9
    $region8: #{net_forward.1} parent=1 // pred_region
      %s27 = ssub.s32 768, 768
      %28 = vsyncadd [#allocation5], %s27
      %s29 = sshll.u32 [#allocation4], 4
      %s30 = int_to_ptr.vmem [resolvable:$true] %s29
      %35 = dma.hbm_to_vmem [thread:$0]  %s1, 768, %s30, [#allocation5], 128, 128, 8
    $region9: #{net_forward.1} parent=1 // pred_fallthru
      _
    // Predicated region
    $region10: #{net_forward.1} parent=1 // pred_check
      _
    $region11: #{net_forward.1} parent=1 // pred_check_branch
      %37 = sbr.rel (0) target = $region13
    $region12: #{net_forward.1} parent=1 // pred_region
      %s39 = ssub.s32 16, 16
      %40 = vsyncadd [#allocation8], %s39
      %s42 = sshll.u32 [#allocation7], 4
      %s43 = int_to_ptr.vmem [resolvable:$true] %s42
      %45 = dma.hbm_to_vmem [thread:$0]  %s2, 16, %s43, [#allocation8]
    $region13: #{net_forward.1} parent=1 // pred_fallthru
      _
    // Predicated region
    $region14: #{net_forward.1} parent=1 // pred_check
      _
    $region15: #{net_forward.1} parent=1 // pred_check_branch
      %47 = sbr.rel (0) target = $region17
    $region16: #{net_forward.1} parent=1 // pred_region
      %s49 = ssub.s32 196608, 196608
      %50 = vsyncadd [#allocation8], %s49
      %s51 = sshll.u32 [#allocation9], 4
      %s52 = int_to_ptr.vmem [resolvable:$true] %s51
      %57 = dma.hbm_to_vmem [thread:$0]  %s3, 196608, %s52, [#allocation8], 768, 768, 48
    $region17: #{net_forward.1} parent=1 // pred_fallthru
      _
    // Predicated region
    $region18: #{net_forward.1} parent=1 // pred_check
      _
    $region19: #{net_forward.1} parent=1 // pred_check_branch
      %59 = sbr.rel (0) target = $region21
    $region20: #{net_forward.1} parent=1 // pred_region
      %s61 = ssub.s32 96, 96
      %62 = vsyncadd [#allocation11], %s61
      %s64 = sshll.u32 [#allocation10], 4
      %s65 = int_to_ptr.vmem [resolvable:$true] %s64
      %67 = dma.hbm_to_vmem [thread:$0]  %s4, 96, %s65, [#allocation11]
    $region21: #{net_forward.1} parent=1 // pred_fallthru
      _
    // Predicated region
    $region22: #{net_forward.1} parent=1 // pred_check
      _
    $region23: #{net_forward.1} parent=1 // pred_check_branch
      %69 = sbr.rel (0) target = $region25
    $region24: #{net_forward.1} parent=1 // pred_region
      _
    $region25: #{net_forward.1} parent=1 // pred_fallthru
      _
    // Predicated region
    $region26: #{net_forward.1} parent=1 // pred_check
      _
    $region27: #{net_forward.1} parent=1 // pred_check_branch
      %71 = sbr.rel (0) target = $region29
    $region28: #{net_forward.1} parent=1 // pred_region
      %s73 = ssub.s32 16, 16
      %74 = vsyncadd [#allocation11], %s73
      %s76 = sshll.u32 [#allocation12], 4
      %s77 = int_to_ptr.vmem [resolvable:$true] %s76
      %79 = dma.hbm_to_vmem [thread:$0]  %s6, 16, %s77, [#allocation11]
    $region29: #{net_forward.1} parent=1 // pred_fallthru
      _
    // Predicated region
    $region30: #{net_forward.1} parent=1 // pred_check
      _
    $region31: #{net_forward.1} parent=1 // pred_check_branch
      %81 = sbr.rel (0) target = $region33
    $region32: #{net_forward.1} parent=1 // pred_region
      _
    $region33: #{net_forward.1} parent=1 // pred_fallthru
      _
    // Predicated region
    $region34: #{net_forward.1} parent=1 // pred_check
      _
    $region35: #{net_forward.1} parent=1 // pred_check_branch
      %83 = sbr.rel (0) target = $region37
    $region36: #{net_forward.1} parent=1 // pred_region
      %s85 = ssub.s32 16, 16
      %86 = vsyncadd [#allocation14], %s85
      %s88 = sshll.u32 [#allocation13], 4
      %s89 = int_to_ptr.vmem [resolvable:$true] %s88
      %91 = dma.hbm_to_vmem [thread:$0]  %s8, 16, %s89, [#allocation14]
    $region37: #{net_forward.1} parent=1 // pred_fallthru
      _
    // Predicated region
    $region38: #{net_forward.1} parent=1 // pred_check
      _
    $region39: #{net_forward.1} parent=1 // pred_check_branch
      %93 = sbr.rel (0) target = $region41
    $region40: #{net_forward.1} parent=1 // pred_region
      %94 = dma.done [#allocation5], 768
    $region41: #{net_forward.1} parent=1 // pred_fallthru
      _
    // Predicated region
    $region42: #{net_forward.1} parent=1 // pred_check
      _
    $region43: #{net_forward.1} parent=1 // pred_check_branch
      %96 = sbr.rel (0) target = $region45
    $region44: #{net_forward.1} parent=1 // pred_region
      %97 = dma.done [#allocation8], 16
    $region45: #{net_forward.1} parent=1 // pred_fallthru
      _
    // Predicated region
    $region46: #{net_forward.1} parent=1 // pred_check
      _
    $region47: #{net_forward.1} parent=1 // pred_check_branch
      %99 = sbr.rel (0) target = $region49
    $region48: #{net_forward.1} parent=1 // pred_region
      %100 = dma.done [#allocation8], 196608
    $region49: #{net_forward.1} parent=1 // pred_fallthru
      _
    // Predicated region
    $region50: #{net_forward.1} parent=1 // pred_check
      _
    $region51: #{net_forward.1} parent=1 // pred_check_branch
      %102 = sbr.rel (0) target = $region53
    $region52: #{net_forward.1} parent=1 // pred_region
      %103 = dma.done [#allocation11], 96
    $region53: #{net_forward.1} parent=1 // pred_fallthru
      _
    // Predicated region
    $region54: #{net_forward.1} parent=1 // pred_check
      _
    $region55: #{net_forward.1} parent=1 // pred_check_branch
      %105 = sbr.rel (0) target = $region57
    $region56: #{net_forward.1} parent=1 // pred_region
      %106 = dma.done [#allocation11], 16
    $region57: #{net_forward.1} parent=1 // pred_fallthru
      _
    // Predicated region
    $region58: #{net_forward.1} parent=1 // pred_check
      _
    $region59: #{net_forward.1} parent=1 // pred_check_branch
      %108 = sbr.rel (0) target = $region61
    $region60: #{net_forward.1} parent=1 // pred_region
      %109 = dma.done [#allocation14], 16
    $region61: #{net_forward.1} parent=1 // pred_fallthru
      _
    %v110 = vld [vmem:[%s0] sm:$0xff]
    %v111 = vld [vmem:[%s0 + $0x8] sm:$0xff]
    %v112 = vld [vmem:[%s0 + $0x10] sm:$0xff]
    %v113 = vld [vmem:[%s0 + $0x18] sm:$0xff]
    %v114 = vld [vmem:[%s0 + $0x20] sm:$0xff]
    %v115 = vld [vmem:[%s0 + $0x28] sm:$0xff]
    %v116 = vld [vmem:[%s0 + $0x30] sm:$0xff]
    %v117 = vld [vmem:[%s0 + $0x38] sm:$0xff]
    %v118 = vld [vmem:[%s0 + $0x40] sm:$0xff]
    %v119 = vld [vmem:[%s0 + $0x48] sm:$0xff]
    %v120 = vld [vmem:[%s0 + $0x50] sm:$0xff]
    %v121 = vld [vmem:[%s0 + $0x58] sm:$0xff]
    %v122 = vld [vmem:[%s0 + $0x60] sm:$0xff]
    %v123 = vld [vmem:[%s0 + $0x68] sm:$0xff]
    %v124 = vld [vmem:[%s0 + $0x70] sm:$0xff]
    %v125 = vld [vmem:[%s0 + $0x78] sm:$0xff]
    %v126 = vld [vmem:[#allocation4] sm:$0xff]
    %v127 = vld [vmem:[#allocation4 + $0x8] sm:$0xff]
    %v128 = vld [vmem:[#allocation4 + $0x10] sm:$0xff]
    %v129 = vld [vmem:[#allocation4 + $0x18] sm:$0xff]
    %v130 = vld [vmem:[#allocation4 + $0x20] sm:$0xff]
    %v131 = vld [vmem:[#allocation4 + $0x28] sm:$0x1f]
    %vm132 = vcmask 367616
    %v134 = vsel %vm132, %v110, 0
    %v137 = vsel %vm132, %v111, 0
    %v140 = vsel %vm132, %v112, 0
    %v143 = vsel %vm132, %v113, 0
    %v146 = vsel %vm132, %v114, 0
    %v149 = vsel %vm132, %v115, 0
    %v152 = vsel %vm132, %v116, 0
    %v155 = vsel %vm132, %v117, 0
    %v158 = vsel %vm132, %v118, 0
    %v161 = vsel %vm132, %v119, 0
    %v164 = vsel %vm132, %v120, 0
    %v167 = vsel %vm132, %v121, 0
    %v170 = vsel %vm132, %v122, 0
    %v173 = vsel %vm132, %v123, 0
    %v176 = vsel %vm132, %v124, 0
    %v179 = vsel %vm132, %v125, 0
    %vm181 = vcmask 1044480
    %v183 = vsel %vm181, %v131, 0
    %185 = vmatprep.subr.mxu0 0.0
    %186 = vmatpush1.msra.mxu0 %v126
    %187 = vmatprep.subr.mxu0 0.0
    %188 = vmatpush1.msra.mxu0 %v127
    %189 = vmatprep.subr.mxu0 0.0
    %190 = vmatpush1.msra.mxu0 %v128
    %191 = vmatprep.subr.mxu0 0.0
    %192 = vmatpush1.msra.mxu0 %v129
    %193 = vmatprep.subr.mxu0 0.0
    %194 = vmatpush1.msra.mxu0 %v130
    %195 = vmatprep.subr.mxu0 0.0
    %196 = vmatpush1.msra.mxu0 %v183
    %197 = vmatprep.subr.mxu0 0.0
    %198 = vmatpush1.msra.mxu0 0.0
    %199 = vmatprep.subr.mxu0 0.0
    %200 = vmatpush1.msra.mxu0 0.0
    %201 = vmatprep.subr.mxu0 0.0
    %202 = vmatpush1.msra.mxu0 0.0
    %203 = vmatprep.subr.mxu0 0.0
    %204 = vmatpush1.msra.mxu0 0.0
    %205 = vmatprep.subr.mxu0 0.0
    %206 = vmatpush1.msra.mxu0 0.0
    %207 = vmatprep.subr.mxu0 0.0
    %208 = vmatpush1.msra.mxu0 0.0
    %209 = vmatprep.subr.mxu0 0.0
    %210 = vmatpush1.msra.mxu0 0.0
    %211 = vmatprep.subr.mxu0 0.0
    %212 = vmatpush1.msra.mxu0 0.0
    %213 = vmatprep.subr.mxu0 0.0
    %214 = vmatpush1.msra.mxu0 0.0
    %215 = vmatprep.subr.mxu0 0.0
    %216 = vmatpush1.msra.mxu0 0.0
    %217 = vmatprep.subr.mxu0 0.0
    %218 = vmatpush1.msra.mxu0 0.0
    %219 = vmatprep.subr.mxu0 0.0
    %220 = vmatpush1.msra.mxu0 0.0
    %221 = vmatprep.subr.mxu0 0.0
    %222 = vmatpush1.msra.mxu0 0.0
    %223 = vmatprep.subr.mxu0 0.0
    %224 = vmatpush1.msra.mxu0 0.0
    %225 = vmatprep.subr.mxu0 0.0
    %226 = vmatpush1.msra.mxu0 0.0
    %227 = vmatprep.subr.mxu0 0.0
    %228 = vmatpush1.msra.mxu0 0.0
    %229 = vmatprep.subr.mxu0 0.0
    %230 = vmatpush1.msra.mxu0 0.0
    %231 = vmatprep.subr.mxu0 0.0
    %232 = vmatpush1.msra.mxu0 0.0
    %233 = vmatprep.subr.mxu0 0.0
    %234 = vmatpush1.msra.mxu0 0.0
    %235 = vmatprep.subr.mxu0 0.0
    %236 = vmatpush1.msra.mxu0 0.0
    %237 = vmatprep.subr.mxu0 0.0
    %238 = vmatpush1.msra.mxu0 0.0
    %239 = vmatprep.subr.mxu0 0.0
    %240 = vmatpush1.msra.mxu0 0.0
    %241 = vmatprep.subr.mxu0 0.0
    %242 = vmatpush1.msra.mxu0 0.0
    %243 = vmatprep.subr.mxu0 0.0
    %244 = vmatpush1.msra.mxu0 0.0
    %245 = vmatprep.subr.mxu0 0.0
    %246 = vmatpush1.msra.mxu0 0.0
    %247 = vmatprep.subr.mxu0 0.0
    %248 = vmatpush1.msra.mxu0 0.0
    %249 = vmatprep.mubr.f32.mxu0 0.0
    %250 = vmatmul.mubr.f32.gmra.mrb[0].mxu0 %v134
    %v251 = vpop.f32.mrb[0].mxu0
    %v252 = vadd.f32 0.0, %v251
    %v253 = vpop.f32.mrb[0].mxu0
    %254 = vmatprep.mubr.f32.mxu0 0.0
    %255 = vmatmul.mubr.f32.gmra.mrb[0].mxu0 %v137
    %v256 = vpop.f32.mrb[0].mxu0
    %v257 = vadd.f32 0.0, %v256
    %v258 = vpop.f32.mrb[0].mxu0
    %259 = vmatprep.mubr.f32.mxu0 0.0
    %260 = vmatmul.mubr.f32.gmra.mrb[0].mxu0 %v140
    %v261 = vpop.f32.mrb[0].mxu0
    %v262 = vadd.f32 0.0, %v261
    %v263 = vpop.f32.mrb[0].mxu0
    %264 = vmatprep.mubr.f32.mxu0 0.0
    %265 = vmatmul.mubr.f32.gmra.mrb[0].mxu0 %v143
    %v266 = vpop.f32.mrb[0].mxu0
    %v267 = vadd.f32 0.0, %v266
    %v268 = vpop.f32.mrb[0].mxu0
    %269 = vmatprep.mubr.f32.mxu0 0.0
    %270 = vmatmul.mubr.f32.gmra.mrb[0].mxu0 %v146
    %v271 = vpop.f32.mrb[0].mxu0
    %v272 = vadd.f32 0.0, %v271
    %v273 = vpop.f32.mrb[0].mxu0
    %274 = vmatprep.mubr.f32.mxu0 0.0
    %275 = vmatmul.mubr.f32.gmra.mrb[0].mxu0 %v149
    %v276 = vpop.f32.mrb[0].mxu0
    %v277 = vadd.f32 0.0, %v276
    %v278 = vpop.f32.mrb[0].mxu0
    %279 = vmatprep.mubr.f32.mxu0 0.0
    %280 = vmatmul.mubr.f32.gmra.mrb[0].mxu0 %v152
    %v281 = vpop.f32.mrb[0].mxu0
    %v282 = vadd.f32 0.0, %v281
    %v283 = vpop.f32.mrb[0].mxu0
    %284 = vmatprep.mubr.f32.mxu0 0.0
    %285 = vmatmul.mubr.f32.gmra.mrb[0].mxu0 %v155
    %v286 = vpop.f32.mrb[0].mxu0
    %v287 = vadd.f32 0.0, %v286
    %v288 = vpop.f32.mrb[0].mxu0
    %289 = vmatprep.mubr.f32.mxu0 0.0
    %290 = vmatmul.mubr.f32.gmra.mrb[0].mxu0 %v158
    %v291 = vpop.f32.mrb[0].mxu0
    %v292 = vadd.f32 0.0, %v291
    %v293 = vpop.f32.mrb[0].mxu0
    %294 = vmatprep.mubr.f32.mxu0 0.0
    %295 = vmatmul.mubr.f32.gmra.mrb[0].mxu0 %v161
    %v296 = vpop.f32.mrb[0].mxu0
    %v297 = vadd.f32 0.0, %v296
    %v298 = vpop.f32.mrb[0].mxu0
    %299 = vmatprep.mubr.f32.mxu0 0.0
    %300 = vmatmul.mubr.f32.gmra.mrb[0].mxu0 %v164
    %v301 = vpop.f32.mrb[0].mxu0
    %v302 = vadd.f32 0.0, %v301
    %v303 = vpop.f32.mrb[0].mxu0
    %304 = vmatprep.mubr.f32.mxu0 0.0
    %305 = vmatmul.mubr.f32.gmra.mrb[0].mxu0 %v167
    %v306 = vpop.f32.mrb[0].mxu0
    %v307 = vadd.f32 0.0, %v306
    %v308 = vpop.f32.mrb[0].mxu0
    %309 = vmatprep.mubr.f32.mxu0 0.0
    %310 = vmatmul.mubr.f32.gmra.mrb[0].mxu0 %v170
    %v311 = vpop.f32.mrb[0].mxu0
    %v312 = vadd.f32 0.0, %v311
    %v313 = vpop.f32.mrb[0].mxu0
    %314 = vmatprep.mubr.f32.mxu0 0.0
    %315 = vmatmul.mubr.f32.gmra.mrb[0].mxu0 %v173
    %v316 = vpop.f32.mrb[0].mxu0
    %v317 = vadd.f32 0.0, %v316
    %v318 = vpop.f32.mrb[0].mxu0
    %319 = vmatprep.mubr.f32.mxu0 0.0
    %320 = vmatmul.mubr.f32.gmra.mrb[0].mxu0 %v176
    %v321 = vpop.f32.mrb[0].mxu0
    %v322 = vadd.f32 0.0, %v321
    %v323 = vpop.f32.mrb[0].mxu0
    %324 = vmatprep.mubr.f32.mxu0 0.0
    %325 = vmatmul.mubr.f32.gmra.mrb[0].mxu0 %v179
    %v326 = vpop.f32.mrb[0].mxu0
    %v327 = vadd.f32 0.0, %v326
    %v328 = vpop.f32.mrb[0].mxu0
    %329 = vdwg.mxu0
    %v330 = vmax.f32 %v252, %v272
    %v331 = vmax.f32 %v257, %v277
    %v332 = vmax.f32 %v262, %v282
    %v333 = vmax.f32 %v267, %v287
    %v334 = vmax.f32 %v292, %v312
    %v335 = vmax.f32 %v297, %v317
    %v336 = vmax.f32 %v302, %v322
    %v337 = vmax.f32 %v307, %v327
    %v338 = vmax.f32 %v330, %v334
    %v339 = vmax.f32 %v331, %v335
    %v340 = vmax.f32 %v332, %v336
    %v341 = vmax.f32 %v333, %v337
    %v342 = vld [vmem:[#allocation7] sm:$0x1]
    %v344 = vlaneseq
    %v345 = vshrl.u32 %v344, 7
    %v346 = vsub.s32 0, %v345
    %v347 = vrot.slane %v342, %v346
    %v349 = vadd.f32 %v338, %v347
    %v350 = vadd.f32 %v339, %v347
    %v351 = vadd.f32 %v340, %v347
    %v352 = vadd.f32 %v341, %v347
    %v353 = vmax.f32 %v349, 0.0
    %v354 = vmax.f32 %v350, 0.0
    %v355 = vmax.f32 %v351, 0.0
    %v356 = vmax.f32 %v352, 0.0
    %357 = vst [vmem:[#allocation2] sm:$0xff] %v353
    %358 = vst [vmem:[#allocation2 + $0x8] sm:$0xff] %v354
    %359 = vst [vmem:[#allocation2 + $0x10] sm:$0xff] %v355
    %360 = vst [vmem:[#allocation2 + $0x18] sm:$0xff] %v356
    %v361 = vld [vmem:[#allocation2] sm:$0x1]
    %362 = vst [vmem:[#allocation3] sm:$0x1] %v361
    %v363 = vld [vmem:[#allocation2 + $0x1] sm:$0x1]
    %364 = vst [vmem:[#allocation3 + $0x2] sm:$0x1] %v363
    %v365 = vld [vmem:[#allocation2 + $0x2] sm:$0x1]
    %366 = vst [vmem:[#allocation3 + $0x4] sm:$0x1] %v365
    %v367 = vld [vmem:[#allocation2 + $0x3] sm:$0x1]
    %368 = vst [vmem:[#allocation3 + $0x6] sm:$0x1] %v367
    %v369 = vld [vmem:[#allocation2 + $0x4] sm:$0x1]
    %370 = vst [vmem:[#allocation3 + $0x8] sm:$0x1] %v369
    %v371 = vld [vmem:[#allocation2 + $0x5] sm:$0x1]
    %372 = vst [vmem:[#allocation3 + $0xa] sm:$0x1] %v371
    %v373 = vld [vmem:[#allocation2 + $0x6] sm:$0x1]
    %374 = vst [vmem:[#allocation3 + $0xc] sm:$0x1] %v373
    %v375 = vld [vmem:[#allocation2 + $0x7] sm:$0x1]
    %376 = vst [vmem:[#allocation3 + $0xe] sm:$0x1] %v375
    %v377 = vld [vmem:[#allocation2 + $0x8] sm:$0x1]
    %378 = vst [vmem:[#allocation3 + $0x10] sm:$0x1] %v377
    %v379 = vld [vmem:[#allocation2 + $0x9] sm:$0x1]
    %380 = vst [vmem:[#allocation3 + $0x12] sm:$0x1] %v379
    %v381 = vld [vmem:[#allocation2 + $0xa] sm:$0x1]
    %382 = vst [vmem:[#allocation3 + $0x14] sm:$0x1] %v381
    %v383 = vld [vmem:[#allocation2 + $0xb] sm:$0x1]
    %384 = vst [vmem:[#allocation3 + $0x16] sm:$0x1] %v383
    %v385 = vld [vmem:[#allocation2 + $0xc] sm:$0x1]
    %386 = vst [vmem:[#allocation3 + $0x18] sm:$0x1] %v385
    %v387 = vld [vmem:[#allocation2 + $0xd] sm:$0x1]
    %388 = vst [vmem:[#allocation3 + $0x1a] sm:$0x1] %v387
    %v389 = vld [vmem:[#allocation2 + $0xe] sm:$0x1]
    %390 = vst [vmem:[#allocation3 + $0x1c] sm:$0x1] %v389
    %v391 = vld [vmem:[#allocation2 + $0xf] sm:$0x1]
    %392 = vst [vmem:[#allocation3 + $0x1e] sm:$0x1] %v391
    %v393 = vld [vmem:[#allocation2 + $0x10] sm:$0x1]
    %394 = vst [vmem:[#allocation3 + $0x1] sm:$0x1] %v393
    %v395 = vld [vmem:[#allocation2 + $0x11] sm:$0x1]
    %396 = vst [vmem:[#allocation3 + $0x3] sm:$0x1] %v395
    %v397 = vld [vmem:[#allocation2 + $0x12] sm:$0x1]
    %398 = vst [vmem:[#allocation3 + $0x5] sm:$0x1] %v397
    %v399 = vld [vmem:[#allocation2 + $0x13] sm:$0x1]
    %400 = vst [vmem:[#allocation3 + $0x7] sm:$0x1] %v399
    %v401 = vld [vmem:[#allocation2 + $0x14] sm:$0x1]
    %402 = vst [vmem:[#allocation3 + $0x9] sm:$0x1] %v401
    %v403 = vld [vmem:[#allocation2 + $0x15] sm:$0x1]
    %404 = vst [vmem:[#allocation3 + $0xb] sm:$0x1] %v403
    %v405 = vld [vmem:[#allocation2 + $0x16] sm:$0x1]
    %406 = vst [vmem:[#allocation3 + $0xd] sm:$0x1] %v405
    %v407 = vld [vmem:[#allocation2 + $0x17] sm:$0x1]
    %408 = vst [vmem:[#allocation3 + $0xf] sm:$0x1] %v407
    %v409 = vld [vmem:[#allocation2 + $0x18] sm:$0x1]
    %410 = vst [vmem:[#allocation3 + $0x11] sm:$0x1] %v409
    %v411 = vld [vmem:[#allocation2 + $0x19] sm:$0x1]
    %412 = vst [vmem:[#allocation3 + $0x13] sm:$0x1] %v411
    %v413 = vld [vmem:[#allocation2 + $0x1a] sm:$0x1]
    %414 = vst [vmem:[#allocation3 + $0x15] sm:$0x1] %v413
    %v415 = vld [vmem:[#allocation2 + $0x1b] sm:$0x1]
    %416 = vst [vmem:[#allocation3 + $0x17] sm:$0x1] %v415
    %v417 = vld [vmem:[#allocation2 + $0x1c] sm:$0x1]
    %418 = vst [vmem:[#allocation3 + $0x19] sm:$0x1] %v417
    %v419 = vld [vmem:[#allocation2 + $0x1d] sm:$0x1]
    %420 = vst [vmem:[#allocation3 + $0x1b] sm:$0x1] %v419
    %v421 = vld [vmem:[#allocation2 + $0x1e] sm:$0x1]
    %422 = vst [vmem:[#allocation3 + $0x1d] sm:$0x1] %v421
    %v423 = vld [vmem:[#allocation2 + $0x1f] sm:$0x1]
    %424 = vst [vmem:[#allocation3 + $0x1f] sm:$0x1] %v423
    %v425 = vld [vmem:[#allocation3] sm:$0xff]
    %v426 = vld [vmem:[#allocation3 + $0x8] sm:$0xff]
    %v427 = vld [vmem:[#allocation3 + $0x10] sm:$0xff]
    %v428 = vld [vmem:[#allocation3 + $0x18] sm:$0xff]
    %v429 = vld [vmem:[#allocation9] sm:$0xff]
    %v430 = vld [vmem:[#allocation9 + $0x8] sm:$0xff]
    %v431 = vld [vmem:[#allocation9 + $0x10] sm:$0xff]
    %v432 = vld [vmem:[#allocation9 + $0x18] sm:$0xff]
    %v433 = vld [vmem:[#allocation9 + $0x20] sm:$0xff]
    %v434 = vld [vmem:[#allocation9 + $0x28] sm:$0xff]
    %v435 = vld [vmem:[#allocation9 + $0x30] sm:$0xff]
    %v436 = vld [vmem:[#allocation9 + $0x38] sm:$0xff]
    %v437 = vld [vmem:[#allocation9 + $0x40] sm:$0xff]
    %v438 = vld [vmem:[#allocation9 + $0x48] sm:$0xff]
    %v439 = vld [vmem:[#allocation9 + $0x50] sm:$0xff]
    %v440 = vld [vmem:[#allocation9 + $0x58] sm:$0xff]
    %v441 = vld [vmem:[#allocation9 + $0x60] sm:$0xff]
    %v442 = vld [vmem:[#allocation9 + $0x68] sm:$0xff]
    %v443 = vld [vmem:[#allocation9 + $0x70] sm:$0xff]
    %v444 = vld [vmem:[#allocation9 + $0x78] sm:$0xff]
    %v445 = vld [vmem:[#allocation9 + $0x80] sm:$0xff]
    %v446 = vld [vmem:[#allocation9 + $0x88] sm:$0xff]
    %v447 = vld [vmem:[#allocation9 + $0x90] sm:$0xff]
    %v448 = vld [vmem:[#allocation9 + $0x98] sm:$0xff]
    %v449 = vld [vmem:[#allocation9 + $0xa0] sm:$0xff]
    %v450 = vld [vmem:[#allocation9 + $0xa8] sm:$0xff]
    %v451 = vld [vmem:[#allocation9 + $0xb0] sm:$0xff]
    %v452 = vld [vmem:[#allocation9 + $0xb8] sm:$0xff]
    %v453 = vld [vmem:[#allocation9 + $0xc0] sm:$0xff]
    %v454 = vld [vmem:[#allocation9 + $0xc8] sm:$0xff]
    %v455 = vld [vmem:[#allocation9 + $0xd0] sm:$0xff]
    %v456 = vld [vmem:[#allocation9 + $0xd8] sm:$0xff]
    %v457 = vld [vmem:[#allocation9 + $0xe0] sm:$0xff]
    %v458 = vld [vmem:[#allocation9 + $0xe8] sm:$0xff]
    %v459 = vld [vmem:[#allocation9 + $0xf0] sm:$0xff]
    %v460 = vld [vmem:[#allocation9 + $0xf8] sm:$0xff]
    %v461 = vld [vmem:[#allocation9 + $0x100] sm:$0xff]
    %v462 = vld [vmem:[#allocation9 + $0x108] sm:$0xff]
    %v463 = vld [vmem:[#allocation9 + $0x110] sm:$0xff]
    %v464 = vld [vmem:[#allocation9 + $0x118] sm:$0xff]
    %v465 = vld [vmem:[#allocation9 + $0x120] sm:$0xff]
    %v466 = vld [vmem:[#allocation9 + $0x128] sm:$0xff]
    %v467 = vld [vmem:[#allocation9 + $0x130] sm:$0xff]
    %v468 = vld [vmem:[#allocation9 + $0x138] sm:$0xff]
    %v469 = vld [vmem:[#allocation9 + $0x140] sm:$0xff]
    %v470 = vld [vmem:[#allocation9 + $0x148] sm:$0xff]
    %v471 = vld [vmem:[#allocation9 + $0x150] sm:$0xff]
    %v472 = vld [vmem:[#allocation9 + $0x158] sm:$0xff]
    %v473 = vld [vmem:[#allocation9 + $0x160] sm:$0xff]
    %v474 = vld [vmem:[#allocation9 + $0x168] sm:$0xff]
    %v475 = vld [vmem:[#allocation9 + $0x170] sm:$0xff]
    %v476 = vld [vmem:[#allocation9 + $0x178] sm:$0xff]
    %v477 = vld [vmem:[#allocation9 + $0x180] sm:$0xff]
    %v478 = vld [vmem:[#allocation9 + $0x188] sm:$0xff]
    %v479 = vld [vmem:[#allocation9 + $0x190] sm:$0xff]
    %v480 = vld [vmem:[#allocation9 + $0x198] sm:$0xff]
    %v481 = vld [vmem:[#allocation9 + $0x1a0] sm:$0xff]
    %v482 = vld [vmem:[#allocation9 + $0x1a8] sm:$0xff]
    %v483 = vld [vmem:[#allocation9 + $0x1b0] sm:$0xff]
    %v484 = vld [vmem:[#allocation9 + $0x1b8] sm:$0xff]
    %v485 = vld [vmem:[#allocation9 + $0x1c0] sm:$0xff]
    %v486 = vld [vmem:[#allocation9 + $0x1c8] sm:$0xff]
    %v487 = vld [vmem:[#allocation9 + $0x1d0] sm:$0xff]
    %v488 = vld [vmem:[#allocation9 + $0x1d8] sm:$0xff]
    %v489 = vld [vmem:[#allocation9 + $0x1e0] sm:$0xff]
    %v490 = vld [vmem:[#allocation9 + $0x1e8] sm:$0xff]
    %v491 = vld [vmem:[#allocation9 + $0x1f0] sm:$0xff]
    %v492 = vld [vmem:[#allocation9 + $0x1f8] sm:$0xff]
    %v493 = vld [vmem:[#allocation9 + $0x200] sm:$0xff]
    %v494 = vld [vmem:[#allocation9 + $0x208] sm:$0xff]
    %v495 = vld [vmem:[#allocation9 + $0x210] sm:$0xff]
    %v496 = vld [vmem:[#allocation9 + $0x218] sm:$0xff]
    %v497 = vld [vmem:[#allocation9 + $0x220] sm:$0xff]
    %v498 = vld [vmem:[#allocation9 + $0x228] sm:$0xff]
    %v499 = vld [vmem:[#allocation9 + $0x230] sm:$0xff]
    %v500 = vld [vmem:[#allocation9 + $0x238] sm:$0xff]
    %v501 = vld [vmem:[#allocation9 + $0x240] sm:$0xff]
    %v502 = vld [vmem:[#allocation9 + $0x248] sm:$0xff]
    %v503 = vld [vmem:[#allocation9 + $0x250] sm:$0xff]
    %v504 = vld [vmem:[#allocation9 + $0x258] sm:$0xff]
    %v505 = vld [vmem:[#allocation9 + $0x260] sm:$0xff]
    %v506 = vld [vmem:[#allocation9 + $0x268] sm:$0xff]
    %v507 = vld [vmem:[#allocation9 + $0x270] sm:$0xff]
    %v508 = vld [vmem:[#allocation9 + $0x278] sm:$0xff]
    %v509 = vld [vmem:[#allocation9 + $0x280] sm:$0xff]
    %v510 = vld [vmem:[#allocation9 + $0x288] sm:$0xff]
    %v511 = vld [vmem:[#allocation9 + $0x290] sm:$0xff]
    %v512 = vld [vmem:[#allocation9 + $0x298] sm:$0xff]
    %v513 = vld [vmem:[#allocation9 + $0x2a0] sm:$0xff]
    %v514 = vld [vmem:[#allocation9 + $0x2a8] sm:$0xff]
    %v515 = vld [vmem:[#allocation9 + $0x2b0] sm:$0xff]
    %v516 = vld [vmem:[#allocation9 + $0x2b8] sm:$0xff]
    %v517 = vld [vmem:[#allocation9 + $0x2c0] sm:$0xff]
    %v518 = vld [vmem:[#allocation9 + $0x2c8] sm:$0xff]
    %v519 = vld [vmem:[#allocation9 + $0x2d0] sm:$0xff]
    %v520 = vld [vmem:[#allocation9 + $0x2d8] sm:$0xff]
    %v521 = vld [vmem:[#allocation9 + $0x2e0] sm:$0xff]
    %v522 = vld [vmem:[#allocation9 + $0x2e8] sm:$0xff]
    %v523 = vld [vmem:[#allocation9 + $0x2f0] sm:$0xff]
    %v524 = vld [vmem:[#allocation9 + $0x2f8] sm:$0xff]
    %v525 = vld [vmem:[#allocation9 + $0x300] sm:$0xff]
    %v526 = vld [vmem:[#allocation9 + $0x308] sm:$0xff]
    %v527 = vld [vmem:[#allocation9 + $0x310] sm:$0xff]
    %v528 = vld [vmem:[#allocation9 + $0x318] sm:$0xff]
    %v529 = vld [vmem:[#allocation9 + $0x320] sm:$0xff]
    %v530 = vld [vmem:[#allocation9 + $0x328] sm:$0xff]
    %v531 = vld [vmem:[#allocation9 + $0x330] sm:$0xff]
    %v532 = vld [vmem:[#allocation9 + $0x338] sm:$0xff]
    %v533 = vld [vmem:[#allocation9 + $0x340] sm:$0xff]
    %v534 = vld [vmem:[#allocation9 + $0x348] sm:$0xff]
    %v535 = vld [vmem:[#allocation9 + $0x350] sm:$0xff]
    %v536 = vld [vmem:[#allocation9 + $0x358] sm:$0xff]
    %v537 = vld [vmem:[#allocation9 + $0x360] sm:$0xff]
    %v538 = vld [vmem:[#allocation9 + $0x368] sm:$0xff]
    %v539 = vld [vmem:[#allocation9 + $0x370] sm:$0xff]
    %v540 = vld [vmem:[#allocation9 + $0x378] sm:$0xff]
    %v541 = vld [vmem:[#allocation9 + $0x380] sm:$0xff]
    %v542 = vld [vmem:[#allocation9 + $0x388] sm:$0xff]
    %v543 = vld [vmem:[#allocation9 + $0x390] sm:$0xff]
    %v544 = vld [vmem:[#allocation9 + $0x398] sm:$0xff]
    %v545 = vld [vmem:[#allocation9 + $0x3a0] sm:$0xff]
    %v546 = vld [vmem:[#allocation9 + $0x3a8] sm:$0xff]
    %v547 = vld [vmem:[#allocation9 + $0x3b0] sm:$0xff]
    %v548 = vld [vmem:[#allocation9 + $0x3b8] sm:$0xff]
    %v549 = vld [vmem:[#allocation9 + $0x3c0] sm:$0xff]
    %v550 = vld [vmem:[#allocation9 + $0x3c8] sm:$0xff]
    %v551 = vld [vmem:[#allocation9 + $0x3d0] sm:$0xff]
    %v552 = vld [vmem:[#allocation9 + $0x3d8] sm:$0xff]
    %v553 = vld [vmem:[#allocation9 + $0x3e0] sm:$0xff]
    %v554 = vld [vmem:[#allocation9 + $0x3e8] sm:$0xff]
    %v555 = vld [vmem:[#allocation9 + $0x3f0] sm:$0xff]
    %v556 = vld [vmem:[#allocation9 + $0x3f8] sm:$0xff]
    %v557 = vld [vmem:[#allocation9 + $0x400] sm:$0xff]
    %v558 = vld [vmem:[#allocation9 + $0x408] sm:$0xff]
    %v559 = vld [vmem:[#allocation9 + $0x410] sm:$0xff]
    %v560 = vld [vmem:[#allocation9 + $0x418] sm:$0xff]
    %v561 = vld [vmem:[#allocation9 + $0x420] sm:$0xff]
    %v562 = vld [vmem:[#allocation9 + $0x428] sm:$0xff]
    %v563 = vld [vmem:[#allocation9 + $0x430] sm:$0xff]
    %v564 = vld [vmem:[#allocation9 + $0x438] sm:$0xff]
    %v565 = vld [vmem:[#allocation9 + $0x440] sm:$0xff]
    %v566 = vld [vmem:[#allocation9 + $0x448] sm:$0xff]
    %v567 = vld [vmem:[#allocation9 + $0x450] sm:$0xff]
    %v568 = vld [vmem:[#allocation9 + $0x458] sm:$0xff]
    %v569 = vld [vmem:[#allocation9 + $0x460] sm:$0xff]
    %v570 = vld [vmem:[#allocation9 + $0x468] sm:$0xff]
    %v571 = vld [vmem:[#allocation9 + $0x470] sm:$0xff]
    %v572 = vld [vmem:[#allocation9 + $0x478] sm:$0xff]
    %v573 = vld [vmem:[#allocation9 + $0x480] sm:$0xff]
    %v574 = vld [vmem:[#allocation9 + $0x488] sm:$0xff]
    %v575 = vld [vmem:[#allocation9 + $0x490] sm:$0xff]
    %v576 = vld [vmem:[#allocation9 + $0x498] sm:$0xff]
    %v577 = vld [vmem:[#allocation9 + $0x4a0] sm:$0xff]
    %v578 = vld [vmem:[#allocation9 + $0x4a8] sm:$0xff]
    %v579 = vld [vmem:[#allocation9 + $0x4b0] sm:$0xff]
    %v580 = vld [vmem:[#allocation9 + $0x4b8] sm:$0xff]
    %v581 = vld [vmem:[#allocation9 + $0x4c0] sm:$0xff]
    %v582 = vld [vmem:[#allocation9 + $0x4c8] sm:$0xff]
    %v583 = vld [vmem:[#allocation9 + $0x4d0] sm:$0xff]
    %v584 = vld [vmem:[#allocation9 + $0x4d8] sm:$0xff]
    %v585 = vld [vmem:[#allocation9 + $0x4e0] sm:$0xff]
    %v586 = vld [vmem:[#allocation9 + $0x4e8] sm:$0xff]
    %v587 = vld [vmem:[#allocation9 + $0x4f0] sm:$0xff]
    %v588 = vld [vmem:[#allocation9 + $0x4f8] sm:$0xff]
    %v589 = vld [vmem:[#allocation9 + $0x500] sm:$0xff]
    %v590 = vld [vmem:[#allocation9 + $0x508] sm:$0xff]
    %v591 = vld [vmem:[#allocation9 + $0x510] sm:$0xff]
    %v592 = vld [vmem:[#allocation9 + $0x518] sm:$0xff]
    %v593 = vld [vmem:[#allocation9 + $0x520] sm:$0xff]
    %v594 = vld [vmem:[#allocation9 + $0x528] sm:$0xff]
    %v595 = vld [vmem:[#allocation9 + $0x530] sm:$0xff]
    %v596 = vld [vmem:[#allocation9 + $0x538] sm:$0xff]
    %v597 = vld [vmem:[#allocation9 + $0x540] sm:$0xff]
    %v598 = vld [vmem:[#allocation9 + $0x548] sm:$0xff]
    %v599 = vld [vmem:[#allocation9 + $0x550] sm:$0xff]
    %v600 = vld [vmem:[#allocation9 + $0x558] sm:$0xff]
    %v601 = vld [vmem:[#allocation9 + $0x560] sm:$0xff]
    %v602 = vld [vmem:[#allocation9 + $0x568] sm:$0xff]
    %v603 = vld [vmem:[#allocation9 + $0x570] sm:$0xff]
    %v604 = vld [vmem:[#allocation9 + $0x578] sm:$0xff]
    %v605 = vld [vmem:[#allocation9 + $0x580] sm:$0xff]
    %v606 = vld [vmem:[#allocation9 + $0x588] sm:$0xff]
    %v607 = vld [vmem:[#allocation9 + $0x590] sm:$0xff]
    %v608 = vld [vmem:[#allocation9 + $0x598] sm:$0xff]
    %v609 = vld [vmem:[#allocation9 + $0x5a0] sm:$0xff]
    %v610 = vld [vmem:[#allocation9 + $0x5a8] sm:$0xff]
    %v611 = vld [vmem:[#allocation9 + $0x5b0] sm:$0xff]
    %v612 = vld [vmem:[#allocation9 + $0x5b8] sm:$0xff]
    %v613 = vld [vmem:[#allocation9 + $0x5c0] sm:$0xff]
    %v614 = vld [vmem:[#allocation9 + $0x5c8] sm:$0xff]
    %v615 = vld [vmem:[#allocation9 + $0x5d0] sm:$0xff]
    %v616 = vld [vmem:[#allocation9 + $0x5d8] sm:$0xff]
    %v617 = vld [vmem:[#allocation9 + $0x5e0] sm:$0xff]
    %v618 = vld [vmem:[#allocation9 + $0x5e8] sm:$0xff]
    %v619 = vld [vmem:[#allocation9 + $0x5f0] sm:$0xff]
    %v620 = vld [vmem:[#allocation9 + $0x5f8] sm:$0xff]
    %v621 = vld [vmem:[#allocation9 + $0x600] sm:$0xff]
    %v622 = vld [vmem:[#allocation9 + $0x608] sm:$0xff]
    %v623 = vld [vmem:[#allocation9 + $0x610] sm:$0xff]
    %v624 = vld [vmem:[#allocation9 + $0x618] sm:$0xff]
    %v625 = vld [vmem:[#allocation9 + $0x620] sm:$0xff]
    %v626 = vld [vmem:[#allocation9 + $0x628] sm:$0xff]
    %v627 = vld [vmem:[#allocation9 + $0x630] sm:$0xff]
    %v628 = vld [vmem:[#allocation9 + $0x638] sm:$0xff]
    %v629 = vld [vmem:[#allocation9 + $0x640] sm:$0xff]
    %v630 = vld [vmem:[#allocation9 + $0x648] sm:$0xff]
    %v631 = vld [vmem:[#allocation9 + $0x650] sm:$0xff]
    %v632 = vld [vmem:[#allocation9 + $0x658] sm:$0xff]
    %v633 = vld [vmem:[#allocation9 + $0x660] sm:$0xff]
    %v634 = vld [vmem:[#allocation9 + $0x668] sm:$0xff]
    %v635 = vld [vmem:[#allocation9 + $0x670] sm:$0xff]
    %v636 = vld [vmem:[#allocation9 + $0x678] sm:$0xff]
    %v637 = vld [vmem:[#allocation9 + $0x680] sm:$0xff]
    %v638 = vld [vmem:[#allocation9 + $0x688] sm:$0xff]
    %v639 = vld [vmem:[#allocation9 + $0x690] sm:$0xff]
    %v640 = vld [vmem:[#allocation9 + $0x698] sm:$0xff]
    %v641 = vld [vmem:[#allocation9 + $0x6a0] sm:$0xff]
    %v642 = vld [vmem:[#allocation9 + $0x6a8] sm:$0xff]
    %v643 = vld [vmem:[#allocation9 + $0x6b0] sm:$0xff]
    %v644 = vld [vmem:[#allocation9 + $0x6b8] sm:$0xff]
    %v645 = vld [vmem:[#allocation9 + $0x6c0] sm:$0xff]
    %v646 = vld [vmem:[#allocation9 + $0x6c8] sm:$0xff]
    %v647 = vld [vmem:[#allocation9 + $0x6d0] sm:$0xff]
    %v648 = vld [vmem:[#allocation9 + $0x6d8] sm:$0xff]
    %v649 = vld [vmem:[#allocation9 + $0x6e0] sm:$0xff]
    %v650 = vld [vmem:[#allocation9 + $0x6e8] sm:$0xff]
    %v651 = vld [vmem:[#allocation9 + $0x6f0] sm:$0xff]
    %v652 = vld [vmem:[#allocation9 + $0x6f8] sm:$0xff]
    %v653 = vld [vmem:[#allocation9 + $0x700] sm:$0xff]
    %v654 = vld [vmem:[#allocation9 + $0x708] sm:$0xff]
    %v655 = vld [vmem:[#allocation9 + $0x710] sm:$0xff]
    %v656 = vld [vmem:[#allocation9 + $0x718] sm:$0xff]
    %v657 = vld [vmem:[#allocation9 + $0x720] sm:$0xff]
    %v658 = vld [vmem:[#allocation9 + $0x728] sm:$0xff]
    %v659 = vld [vmem:[#allocation9 + $0x730] sm:$0xff]
    %v660 = vld [vmem:[#allocation9 + $0x738] sm:$0xff]
    %v661 = vld [vmem:[#allocation9 + $0x740] sm:$0xff]
    %v662 = vld [vmem:[#allocation9 + $0x748] sm:$0xff]
    %v663 = vld [vmem:[#allocation9 + $0x750] sm:$0xff]
    %v664 = vld [vmem:[#allocation9 + $0x758] sm:$0xff]
    %v665 = vld [vmem:[#allocation9 + $0x760] sm:$0xff]
    %v666 = vld [vmem:[#allocation9 + $0x768] sm:$0xff]
    %v667 = vld [vmem:[#allocation9 + $0x770] sm:$0xff]
    %v668 = vld [vmem:[#allocation9 + $0x778] sm:$0xff]
    %v669 = vld [vmem:[#allocation9 + $0x780] sm:$0xff]
    %v670 = vld [vmem:[#allocation9 + $0x788] sm:$0xff]
    %v671 = vld [vmem:[#allocation9 + $0x790] sm:$0xff]
    %v672 = vld [vmem:[#allocation9 + $0x798] sm:$0xff]
    %v673 = vld [vmem:[#allocation9 + $0x7a0] sm:$0xff]
    %v674 = vld [vmem:[#allocation9 + $0x7a8] sm:$0xff]
    %v675 = vld [vmem:[#allocation9 + $0x7b0] sm:$0xff]
    %v676 = vld [vmem:[#allocation9 + $0x7b8] sm:$0xff]
    %v677 = vld [vmem:[#allocation9 + $0x7c0] sm:$0xff]
    %v678 = vld [vmem:[#allocation9 + $0x7c8] sm:$0xff]
    %v679 = vld [vmem:[#allocation9 + $0x7d0] sm:$0xff]
    %v680 = vld [vmem:[#allocation9 + $0x7d8] sm:$0xff]
    %v681 = vld [vmem:[#allocation9 + $0x7e0] sm:$0xff]
    %v682 = vld [vmem:[#allocation9 + $0x7e8] sm:$0xff]
    %v683 = vld [vmem:[#allocation9 + $0x7f0] sm:$0xff]
    %v684 = vld [vmem:[#allocation9 + $0x7f8] sm:$0xff]
    %v685 = vld [vmem:[#allocation9 + $0x800] sm:$0xff]
    %v686 = vld [vmem:[#allocation9 + $0x808] sm:$0xff]
    %v687 = vld [vmem:[#allocation9 + $0x810] sm:$0xff]
    %v688 = vld [vmem:[#allocation9 + $0x818] sm:$0xff]
    %v689 = vld [vmem:[#allocation9 + $0x820] sm:$0xff]
    %v690 = vld [vmem:[#allocation9 + $0x828] sm:$0xff]
    %v691 = vld [vmem:[#allocation9 + $0x830] sm:$0xff]
    %v692 = vld [vmem:[#allocation9 + $0x838] sm:$0xff]
    %v693 = vld [vmem:[#allocation9 + $0x840] sm:$0xff]
    %v694 = vld [vmem:[#allocation9 + $0x848] sm:$0xff]
    %v695 = vld [vmem:[#allocation9 + $0x850] sm:$0xff]
    %v696 = vld [vmem:[#allocation9 + $0x858] sm:$0xff]
    %v697 = vld [vmem:[#allocation9 + $0x860] sm:$0xff]
    %v698 = vld [vmem:[#allocation9 + $0x868] sm:$0xff]
    %v699 = vld [vmem:[#allocation9 + $0x870] sm:$0xff]
    %v700 = vld [vmem:[#allocation9 + $0x878] sm:$0xff]
    %v701 = vld [vmem:[#allocation9 + $0x880] sm:$0xff]
    %v702 = vld [vmem:[#allocation9 + $0x888] sm:$0xff]
    %v703 = vld [vmem:[#allocation9 + $0x890] sm:$0xff]
    %v704 = vld [vmem:[#allocation9 + $0x898] sm:$0xff]
    %v705 = vld [vmem:[#allocation9 + $0x8a0] sm:$0xff]
    %v706 = vld [vmem:[#allocation9 + $0x8a8] sm:$0xff]
    %v707 = vld [vmem:[#allocation9 + $0x8b0] sm:$0xff]
    %v708 = vld [vmem:[#allocation9 + $0x8b8] sm:$0xff]
    %v709 = vld [vmem:[#allocation9 + $0x8c0] sm:$0xff]
    %v710 = vld [vmem:[#allocation9 + $0x8c8] sm:$0xff]
    %v711 = vld [vmem:[#allocation9 + $0x8d0] sm:$0xff]
    %v712 = vld [vmem:[#allocation9 + $0x8d8] sm:$0xff]
    %v713 = vld [vmem:[#allocation9 + $0x8e0] sm:$0xff]
    %v714 = vld [vmem:[#allocation9 + $0x8e8] sm:$0xff]
    %v715 = vld [vmem:[#allocation9 + $0x8f0] sm:$0xff]
    %v716 = vld [vmem:[#allocation9 + $0x8f8] sm:$0xff]
    %v717 = vld [vmem:[#allocation9 + $0x900] sm:$0xff]
    %v718 = vld [vmem:[#allocation9 + $0x908] sm:$0xff]
    %v719 = vld [vmem:[#allocation9 + $0x910] sm:$0xff]
    %v720 = vld [vmem:[#allocation9 + $0x918] sm:$0xff]
    %v721 = vld [vmem:[#allocation9 + $0x920] sm:$0xff]
    %v722 = vld [vmem:[#allocation9 + $0x928] sm:$0xff]
    %v723 = vld [vmem:[#allocation9 + $0x930] sm:$0xff]
    %v724 = vld [vmem:[#allocation9 + $0x938] sm:$0xff]
    %v725 = vld [vmem:[#allocation9 + $0x940] sm:$0xff]
    %v726 = vld [vmem:[#allocation9 + $0x948] sm:$0xff]
    %v727 = vld [vmem:[#allocation9 + $0x950] sm:$0xff]
    %v728 = vld [vmem:[#allocation9 + $0x958] sm:$0xff]
    %v729 = vld [vmem:[#allocation9 + $0x960] sm:$0xff]
    %v730 = vld [vmem:[#allocation9 + $0x968] sm:$0xff]
    %v731 = vld [vmem:[#allocation9 + $0x970] sm:$0xff]
    %v732 = vld [vmem:[#allocation9 + $0x978] sm:$0xff]
    %v733 = vld [vmem:[#allocation9 + $0x980] sm:$0xff]
    %v734 = vld [vmem:[#allocation9 + $0x988] sm:$0xff]
    %v735 = vld [vmem:[#allocation9 + $0x990] sm:$0xff]
    %v736 = vld [vmem:[#allocation9 + $0x998] sm:$0xff]
    %v737 = vld [vmem:[#allocation9 + $0x9a0] sm:$0xff]
    %v738 = vld [vmem:[#allocation9 + $0x9a8] sm:$0xff]
    %v739 = vld [vmem:[#allocation9 + $0x9b0] sm:$0xff]
    %v740 = vld [vmem:[#allocation9 + $0x9b8] sm:$0xff]
    %v741 = vld [vmem:[#allocation9 + $0x9c0] sm:$0xff]
    %v742 = vld [vmem:[#allocation9 + $0x9c8] sm:$0xff]
    %v743 = vld [vmem:[#allocation9 + $0x9d0] sm:$0xff]
    %v744 = vld [vmem:[#allocation9 + $0x9d8] sm:$0xff]
    %v745 = vld [vmem:[#allocation9 + $0x9e0] sm:$0xff]
    %v746 = vld [vmem:[#allocation9 + $0x9e8] sm:$0xff]
    %v747 = vld [vmem:[#allocation9 + $0x9f0] sm:$0xff]
    %v748 = vld [vmem:[#allocation9 + $0x9f8] sm:$0xff]
    %v749 = vld [vmem:[#allocation9 + $0xa00] sm:$0xff]
    %v750 = vld [vmem:[#allocation9 + $0xa08] sm:$0xff]
    %v751 = vld [vmem:[#allocation9 + $0xa10] sm:$0xff]
    %v752 = vld [vmem:[#allocation9 + $0xa18] sm:$0xff]
    %v753 = vld [vmem:[#allocation9 + $0xa20] sm:$0xff]
    %v754 = vld [vmem:[#allocation9 + $0xa28] sm:$0xff]
    %v755 = vld [vmem:[#allocation9 + $0xa30] sm:$0xff]
    %v756 = vld [vmem:[#allocation9 + $0xa38] sm:$0xff]
    %v757 = vld [vmem:[#allocation9 + $0xa40] sm:$0xff]
    %v758 = vld [vmem:[#allocation9 + $0xa48] sm:$0xff]
    %v759 = vld [vmem:[#allocation9 + $0xa50] sm:$0xff]
    %v760 = vld [vmem:[#allocation9 + $0xa58] sm:$0xff]
    %v761 = vld [vmem:[#allocation9 + $0xa60] sm:$0xff]
    %v762 = vld [vmem:[#allocation9 + $0xa68] sm:$0xff]
    %v763 = vld [vmem:[#allocation9 + $0xa70] sm:$0xff]
    %v764 = vld [vmem:[#allocation9 + $0xa78] sm:$0xff]
    %v765 = vld [vmem:[#allocation9 + $0xa80] sm:$0xff]
    %v766 = vld [vmem:[#allocation9 + $0xa88] sm:$0xff]
    %v767 = vld [vmem:[#allocation9 + $0xa90] sm:$0xff]
    %v768 = vld [vmem:[#allocation9 + $0xa98] sm:$0xff]
    %v769 = vld [vmem:[#allocation9 + $0xaa0] sm:$0xff]
    %v770 = vld [vmem:[#allocation9 + $0xaa8] sm:$0xff]
    %v771 = vld [vmem:[#allocation9 + $0xab0] sm:$0xff]
    %v772 = vld [vmem:[#allocation9 + $0xab8] sm:$0xff]
    %v773 = vld [vmem:[#allocation9 + $0xac0] sm:$0xff]
    %v774 = vld [vmem:[#allocation9 + $0xac8] sm:$0xff]
    %v775 = vld [vmem:[#allocation9 + $0xad0] sm:$0xff]
    %v776 = vld [vmem:[#allocation9 + $0xad8] sm:$0xff]
    %v777 = vld [vmem:[#allocation9 + $0xae0] sm:$0xff]
    %v778 = vld [vmem:[#allocation9 + $0xae8] sm:$0xff]
    %v779 = vld [vmem:[#allocation9 + $0xaf0] sm:$0xff]
    %v780 = vld [vmem:[#allocation9 + $0xaf8] sm:$0xff]
    %v781 = vld [vmem:[#allocation9 + $0xb00] sm:$0xff]
    %v782 = vld [vmem:[#allocation9 + $0xb08] sm:$0xff]
    %v783 = vld [vmem:[#allocation9 + $0xb10] sm:$0xff]
    %v784 = vld [vmem:[#allocation9 + $0xb18] sm:$0xff]
    %v785 = vld [vmem:[#allocation9 + $0xb20] sm:$0xff]
    %v786 = vld [vmem:[#allocation9 + $0xb28] sm:$0xff]
    %v787 = vld [vmem:[#allocation9 + $0xb30] sm:$0xff]
    %v788 = vld [vmem:[#allocation9 + $0xb38] sm:$0xff]
    %v789 = vld [vmem:[#allocation9 + $0xb40] sm:$0xff]
    %v790 = vld [vmem:[#allocation9 + $0xb48] sm:$0xff]
    %v791 = vld [vmem:[#allocation9 + $0xb50] sm:$0xff]
    %v792 = vld [vmem:[#allocation9 + $0xb58] sm:$0xff]
    %v793 = vld [vmem:[#allocation9 + $0xb60] sm:$0xff]
    %v794 = vld [vmem:[#allocation9 + $0xb68] sm:$0xff]
    %v795 = vld [vmem:[#allocation9 + $0xb70] sm:$0xff]
    %v796 = vld [vmem:[#allocation9 + $0xb78] sm:$0xff]
    %v797 = vld [vmem:[#allocation9 + $0xb80] sm:$0xff]
    %v798 = vld [vmem:[#allocation9 + $0xb88] sm:$0xff]
    %v799 = vld [vmem:[#allocation9 + $0xb90] sm:$0xff]
    %v800 = vld [vmem:[#allocation9 + $0xb98] sm:$0xff]
    %v801 = vld [vmem:[#allocation9 + $0xba0] sm:$0xff]
    %v802 = vld [vmem:[#allocation9 + $0xba8] sm:$0xff]
    %v803 = vld [vmem:[#allocation9 + $0xbb0] sm:$0xff]
    %v804 = vld [vmem:[#allocation9 + $0xbb8] sm:$0xff]
    %v805 = vld [vmem:[#allocation9 + $0xbc0] sm:$0xff]
    %v806 = vld [vmem:[#allocation9 + $0xbc8] sm:$0xff]
    %v807 = vld [vmem:[#allocation9 + $0xbd0] sm:$0xff]
    %v808 = vld [vmem:[#allocation9 + $0xbd8] sm:$0xff]
    %v809 = vld [vmem:[#allocation9 + $0xbe0] sm:$0xff]
    %v810 = vld [vmem:[#allocation9 + $0xbe8] sm:$0xff]
    %v811 = vld [vmem:[#allocation9 + $0xbf0] sm:$0xff]
    %v812 = vld [vmem:[#allocation9 + $0xbf8] sm:$0xff]
    %v813 = vld [vmem:[#allocation9 + $0xc00] sm:$0xff]
    %v814 = vld [vmem:[#allocation9 + $0xc08] sm:$0xff]
    %v815 = vld [vmem:[#allocation9 + $0xc10] sm:$0xff]
    %v816 = vld [vmem:[#allocation9 + $0xc18] sm:$0xff]
    %v817 = vld [vmem:[#allocation9 + $0xc20] sm:$0xff]
    %v818 = vld [vmem:[#allocation9 + $0xc28] sm:$0xff]
    %v819 = vld [vmem:[#allocation9 + $0xc30] sm:$0xff]
    %v820 = vld [vmem:[#allocation9 + $0xc38] sm:$0xff]
    %v821 = vld [vmem:[#allocation9 + $0xc40] sm:$0xff]
    %v822 = vld [vmem:[#allocation9 + $0xc48] sm:$0xff]
    %v823 = vld [vmem:[#allocation9 + $0xc50] sm:$0xff]
    %v824 = vld [vmem:[#allocation9 + $0xc58] sm:$0xff]
    %v825 = vld [vmem:[#allocation9 + $0xc60] sm:$0xff]
    %v826 = vld [vmem:[#allocation9 + $0xc68] sm:$0xff]
    %v827 = vld [vmem:[#allocation9 + $0xc70] sm:$0xff]
    %v828 = vld [vmem:[#allocation9 + $0xc78] sm:$0xff]
    %v829 = vld [vmem:[#allocation9 + $0xc80] sm:$0xff]
    %v830 = vld [vmem:[#allocation9 + $0xc88] sm:$0xff]
    %v831 = vld [vmem:[#allocation9 + $0xc90] sm:$0xff]
    %v832 = vld [vmem:[#allocation9 + $0xc98] sm:$0xff]
    %v833 = vld [vmem:[#allocation9 + $0xca0] sm:$0xff]
    %v834 = vld [vmem:[#allocation9 + $0xca8] sm:$0xff]
    %v835 = vld [vmem:[#allocation9 + $0xcb0] sm:$0xff]
    %v836 = vld [vmem:[#allocation9 + $0xcb8] sm:$0xff]
    %v837 = vld [vmem:[#allocation9 + $0xcc0] sm:$0xff]
    %v838 = vld [vmem:[#allocation9 + $0xcc8] sm:$0xff]
    %v839 = vld [vmem:[#allocation9 + $0xcd0] sm:$0xff]
    %v840 = vld [vmem:[#allocation9 + $0xcd8] sm:$0xff]
    %v841 = vld [vmem:[#allocation9 + $0xce0] sm:$0xff]
    %v842 = vld [vmem:[#allocation9 + $0xce8] sm:$0xff]
    %v843 = vld [vmem:[#allocation9 + $0xcf0] sm:$0xff]
    %v844 = vld [vmem:[#allocation9 + $0xcf8] sm:$0xff]
    %v845 = vld [vmem:[#allocation9 + $0xd00] sm:$0xff]
    %v846 = vld [vmem:[#allocation9 + $0xd08] sm:$0xff]
    %v847 = vld [vmem:[#allocation9 + $0xd10] sm:$0xff]
    %v848 = vld [vmem:[#allocation9 + $0xd18] sm:$0xff]
    %v849 = vld [vmem:[#allocation9 + $0xd20] sm:$0xff]
    %v850 = vld [vmem:[#allocation9 + $0xd28] sm:$0xff]
    %v851 = vld [vmem:[#allocation9 + $0xd30] sm:$0xff]
    %v852 = vld [vmem:[#allocation9 + $0xd38] sm:$0xff]
    %v853 = vld [vmem:[#allocation9 + $0xd40] sm:$0xff]
    %v854 = vld [vmem:[#allocation9 + $0xd48] sm:$0xff]
    %v855 = vld [vmem:[#allocation9 + $0xd50] sm:$0xff]
    %v856 = vld [vmem:[#allocation9 + $0xd58] sm:$0xff]
    %v857 = vld [vmem:[#allocation9 + $0xd60] sm:$0xff]
    %v858 = vld [vmem:[#allocation9 + $0xd68] sm:$0xff]
    %v859 = vld [vmem:[#allocation9 + $0xd70] sm:$0xff]
    %v860 = vld [vmem:[#allocation9 + $0xd78] sm:$0xff]
    %v861 = vld [vmem:[#allocation9 + $0xd80] sm:$0xff]
    %v862 = vld [vmem:[#allocation9 + $0xd88] sm:$0xff]
    %v863 = vld [vmem:[#allocation9 + $0xd90] sm:$0xff]
    %v864 = vld [vmem:[#allocation9 + $0xd98] sm:$0xff]
    %v865 = vld [vmem:[#allocation9 + $0xda0] sm:$0xff]
    %v866 = vld [vmem:[#allocation9 + $0xda8] sm:$0xff]
    %v867 = vld [vmem:[#allocation9 + $0xdb0] sm:$0xff]
    %v868 = vld [vmem:[#allocation9 + $0xdb8] sm:$0xff]
    %v869 = vld [vmem:[#allocation9 + $0xdc0] sm:$0xff]
    %v870 = vld [vmem:[#allocation9 + $0xdc8] sm:$0xff]
    %v871 = vld [vmem:[#allocation9 + $0xdd0] sm:$0xff]
    %v872 = vld [vmem:[#allocation9 + $0xdd8] sm:$0xff]
    %v873 = vld [vmem:[#allocation9 + $0xde0] sm:$0xff]
    %v874 = vld [vmem:[#allocation9 + $0xde8] sm:$0xff]
    %v875 = vld [vmem:[#allocation9 + $0xdf0] sm:$0xff]
    %v876 = vld [vmem:[#allocation9 + $0xdf8] sm:$0xff]
    %v877 = vld [vmem:[#allocation9 + $0xe00] sm:$0xff]
    %v878 = vld [vmem:[#allocation9 + $0xe08] sm:$0xff]
    %v879 = vld [vmem:[#allocation9 + $0xe10] sm:$0xff]
    %v880 = vld [vmem:[#allocation9 + $0xe18] sm:$0xff]
    %v881 = vld [vmem:[#allocation9 + $0xe20] sm:$0xff]
    %v882 = vld [vmem:[#allocation9 + $0xe28] sm:$0xff]
    %v883 = vld [vmem:[#allocation9 + $0xe30] sm:$0xff]
    %v884 = vld [vmem:[#allocation9 + $0xe38] sm:$0xff]
    %v885 = vld [vmem:[#allocation9 + $0xe40] sm:$0xff]
    %v886 = vld [vmem:[#allocation9 + $0xe48] sm:$0xff]
    %v887 = vld [vmem:[#allocation9 + $0xe50] sm:$0xff]
    %v888 = vld [vmem:[#allocation9 + $0xe58] sm:$0xff]
    %v889 = vld [vmem:[#allocation9 + $0xe60] sm:$0xff]
    %v890 = vld [vmem:[#allocation9 + $0xe68] sm:$0xff]
    %v891 = vld [vmem:[#allocation9 + $0xe70] sm:$0xff]
    %v892 = vld [vmem:[#allocation9 + $0xe78] sm:$0xff]
    %v893 = vld [vmem:[#allocation9 + $0xe80] sm:$0xff]
    %v894 = vld [vmem:[#allocation9 + $0xe88] sm:$0xff]
    %v895 = vld [vmem:[#allocation9 + $0xe90] sm:$0xff]
    %v896 = vld [vmem:[#allocation9 + $0xe98] sm:$0xff]
    %v897 = vld [vmem:[#allocation9 + $0xea0] sm:$0xff]
    %v898 = vld [vmem:[#allocation9 + $0xea8] sm:$0xff]
    %v899 = vld [vmem:[#allocation9 + $0xeb0] sm:$0xff]
    %v900 = vld [vmem:[#allocation9 + $0xeb8] sm:$0xff]
    %v901 = vld [vmem:[#allocation9 + $0xec0] sm:$0xff]
    %v902 = vld [vmem:[#allocation9 + $0xec8] sm:$0xff]
    %v903 = vld [vmem:[#allocation9 + $0xed0] sm:$0xff]
    %v904 = vld [vmem:[#allocation9 + $0xed8] sm:$0xff]
    %v905 = vld [vmem:[#allocation9 + $0xee0] sm:$0xff]
    %v906 = vld [vmem:[#allocation9 + $0xee8] sm:$0xff]
    %v907 = vld [vmem:[#allocation9 + $0xef0] sm:$0xff]
    %v908 = vld [vmem:[#allocation9 + $0xef8] sm:$0xff]
    %v909 = vld [vmem:[#allocation9 + $0xf00] sm:$0xff]
    %v910 = vld [vmem:[#allocation9 + $0xf08] sm:$0xff]
    %v911 = vld [vmem:[#allocation9 + $0xf10] sm:$0xff]
    %v912 = vld [vmem:[#allocation9 + $0xf18] sm:$0xff]
    %v913 = vld [vmem:[#allocation9 + $0xf20] sm:$0xff]
    %v914 = vld [vmem:[#allocation9 + $0xf28] sm:$0xff]
    %v915 = vld [vmem:[#allocation9 + $0xf30] sm:$0xff]
    %v916 = vld [vmem:[#allocation9 + $0xf38] sm:$0xff]
    %v917 = vld [vmem:[#allocation9 + $0xf40] sm:$0xff]
    %v918 = vld [vmem:[#allocation9 + $0xf48] sm:$0xff]
    %v919 = vld [vmem:[#allocation9 + $0xf50] sm:$0xff]
    %v920 = vld [vmem:[#allocation9 + $0xf58] sm:$0xff]
    %v921 = vld [vmem:[#allocation9 + $0xf60] sm:$0xff]
    %v922 = vld [vmem:[#allocation9 + $0xf68] sm:$0xff]
    %v923 = vld [vmem:[#allocation9 + $0xf70] sm:$0xff]
    %v924 = vld [vmem:[#allocation9 + $0xf78] sm:$0xff]
    %v925 = vld [vmem:[#allocation9 + $0xf80] sm:$0xff]
    %v926 = vld [vmem:[#allocation9 + $0xf88] sm:$0xff]
    %v927 = vld [vmem:[#allocation9 + $0xf90] sm:$0xff]
    %v928 = vld [vmem:[#allocation9 + $0xf98] sm:$0xff]
    %v929 = vld [vmem:[#allocation9 + $0xfa0] sm:$0xff]
    %v930 = vld [vmem:[#allocation9 + $0xfa8] sm:$0xff]
    %v931 = vld [vmem:[#allocation9 + $0xfb0] sm:$0xff]
    %v932 = vld [vmem:[#allocation9 + $0xfb8] sm:$0xff]
    %v933 = vld [vmem:[#allocation9 + $0xfc0] sm:$0xff]
    %v934 = vld [vmem:[#allocation9 + $0xfc8] sm:$0xff]
    %v935 = vld [vmem:[#allocation9 + $0xfd0] sm:$0xff]
    %v936 = vld [vmem:[#allocation9 + $0xfd8] sm:$0xff]
    %v937 = vld [vmem:[#allocation9 + $0xfe0] sm:$0xff]
    %v938 = vld [vmem:[#allocation9 + $0xfe8] sm:$0xff]
    %v939 = vld [vmem:[#allocation9 + $0xff0] sm:$0xff]
    %v940 = vld [vmem:[#allocation9 + $0xff8] sm:$0xff]
    %v941 = vld [vmem:[#allocation9 + $0x1000] sm:$0xff]
    %v942 = vld [vmem:[#allocation9 + $0x1008] sm:$0xff]
    %v943 = vld [vmem:[#allocation9 + $0x1010] sm:$0xff]
    %v944 = vld [vmem:[#allocation9 + $0x1018] sm:$0xff]
    %v945 = vld [vmem:[#allocation9 + $0x1020] sm:$0xff]
    %v946 = vld [vmem:[#allocation9 + $0x1028] sm:$0xff]
    %v947 = vld [vmem:[#allocation9 + $0x1030] sm:$0xff]
    %v948 = vld [vmem:[#allocation9 + $0x1038] sm:$0xff]
    %v949 = vld [vmem:[#allocation9 + $0x1040] sm:$0xff]
    %v950 = vld [vmem:[#allocation9 + $0x1048] sm:$0xff]
    %v951 = vld [vmem:[#allocation9 + $0x1050] sm:$0xff]
    %v952 = vld [vmem:[#allocation9 + $0x1058] sm:$0xff]
    %v953 = vld [vmem:[#allocation9 + $0x1060] sm:$0xff]
    %v954 = vld [vmem:[#allocation9 + $0x1068] sm:$0xff]
    %v955 = vld [vmem:[#allocation9 + $0x1070] sm:$0xff]
    %v956 = vld [vmem:[#allocation9 + $0x1078] sm:$0xff]
    %v957 = vld [vmem:[#allocation9 + $0x1080] sm:$0xff]
    %v958 = vld [vmem:[#allocation9 + $0x1088] sm:$0xff]
    %v959 = vld [vmem:[#allocation9 + $0x1090] sm:$0xff]
    %v960 = vld [vmem:[#allocation9 + $0x1098] sm:$0xff]
    %v961 = vld [vmem:[#allocation9 + $0x10a0] sm:$0xff]
    %v962 = vld [vmem:[#allocation9 + $0x10a8] sm:$0xff]
    %v963 = vld [vmem:[#allocation9 + $0x10b0] sm:$0xff]
    %v964 = vld [vmem:[#allocation9 + $0x10b8] sm:$0xff]
    %v965 = vld [vmem:[#allocation9 + $0x10c0] sm:$0xff]
    %v966 = vld [vmem:[#allocation9 + $0x10c8] sm:$0xff]
    %v967 = vld [vmem:[#allocation9 + $0x10d0] sm:$0xff]
    %v968 = vld [vmem:[#allocation9 + $0x10d8] sm:$0xff]
    %v969 = vld [vmem:[#allocation9 + $0x10e0] sm:$0xff]
    %v970 = vld [vmem:[#allocation9 + $0x10e8] sm:$0xff]
    %v971 = vld [vmem:[#allocation9 + $0x10f0] sm:$0xff]
    %v972 = vld [vmem:[#allocation9 + $0x10f8] sm:$0xff]
    %v973 = vld [vmem:[#allocation9 + $0x1100] sm:$0xff]
    %v974 = vld [vmem:[#allocation9 + $0x1108] sm:$0xff]
    %v975 = vld [vmem:[#allocation9 + $0x1110] sm:$0xff]
    %v976 = vld [vmem:[#allocation9 + $0x1118] sm:$0xff]
    %v977 = vld [vmem:[#allocation9 + $0x1120] sm:$0xff]
    %v978 = vld [vmem:[#allocation9 + $0x1128] sm:$0xff]
    %v979 = vld [vmem:[#allocation9 + $0x1130] sm:$0xff]
    %v980 = vld [vmem:[#allocation9 + $0x1138] sm:$0xff]
    %v981 = vld [vmem:[#allocation9 + $0x1140] sm:$0xff]
    %v982 = vld [vmem:[#allocation9 + $0x1148] sm:$0xff]
    %v983 = vld [vmem:[#allocation9 + $0x1150] sm:$0xff]
    %v984 = vld [vmem:[#allocation9 + $0x1158] sm:$0xff]
    %v985 = vld [vmem:[#allocation9 + $0x1160] sm:$0xff]
    %v986 = vld [vmem:[#allocation9 + $0x1168] sm:$0xff]
    %v987 = vld [vmem:[#allocation9 + $0x1170] sm:$0xff]
    %v988 = vld [vmem:[#allocation9 + $0x1178] sm:$0xff]
    %v989 = vld [vmem:[#allocation9 + $0x1180] sm:$0xff]
    %v990 = vld [vmem:[#allocation9 + $0x1188] sm:$0xff]
    %v991 = vld [vmem:[#allocation9 + $0x1190] sm:$0xff]
    %v992 = vld [vmem:[#allocation9 + $0x1198] sm:$0xff]
    %v993 = vld [vmem:[#allocation9 + $0x11a0] sm:$0xff]
    %v994 = vld [vmem:[#allocation9 + $0x11a8] sm:$0xff]
    %v995 = vld [vmem:[#allocation9 + $0x11b0] sm:$0xff]
    %v996 = vld [vmem:[#allocation9 + $0x11b8] sm:$0xff]
    %v997 = vld [vmem:[#allocation9 + $0x11c0] sm:$0xff]
    %v998 = vld [vmem:[#allocation9 + $0x11c8] sm:$0xff]
    %v999 = vld [vmem:[#allocation9 + $0x11d0] sm:$0xff]
    %v1000 = vld [vmem:[#allocation9 + $0x11d8] sm:$0xff]
    %v1001 = vld [vmem:[#allocation9 + $0x11e0] sm:$0xff]
    %v1002 = vld [vmem:[#allocation9 + $0x11e8] sm:$0xff]
    %v1003 = vld [vmem:[#allocation9 + $0x11f0] sm:$0xff]
    %v1004 = vld [vmem:[#allocation9 + $0x11f8] sm:$0xff]
    %v1005 = vld [vmem:[#allocation9 + $0x1200] sm:$0xff]
    %v1006 = vld [vmem:[#allocation9 + $0x1208] sm:$0xff]
    %v1007 = vld [vmem:[#allocation9 + $0x1210] sm:$0xff]
    %v1008 = vld [vmem:[#allocation9 + $0x1218] sm:$0xff]
    %v1009 = vld [vmem:[#allocation9 + $0x1220] sm:$0xff]
    %v1010 = vld [vmem:[#allocation9 + $0x1228] sm:$0xff]
    %v1011 = vld [vmem:[#allocation9 + $0x1230] sm:$0xff]
    %v1012 = vld [vmem:[#allocation9 + $0x1238] sm:$0xff]
    %v1013 = vld [vmem:[#allocation9 + $0x1240] sm:$0xff]
    %v1014 = vld [vmem:[#allocation9 + $0x1248] sm:$0xff]
    %v1015 = vld [vmem:[#allocation9 + $0x1250] sm:$0xff]
    %v1016 = vld [vmem:[#allocation9 + $0x1258] sm:$0xff]
    %v1017 = vld [vmem:[#allocation9 + $0x1260] sm:$0xff]
    %v1018 = vld [vmem:[#allocation9 + $0x1268] sm:$0xff]
    %v1019 = vld [vmem:[#allocation9 + $0x1270] sm:$0xff]
    %v1020 = vld [vmem:[#allocation9 + $0x1278] sm:$0xff]
    %v1021 = vld [vmem:[#allocation9 + $0x1280] sm:$0xff]
    %v1022 = vld [vmem:[#allocation9 + $0x1288] sm:$0xff]
    %v1023 = vld [vmem:[#allocation9 + $0x1290] sm:$0xff]
    %v1024 = vld [vmem:[#allocation9 + $0x1298] sm:$0xff]
    %v1025 = vld [vmem:[#allocation9 + $0x12a0] sm:$0xff]
    %v1026 = vld [vmem:[#allocation9 + $0x12a8] sm:$0xff]
    %v1027 = vld [vmem:[#allocation9 + $0x12b0] sm:$0xff]
    %v1028 = vld [vmem:[#allocation9 + $0x12b8] sm:$0xff]
    %v1029 = vld [vmem:[#allocation9 + $0x12c0] sm:$0xff]
    %v1030 = vld [vmem:[#allocation9 + $0x12c8] sm:$0xff]
    %v1031 = vld [vmem:[#allocation9 + $0x12d0] sm:$0xff]
    %v1032 = vld [vmem:[#allocation9 + $0x12d8] sm:$0xff]
    %v1033 = vld [vmem:[#allocation9 + $0x12e0] sm:$0xff]
    %v1034 = vld [vmem:[#allocation9 + $0x12e8] sm:$0xff]
    %v1035 = vld [vmem:[#allocation9 + $0x12f0] sm:$0xff]
    %v1036 = vld [vmem:[#allocation9 + $0x12f8] sm:$0xff]
    %v1037 = vld [vmem:[#allocation9 + $0x1300] sm:$0xff]
    %v1038 = vld [vmem:[#allocation9 + $0x1308] sm:$0xff]
    %v1039 = vld [vmem:[#allocation9 + $0x1310] sm:$0xff]
    %v1040 = vld [vmem:[#allocation9 + $0x1318] sm:$0xff]
    %v1041 = vld [vmem:[#allocation9 + $0x1320] sm:$0xff]
    %v1042 = vld [vmem:[#allocation9 + $0x1328] sm:$0xff]
    %v1043 = vld [vmem:[#allocation9 + $0x1330] sm:$0xff]
    %v1044 = vld [vmem:[#allocation9 + $0x1338] sm:$0xff]
    %v1045 = vld [vmem:[#allocation9 + $0x1340] sm:$0xff]
    %v1046 = vld [vmem:[#allocation9 + $0x1348] sm:$0xff]
    %v1047 = vld [vmem:[#allocation9 + $0x1350] sm:$0xff]
    %v1048 = vld [vmem:[#allocation9 + $0x1358] sm:$0xff]
    %v1049 = vld [vmem:[#allocation9 + $0x1360] sm:$0xff]
    %v1050 = vld [vmem:[#allocation9 + $0x1368] sm:$0xff]
    %v1051 = vld [vmem:[#allocation9 + $0x1370] sm:$0xff]
    %v1052 = vld [vmem:[#allocation9 + $0x1378] sm:$0xff]
    %v1053 = vld [vmem:[#allocation9 + $0x1380] sm:$0xff]
    %v1054 = vld [vmem:[#allocation9 + $0x1388] sm:$0xff]
    %v1055 = vld [vmem:[#allocation9 + $0x1390] sm:$0xff]
    %v1056 = vld [vmem:[#allocation9 + $0x1398] sm:$0xff]
    %v1057 = vld [vmem:[#allocation9 + $0x13a0] sm:$0xff]
    %v1058 = vld [vmem:[#allocation9 + $0x13a8] sm:$0xff]
    %v1059 = vld [vmem:[#allocation9 + $0x13b0] sm:$0xff]
    %v1060 = vld [vmem:[#allocation9 + $0x13b8] sm:$0xff]
    %v1061 = vld [vmem:[#allocation9 + $0x13c0] sm:$0xff]
    %v1062 = vld [vmem:[#allocation9 + $0x13c8] sm:$0xff]
    %v1063 = vld [vmem:[#allocation9 + $0x13d0] sm:$0xff]
    %v1064 = vld [vmem:[#allocation9 + $0x13d8] sm:$0xff]
    %v1065 = vld [vmem:[#allocation9 + $0x13e0] sm:$0xff]
    %v1066 = vld [vmem:[#allocation9 + $0x13e8] sm:$0xff]
    %v1067 = vld [vmem:[#allocation9 + $0x13f0] sm:$0xff]
    %v1068 = vld [vmem:[#allocation9 + $0x13f8] sm:$0xff]
    %v1069 = vld [vmem:[#allocation9 + $0x1400] sm:$0xff]
    %v1070 = vld [vmem:[#allocation9 + $0x1408] sm:$0xff]
    %v1071 = vld [vmem:[#allocation9 + $0x1410] sm:$0xff]
    %v1072 = vld [vmem:[#allocation9 + $0x1418] sm:$0xff]
    %v1073 = vld [vmem:[#allocation9 + $0x1420] sm:$0xff]
    %v1074 = vld [vmem:[#allocation9 + $0x1428] sm:$0xff]
    %v1075 = vld [vmem:[#allocation9 + $0x1430] sm:$0xff]
    %v1076 = vld [vmem:[#allocation9 + $0x1438] sm:$0xff]
    %v1077 = vld [vmem:[#allocation9 + $0x1440] sm:$0xff]
    %v1078 = vld [vmem:[#allocation9 + $0x1448] sm:$0xff]
    %v1079 = vld [vmem:[#allocation9 + $0x1450] sm:$0xff]
    %v1080 = vld [vmem:[#allocation9 + $0x1458] sm:$0xff]
    %v1081 = vld [vmem:[#allocation9 + $0x1460] sm:$0xff]
    %v1082 = vld [vmem:[#allocation9 + $0x1468] sm:$0xff]
    %v1083 = vld [vmem:[#allocation9 + $0x1470] sm:$0xff]
    %v1084 = vld [vmem:[#allocation9 + $0x1478] sm:$0xff]
    %v1085 = vld [vmem:[#allocation9 + $0x1480] sm:$0xff]
    %v1086 = vld [vmem:[#allocation9 + $0x1488] sm:$0xff]
    %v1087 = vld [vmem:[#allocation9 + $0x1490] sm:$0xff]
    %v1088 = vld [vmem:[#allocation9 + $0x1498] sm:$0xff]
    %v1089 = vld [vmem:[#allocation9 + $0x14a0] sm:$0xff]
    %v1090 = vld [vmem:[#allocation9 + $0x14a8] sm:$0xff]
    %v1091 = vld [vmem:[#allocation9 + $0x14b0] sm:$0xff]
    %v1092 = vld [vmem:[#allocation9 + $0x14b8] sm:$0xff]
    %v1093 = vld [vmem:[#allocation9 + $0x14c0] sm:$0xff]
    %v1094 = vld [vmem:[#allocation9 + $0x14c8] sm:$0xff]
    %v1095 = vld [vmem:[#allocation9 + $0x14d0] sm:$0xff]
    %v1096 = vld [vmem:[#allocation9 + $0x14d8] sm:$0xff]
    %v1097 = vld [vmem:[#allocation9 + $0x14e0] sm:$0xff]
    %v1098 = vld [vmem:[#allocation9 + $0x14e8] sm:$0xff]
    %v1099 = vld [vmem:[#allocation9 + $0x14f0] sm:$0xff]
    %v1100 = vld [vmem:[#allocation9 + $0x14f8] sm:$0xff]
    %v1101 = vld [vmem:[#allocation9 + $0x1500] sm:$0xff]
    %v1102 = vld [vmem:[#allocation9 + $0x1508] sm:$0xff]
    %v1103 = vld [vmem:[#allocation9 + $0x1510] sm:$0xff]
    %v1104 = vld [vmem:[#allocation9 + $0x1518] sm:$0xff]
    %v1105 = vld [vmem:[#allocation9 + $0x1520] sm:$0xff]
    %v1106 = vld [vmem:[#allocation9 + $0x1528] sm:$0xff]
    %v1107 = vld [vmem:[#allocation9 + $0x1530] sm:$0xff]
    %v1108 = vld [vmem:[#allocation9 + $0x1538] sm:$0xff]
    %v1109 = vld [vmem:[#allocation9 + $0x1540] sm:$0xff]
    %v1110 = vld [vmem:[#allocation9 + $0x1548] sm:$0xff]
    %v1111 = vld [vmem:[#allocation9 + $0x1550] sm:$0xff]
    %v1112 = vld [vmem:[#allocation9 + $0x1558] sm:$0xff]
    %v1113 = vld [vmem:[#allocation9 + $0x1560] sm:$0xff]
    %v1114 = vld [vmem:[#allocation9 + $0x1568] sm:$0xff]
    %v1115 = vld [vmem:[#allocation9 + $0x1570] sm:$0xff]
    %v1116 = vld [vmem:[#allocation9 + $0x1578] sm:$0xff]
    %v1117 = vld [vmem:[#allocation9 + $0x1580] sm:$0xff]
    %v1118 = vld [vmem:[#allocation9 + $0x1588] sm:$0xff]
    %v1119 = vld [vmem:[#allocation9 + $0x1590] sm:$0xff]
    %v1120 = vld [vmem:[#allocation9 + $0x1598] sm:$0xff]
    %v1121 = vld [vmem:[#allocation9 + $0x15a0] sm:$0xff]
    %v1122 = vld [vmem:[#allocation9 + $0x15a8] sm:$0xff]
    %v1123 = vld [vmem:[#allocation9 + $0x15b0] sm:$0xff]
    %v1124 = vld [vmem:[#allocation9 + $0x15b8] sm:$0xff]
    %v1125 = vld [vmem:[#allocation9 + $0x15c0] sm:$0xff]
    %v1126 = vld [vmem:[#allocation9 + $0x15c8] sm:$0xff]
    %v1127 = vld [vmem:[#allocation9 + $0x15d0] sm:$0xff]
    %v1128 = vld [vmem:[#allocation9 + $0x15d8] sm:$0xff]
    %v1129 = vld [vmem:[#allocation9 + $0x15e0] sm:$0xff]
    %v1130 = vld [vmem:[#allocation9 + $0x15e8] sm:$0xff]
    %v1131 = vld [vmem:[#allocation9 + $0x15f0] sm:$0xff]
    %v1132 = vld [vmem:[#allocation9 + $0x15f8] sm:$0xff]
    %v1133 = vld [vmem:[#allocation9 + $0x1600] sm:$0xff]
    %v1134 = vld [vmem:[#allocation9 + $0x1608] sm:$0xff]
    %v1135 = vld [vmem:[#allocation9 + $0x1610] sm:$0xff]
    %v1136 = vld [vmem:[#allocation9 + $0x1618] sm:$0xff]
    %v1137 = vld [vmem:[#allocation9 + $0x1620] sm:$0xff]
    %v1138 = vld [vmem:[#allocation9 + $0x1628] sm:$0xff]
    %v1139 = vld [vmem:[#allocation9 + $0x1630] sm:$0xff]
    %v1140 = vld [vmem:[#allocation9 + $0x1638] sm:$0xff]
    %v1141 = vld [vmem:[#allocation9 + $0x1640] sm:$0xff]
    %v1142 = vld [vmem:[#allocation9 + $0x1648] sm:$0xff]
    %v1143 = vld [vmem:[#allocation9 + $0x1650] sm:$0xff]
    %v1144 = vld [vmem:[#allocation9 + $0x1658] sm:$0xff]
    %v1145 = vld [vmem:[#allocation9 + $0x1660] sm:$0xff]
    %v1146 = vld [vmem:[#allocation9 + $0x1668] sm:$0xff]
    %v1147 = vld [vmem:[#allocation9 + $0x1670] sm:$0xff]
    %v1148 = vld [vmem:[#allocation9 + $0x1678] sm:$0xff]
    %v1149 = vld [vmem:[#allocation9 + $0x1680] sm:$0xff]
    %v1150 = vld [vmem:[#allocation9 + $0x1688] sm:$0xff]
    %v1151 = vld [vmem:[#allocation9 + $0x1690] sm:$0xff]
    %v1152 = vld [vmem:[#allocation9 + $0x1698] sm:$0xff]
    %v1153 = vld [vmem:[#allocation9 + $0x16a0] sm:$0xff]
    %v1154 = vld [vmem:[#allocation9 + $0x16a8] sm:$0xff]
    %v1155 = vld [vmem:[#allocation9 + $0x16b0] sm:$0xff]
    %v1156 = vld [vmem:[#allocation9 + $0x16b8] sm:$0xff]
    %v1157 = vld [vmem:[#allocation9 + $0x16c0] sm:$0xff]
    %v1158 = vld [vmem:[#allocation9 + $0x16c8] sm:$0xff]
    %v1159 = vld [vmem:[#allocation9 + $0x16d0] sm:$0xff]
    %v1160 = vld [vmem:[#allocation9 + $0x16d8] sm:$0xff]
    %v1161 = vld [vmem:[#allocation9 + $0x16e0] sm:$0xff]
    %v1162 = vld [vmem:[#allocation9 + $0x16e8] sm:$0xff]
    %v1163 = vld [vmem:[#allocation9 + $0x16f0] sm:$0xff]
    %v1164 = vld [vmem:[#allocation9 + $0x16f8] sm:$0xff]
    %v1165 = vld [vmem:[#allocation9 + $0x1700] sm:$0xff]
    %v1166 = vld [vmem:[#allocation9 + $0x1708] sm:$0xff]
    %v1167 = vld [vmem:[#allocation9 + $0x1710] sm:$0xff]
    %v1168 = vld [vmem:[#allocation9 + $0x1718] sm:$0xff]
    %v1169 = vld [vmem:[#allocation9 + $0x1720] sm:$0xff]
    %v1170 = vld [vmem:[#allocation9 + $0x1728] sm:$0xff]
    %v1171 = vld [vmem:[#allocation9 + $0x1730] sm:$0xff]
    %v1172 = vld [vmem:[#allocation9 + $0x1738] sm:$0xff]
    %v1173 = vld [vmem:[#allocation9 + $0x1740] sm:$0xff]
    %v1174 = vld [vmem:[#allocation9 + $0x1748] sm:$0xff]
    %v1175 = vld [vmem:[#allocation9 + $0x1750] sm:$0xff]
    %v1176 = vld [vmem:[#allocation9 + $0x1758] sm:$0xff]
    %v1177 = vld [vmem:[#allocation9 + $0x1760] sm:$0xff]
    %v1178 = vld [vmem:[#allocation9 + $0x1768] sm:$0xff]
    %v1179 = vld [vmem:[#allocation9 + $0x1770] sm:$0xff]
    %v1180 = vld [vmem:[#allocation9 + $0x1778] sm:$0xff]
    %v1181 = vld [vmem:[#allocation9 + $0x1780] sm:$0xff]
    %v1182 = vld [vmem:[#allocation9 + $0x1788] sm:$0xff]
    %v1183 = vld [vmem:[#allocation9 + $0x1790] sm:$0xff]
    %v1184 = vld [vmem:[#allocation9 + $0x1798] sm:$0xff]
    %v1185 = vld [vmem:[#allocation9 + $0x17a0] sm:$0xff]
    %v1186 = vld [vmem:[#allocation9 + $0x17a8] sm:$0xff]
    %v1187 = vld [vmem:[#allocation9 + $0x17b0] sm:$0xff]
    %v1188 = vld [vmem:[#allocation9 + $0x17b8] sm:$0xff]
    %v1189 = vld [vmem:[#allocation9 + $0x17c0] sm:$0xff]
    %v1190 = vld [vmem:[#allocation9 + $0x17c8] sm:$0xff]
    %v1191 = vld [vmem:[#allocation9 + $0x17d0] sm:$0xff]
    %v1192 = vld [vmem:[#allocation9 + $0x17d8] sm:$0xff]
    %v1193 = vld [vmem:[#allocation9 + $0x17e0] sm:$0xff]
    %v1194 = vld [vmem:[#allocation9 + $0x17e8] sm:$0xff]
    %v1195 = vld [vmem:[#allocation9 + $0x17f0] sm:$0xff]
    %v1196 = vld [vmem:[#allocation9 + $0x17f8] sm:$0xff]
    %v1197 = vld [vmem:[#allocation9 + $0x1800] sm:$0xff]
    %v1198 = vld [vmem:[#allocation9 + $0x1808] sm:$0xff]
    %v1199 = vld [vmem:[#allocation9 + $0x1810] sm:$0xff]
    %v1200 = vld [vmem:[#allocation9 + $0x1818] sm:$0xff]
    %v1201 = vld [vmem:[#allocation9 + $0x1820] sm:$0xff]
    %v1202 = vld [vmem:[#allocation9 + $0x1828] sm:$0xff]
    %v1203 = vld [vmem:[#allocation9 + $0x1830] sm:$0xff]
    %v1204 = vld [vmem:[#allocation9 + $0x1838] sm:$0xff]
    %v1205 = vld [vmem:[#allocation9 + $0x1840] sm:$0xff]
    %v1206 = vld [vmem:[#allocation9 + $0x1848] sm:$0xff]
    %v1207 = vld [vmem:[#allocation9 + $0x1850] sm:$0xff]
    %v1208 = vld [vmem:[#allocation9 + $0x1858] sm:$0xff]
    %v1209 = vld [vmem:[#allocation9 + $0x1860] sm:$0xff]
    %v1210 = vld [vmem:[#allocation9 + $0x1868] sm:$0xff]
    %v1211 = vld [vmem:[#allocation9 + $0x1870] sm:$0xff]
    %v1212 = vld [vmem:[#allocation9 + $0x1878] sm:$0xff]
    %v1213 = vld [vmem:[#allocation9 + $0x1880] sm:$0xff]
    %v1214 = vld [vmem:[#allocation9 + $0x1888] sm:$0xff]
    %v1215 = vld [vmem:[#allocation9 + $0x1890] sm:$0xff]
    %v1216 = vld [vmem:[#allocation9 + $0x1898] sm:$0xff]
    %v1217 = vld [vmem:[#allocation9 + $0x18a0] sm:$0xff]
    %v1218 = vld [vmem:[#allocation9 + $0x18a8] sm:$0xff]
    %v1219 = vld [vmem:[#allocation9 + $0x18b0] sm:$0xff]
    %v1220 = vld [vmem:[#allocation9 + $0x18b8] sm:$0xff]
    %v1221 = vld [vmem:[#allocation9 + $0x18c0] sm:$0xff]
    %v1222 = vld [vmem:[#allocation9 + $0x18c8] sm:$0xff]
    %v1223 = vld [vmem:[#allocation9 + $0x18d0] sm:$0xff]
    %v1224 = vld [vmem:[#allocation9 + $0x18d8] sm:$0xff]
    %v1225 = vld [vmem:[#allocation9 + $0x18e0] sm:$0xff]
    %v1226 = vld [vmem:[#allocation9 + $0x18e8] sm:$0xff]
    %v1227 = vld [vmem:[#allocation9 + $0x18f0] sm:$0xff]
    %v1228 = vld [vmem:[#allocation9 + $0x18f8] sm:$0xff]
    %v1229 = vld [vmem:[#allocation9 + $0x1900] sm:$0xff]
    %v1230 = vld [vmem:[#allocation9 + $0x1908] sm:$0xff]
    %v1231 = vld [vmem:[#allocation9 + $0x1910] sm:$0xff]
    %v1232 = vld [vmem:[#allocation9 + $0x1918] sm:$0xff]
    %v1233 = vld [vmem:[#allocation9 + $0x1920] sm:$0xff]
    %v1234 = vld [vmem:[#allocation9 + $0x1928] sm:$0xff]
    %v1235 = vld [vmem:[#allocation9 + $0x1930] sm:$0xff]
    %v1236 = vld [vmem:[#allocation9 + $0x1938] sm:$0xff]
    %v1237 = vld [vmem:[#allocation9 + $0x1940] sm:$0xff]
    %v1238 = vld [vmem:[#allocation9 + $0x1948] sm:$0xff]
    %v1239 = vld [vmem:[#allocation9 + $0x1950] sm:$0xff]
    %v1240 = vld [vmem:[#allocation9 + $0x1958] sm:$0xff]
    %v1241 = vld [vmem:[#allocation9 + $0x1960] sm:$0xff]
    %v1242 = vld [vmem:[#allocation9 + $0x1968] sm:$0xff]
    %v1243 = vld [vmem:[#allocation9 + $0x1970] sm:$0xff]
    %v1244 = vld [vmem:[#allocation9 + $0x1978] sm:$0xff]
    %v1245 = vld [vmem:[#allocation9 + $0x1980] sm:$0xff]
    %v1246 = vld [vmem:[#allocation9 + $0x1988] sm:$0xff]
    %v1247 = vld [vmem:[#allocation9 + $0x1990] sm:$0xff]
    %v1248 = vld [vmem:[#allocation9 + $0x1998] sm:$0xff]
    %v1249 = vld [vmem:[#allocation9 + $0x19a0] sm:$0xff]
    %v1250 = vld [vmem:[#allocation9 + $0x19a8] sm:$0xff]
    %v1251 = vld [vmem:[#allocation9 + $0x19b0] sm:$0xff]
    %v1252 = vld [vmem:[#allocation9 + $0x19b8] sm:$0xff]
    %v1253 = vld [vmem:[#allocation9 + $0x19c0] sm:$0xff]
    %v1254 = vld [vmem:[#allocation9 + $0x19c8] sm:$0xff]
    %v1255 = vld [vmem:[#allocation9 + $0x19d0] sm:$0xff]
    %v1256 = vld [vmem:[#allocation9 + $0x19d8] sm:$0xff]
    %v1257 = vld [vmem:[#allocation9 + $0x19e0] sm:$0xff]
    %v1258 = vld [vmem:[#allocation9 + $0x19e8] sm:$0xff]
    %v1259 = vld [vmem:[#allocation9 + $0x19f0] sm:$0xff]
    %v1260 = vld [vmem:[#allocation9 + $0x19f8] sm:$0xff]
    %v1261 = vld [vmem:[#allocation9 + $0x1a00] sm:$0xff]
    %v1262 = vld [vmem:[#allocation9 + $0x1a08] sm:$0xff]
    %v1263 = vld [vmem:[#allocation9 + $0x1a10] sm:$0xff]
    %v1264 = vld [vmem:[#allocation9 + $0x1a18] sm:$0xff]
    %v1265 = vld [vmem:[#allocation9 + $0x1a20] sm:$0xff]
    %v1266 = vld [vmem:[#allocation9 + $0x1a28] sm:$0xff]
    %v1267 = vld [vmem:[#allocation9 + $0x1a30] sm:$0xff]
    %v1268 = vld [vmem:[#allocation9 + $0x1a38] sm:$0xff]
    %v1269 = vld [vmem:[#allocation9 + $0x1a40] sm:$0xff]
    %v1270 = vld [vmem:[#allocation9 + $0x1a48] sm:$0xff]
    %v1271 = vld [vmem:[#allocation9 + $0x1a50] sm:$0xff]
    %v1272 = vld [vmem:[#allocation9 + $0x1a58] sm:$0xff]
    %v1273 = vld [vmem:[#allocation9 + $0x1a60] sm:$0xff]
    %v1274 = vld [vmem:[#allocation9 + $0x1a68] sm:$0xff]
    %v1275 = vld [vmem:[#allocation9 + $0x1a70] sm:$0xff]
    %v1276 = vld [vmem:[#allocation9 + $0x1a78] sm:$0xff]
    %v1277 = vld [vmem:[#allocation9 + $0x1a80] sm:$0xff]
    %v1278 = vld [vmem:[#allocation9 + $0x1a88] sm:$0xff]
    %v1279 = vld [vmem:[#allocation9 + $0x1a90] sm:$0xff]
    %v1280 = vld [vmem:[#allocation9 + $0x1a98] sm:$0xff]
    %v1281 = vld [vmem:[#allocation9 + $0x1aa0] sm:$0xff]
    %v1282 = vld [vmem:[#allocation9 + $0x1aa8] sm:$0xff]
    %v1283 = vld [vmem:[#allocation9 + $0x1ab0] sm:$0xff]
    %v1284 = vld [vmem:[#allocation9 + $0x1ab8] sm:$0xff]
    %v1285 = vld [vmem:[#allocation9 + $0x1ac0] sm:$0xff]
    %v1286 = vld [vmem:[#allocation9 + $0x1ac8] sm:$0xff]
    %v1287 = vld [vmem:[#allocation9 + $0x1ad0] sm:$0xff]
    %v1288 = vld [vmem:[#allocation9 + $0x1ad8] sm:$0xff]
    %v1289 = vld [vmem:[#allocation9 + $0x1ae0] sm:$0xff]
    %v1290 = vld [vmem:[#allocation9 + $0x1ae8] sm:$0xff]
    %v1291 = vld [vmem:[#allocation9 + $0x1af0] sm:$0xff]
    %v1292 = vld [vmem:[#allocation9 + $0x1af8] sm:$0xff]
    %v1293 = vld [vmem:[#allocation9 + $0x1b00] sm:$0xff]
    %v1294 = vld [vmem:[#allocation9 + $0x1b08] sm:$0xff]
    %v1295 = vld [vmem:[#allocation9 + $0x1b10] sm:$0xff]
    %v1296 = vld [vmem:[#allocation9 + $0x1b18] sm:$0xff]
    %v1297 = vld [vmem:[#allocation9 + $0x1b20] sm:$0xff]
    %v1298 = vld [vmem:[#allocation9 + $0x1b28] sm:$0xff]
    %v1299 = vld [vmem:[#allocation9 + $0x1b30] sm:$0xff]
    %v1300 = vld [vmem:[#allocation9 + $0x1b38] sm:$0xff]
    %v1301 = vld [vmem:[#allocation9 + $0x1b40] sm:$0xff]
    %v1302 = vld [vmem:[#allocation9 + $0x1b48] sm:$0xff]
    %v1303 = vld [vmem:[#allocation9 + $0x1b50] sm:$0xff]
    %v1304 = vld [vmem:[#allocation9 + $0x1b58] sm:$0xff]
    %v1305 = vld [vmem:[#allocation9 + $0x1b60] sm:$0xff]
    %v1306 = vld [vmem:[#allocation9 + $0x1b68] sm:$0xff]
    %v1307 = vld [vmem:[#allocation9 + $0x1b70] sm:$0xff]
    %v1308 = vld [vmem:[#allocation9 + $0x1b78] sm:$0xff]
    %v1309 = vld [vmem:[#allocation9 + $0x1b80] sm:$0xff]
    %v1310 = vld [vmem:[#allocation9 + $0x1b88] sm:$0xff]
    %v1311 = vld [vmem:[#allocation9 + $0x1b90] sm:$0xff]
    %v1312 = vld [vmem:[#allocation9 + $0x1b98] sm:$0xff]
    %v1313 = vld [vmem:[#allocation9 + $0x1ba0] sm:$0xff]
    %v1314 = vld [vmem:[#allocation9 + $0x1ba8] sm:$0xff]
    %v1315 = vld [vmem:[#allocation9 + $0x1bb0] sm:$0xff]
    %v1316 = vld [vmem:[#allocation9 + $0x1bb8] sm:$0xff]
    %v1317 = vld [vmem:[#allocation9 + $0x1bc0] sm:$0xff]
    %v1318 = vld [vmem:[#allocation9 + $0x1bc8] sm:$0xff]
    %v1319 = vld [vmem:[#allocation9 + $0x1bd0] sm:$0xff]
    %v1320 = vld [vmem:[#allocation9 + $0x1bd8] sm:$0xff]
    %v1321 = vld [vmem:[#allocation9 + $0x1be0] sm:$0xff]
    %v1322 = vld [vmem:[#allocation9 + $0x1be8] sm:$0xff]
    %v1323 = vld [vmem:[#allocation9 + $0x1bf0] sm:$0xff]
    %v1324 = vld [vmem:[#allocation9 + $0x1bf8] sm:$0xff]
    %v1325 = vld [vmem:[#allocation9 + $0x1c00] sm:$0xff]
    %v1326 = vld [vmem:[#allocation9 + $0x1c08] sm:$0xff]
    %v1327 = vld [vmem:[#allocation9 + $0x1c10] sm:$0xff]
    %v1328 = vld [vmem:[#allocation9 + $0x1c18] sm:$0xff]
    %v1329 = vld [vmem:[#allocation9 + $0x1c20] sm:$0xff]
    %v1330 = vld [vmem:[#allocation9 + $0x1c28] sm:$0xff]
    %v1331 = vld [vmem:[#allocation9 + $0x1c30] sm:$0xff]
    %v1332 = vld [vmem:[#allocation9 + $0x1c38] sm:$0xff]
    %v1333 = vld [vmem:[#allocation9 + $0x1c40] sm:$0xff]
    %v1334 = vld [vmem:[#allocation9 + $0x1c48] sm:$0xff]
    %v1335 = vld [vmem:[#allocation9 + $0x1c50] sm:$0xff]
    %v1336 = vld [vmem:[#allocation9 + $0x1c58] sm:$0xff]
    %v1337 = vld [vmem:[#allocation9 + $0x1c60] sm:$0xff]
    %v1338 = vld [vmem:[#allocation9 + $0x1c68] sm:$0xff]
    %v1339 = vld [vmem:[#allocation9 + $0x1c70] sm:$0xff]
    %v1340 = vld [vmem:[#allocation9 + $0x1c78] sm:$0xff]
    %v1341 = vld [vmem:[#allocation9 + $0x1c80] sm:$0xff]
    %v1342 = vld [vmem:[#allocation9 + $0x1c88] sm:$0xff]
    %v1343 = vld [vmem:[#allocation9 + $0x1c90] sm:$0xff]
    %v1344 = vld [vmem:[#allocation9 + $0x1c98] sm:$0xff]
    %v1345 = vld [vmem:[#allocation9 + $0x1ca0] sm:$0xff]
    %v1346 = vld [vmem:[#allocation9 + $0x1ca8] sm:$0xff]
    %v1347 = vld [vmem:[#allocation9 + $0x1cb0] sm:$0xff]
    %v1348 = vld [vmem:[#allocation9 + $0x1cb8] sm:$0xff]
    %v1349 = vld [vmem:[#allocation9 + $0x1cc0] sm:$0xff]
    %v1350 = vld [vmem:[#allocation9 + $0x1cc8] sm:$0xff]
    %v1351 = vld [vmem:[#allocation9 + $0x1cd0] sm:$0xff]
    %v1352 = vld [vmem:[#allocation9 + $0x1cd8] sm:$0xff]
    %v1353 = vld [vmem:[#allocation9 + $0x1ce0] sm:$0xff]
    %v1354 = vld [vmem:[#allocation9 + $0x1ce8] sm:$0xff]
    %v1355 = vld [vmem:[#allocation9 + $0x1cf0] sm:$0xff]
    %v1356 = vld [vmem:[#allocation9 + $0x1cf8] sm:$0xff]
    %v1357 = vld [vmem:[#allocation9 + $0x1d00] sm:$0xff]
    %v1358 = vld [vmem:[#allocation9 + $0x1d08] sm:$0xff]
    %v1359 = vld [vmem:[#allocation9 + $0x1d10] sm:$0xff]
    %v1360 = vld [vmem:[#allocation9 + $0x1d18] sm:$0xff]
    %v1361 = vld [vmem:[#allocation9 + $0x1d20] sm:$0xff]
    %v1362 = vld [vmem:[#allocation9 + $0x1d28] sm:$0xff]
    %v1363 = vld [vmem:[#allocation9 + $0x1d30] sm:$0xff]
    %v1364 = vld [vmem:[#allocation9 + $0x1d38] sm:$0xff]
    %v1365 = vld [vmem:[#allocation9 + $0x1d40] sm:$0xff]
    %v1366 = vld [vmem:[#allocation9 + $0x1d48] sm:$0xff]
    %v1367 = vld [vmem:[#allocation9 + $0x1d50] sm:$0xff]
    %v1368 = vld [vmem:[#allocation9 + $0x1d58] sm:$0xff]
    %v1369 = vld [vmem:[#allocation9 + $0x1d60] sm:$0xff]
    %v1370 = vld [vmem:[#allocation9 + $0x1d68] sm:$0xff]
    %v1371 = vld [vmem:[#allocation9 + $0x1d70] sm:$0xff]
    %v1372 = vld [vmem:[#allocation9 + $0x1d78] sm:$0xff]
    %v1373 = vld [vmem:[#allocation9 + $0x1d80] sm:$0xff]
    %v1374 = vld [vmem:[#allocation9 + $0x1d88] sm:$0xff]
    %v1375 = vld [vmem:[#allocation9 + $0x1d90] sm:$0xff]
    %v1376 = vld [vmem:[#allocation9 + $0x1d98] sm:$0xff]
    %v1377 = vld [vmem:[#allocation9 + $0x1da0] sm:$0xff]
    %v1378 = vld [vmem:[#allocation9 + $0x1da8] sm:$0xff]
    %v1379 = vld [vmem:[#allocation9 + $0x1db0] sm:$0xff]
    %v1380 = vld [vmem:[#allocation9 + $0x1db8] sm:$0xff]
    %v1381 = vld [vmem:[#allocation9 + $0x1dc0] sm:$0xff]
    %v1382 = vld [vmem:[#allocation9 + $0x1dc8] sm:$0xff]
    %v1383 = vld [vmem:[#allocation9 + $0x1dd0] sm:$0xff]
    %v1384 = vld [vmem:[#allocation9 + $0x1dd8] sm:$0xff]
    %v1385 = vld [vmem:[#allocation9 + $0x1de0] sm:$0xff]
    %v1386 = vld [vmem:[#allocation9 + $0x1de8] sm:$0xff]
    %v1387 = vld [vmem:[#allocation9 + $0x1df0] sm:$0xff]
    %v1388 = vld [vmem:[#allocation9 + $0x1df8] sm:$0xff]
    %v1389 = vld [vmem:[#allocation9 + $0x1e00] sm:$0xff]
    %v1390 = vld [vmem:[#allocation9 + $0x1e08] sm:$0xff]
    %v1391 = vld [vmem:[#allocation9 + $0x1e10] sm:$0xff]
    %v1392 = vld [vmem:[#allocation9 + $0x1e18] sm:$0xff]
    %v1393 = vld [vmem:[#allocation9 + $0x1e20] sm:$0xff]
    %v1394 = vld [vmem:[#allocation9 + $0x1e28] sm:$0xff]
    %v1395 = vld [vmem:[#allocation9 + $0x1e30] sm:$0xff]
    %v1396 = vld [vmem:[#allocation9 + $0x1e38] sm:$0xff]
    %v1397 = vld [vmem:[#allocation9 + $0x1e40] sm:$0xff]
    %v1398 = vld [vmem:[#allocation9 + $0x1e48] sm:$0xff]
    %v1399 = vld [vmem:[#allocation9 + $0x1e50] sm:$0xff]
    %v1400 = vld [vmem:[#allocation9 + $0x1e58] sm:$0xff]
    %v1401 = vld [vmem:[#allocation9 + $0x1e60] sm:$0xff]
    %v1402 = vld [vmem:[#allocation9 + $0x1e68] sm:$0xff]
    %v1403 = vld [vmem:[#allocation9 + $0x1e70] sm:$0xff]
    %v1404 = vld [vmem:[#allocation9 + $0x1e78] sm:$0xff]
    %v1405 = vld [vmem:[#allocation9 + $0x1e80] sm:$0xff]
    %v1406 = vld [vmem:[#allocation9 + $0x1e88] sm:$0xff]
    %v1407 = vld [vmem:[#allocation9 + $0x1e90] sm:$0xff]
    %v1408 = vld [vmem:[#allocation9 + $0x1e98] sm:$0xff]
    %v1409 = vld [vmem:[#allocation9 + $0x1ea0] sm:$0xff]
    %v1410 = vld [vmem:[#allocation9 + $0x1ea8] sm:$0xff]
    %v1411 = vld [vmem:[#allocation9 + $0x1eb0] sm:$0xff]
    %v1412 = vld [vmem:[#allocation9 + $0x1eb8] sm:$0xff]
    %v1413 = vld [vmem:[#allocation9 + $0x1ec0] sm:$0xff]
    %v1414 = vld [vmem:[#allocation9 + $0x1ec8] sm:$0xff]
    %v1415 = vld [vmem:[#allocation9 + $0x1ed0] sm:$0xff]
    %v1416 = vld [vmem:[#allocation9 + $0x1ed8] sm:$0xff]
    %v1417 = vld [vmem:[#allocation9 + $0x1ee0] sm:$0xff]
    %v1418 = vld [vmem:[#allocation9 + $0x1ee8] sm:$0xff]
    %v1419 = vld [vmem:[#allocation9 + $0x1ef0] sm:$0xff]
    %v1420 = vld [vmem:[#allocation9 + $0x1ef8] sm:$0xff]
    %v1421 = vld [vmem:[#allocation9 + $0x1f00] sm:$0xff]
    %v1422 = vld [vmem:[#allocation9 + $0x1f08] sm:$0xff]
    %v1423 = vld [vmem:[#allocation9 + $0x1f10] sm:$0xff]
    %v1424 = vld [vmem:[#allocation9 + $0x1f18] sm:$0xff]
    %v1425 = vld [vmem:[#allocation9 + $0x1f20] sm:$0xff]
    %v1426 = vld [vmem:[#allocation9 + $0x1f28] sm:$0xff]
    %v1427 = vld [vmem:[#allocation9 + $0x1f30] sm:$0xff]
    %v1428 = vld [vmem:[#allocation9 + $0x1f38] sm:$0xff]
    %v1429 = vld [vmem:[#allocation9 + $0x1f40] sm:$0xff]
    %v1430 = vld [vmem:[#allocation9 + $0x1f48] sm:$0xff]
    %v1431 = vld [vmem:[#allocation9 + $0x1f50] sm:$0xff]
    %v1432 = vld [vmem:[#allocation9 + $0x1f58] sm:$0xff]
    %v1433 = vld [vmem:[#allocation9 + $0x1f60] sm:$0xff]
    %v1434 = vld [vmem:[#allocation9 + $0x1f68] sm:$0xff]
    %v1435 = vld [vmem:[#allocation9 + $0x1f70] sm:$0xff]
    %v1436 = vld [vmem:[#allocation9 + $0x1f78] sm:$0xff]
    %v1437 = vld [vmem:[#allocation9 + $0x1f80] sm:$0xff]
    %v1438 = vld [vmem:[#allocation9 + $0x1f88] sm:$0xff]
    %v1439 = vld [vmem:[#allocation9 + $0x1f90] sm:$0xff]
    %v1440 = vld [vmem:[#allocation9 + $0x1f98] sm:$0xff]
    %v1441 = vld [vmem:[#allocation9 + $0x1fa0] sm:$0xff]
    %v1442 = vld [vmem:[#allocation9 + $0x1fa8] sm:$0xff]
    %v1443 = vld [vmem:[#allocation9 + $0x1fb0] sm:$0xff]
    %v1444 = vld [vmem:[#allocation9 + $0x1fb8] sm:$0xff]
    %v1445 = vld [vmem:[#allocation9 + $0x1fc0] sm:$0xff]
    %v1446 = vld [vmem:[#allocation9 + $0x1fc8] sm:$0xff]
    %v1447 = vld [vmem:[#allocation9 + $0x1fd0] sm:$0xff]
    %v1448 = vld [vmem:[#allocation9 + $0x1fd8] sm:$0xff]
    %v1449 = vld [vmem:[#allocation9 + $0x1fe0] sm:$0xff]
    %v1450 = vld [vmem:[#allocation9 + $0x1fe8] sm:$0xff]
    %v1451 = vld [vmem:[#allocation9 + $0x1ff0] sm:$0xff]
    %v1452 = vld [vmem:[#allocation9 + $0x1ff8] sm:$0xff]
    %v1453 = vld [vmem:[#allocation9 + $0x2000] sm:$0xff]
    %v1454 = vld [vmem:[#allocation9 + $0x2008] sm:$0xff]
    %v1455 = vld [vmem:[#allocation9 + $0x2010] sm:$0xff]
    %v1456 = vld [vmem:[#allocation9 + $0x2018] sm:$0xff]
    %v1457 = vld [vmem:[#allocation9 + $0x2020] sm:$0xff]
    %v1458 = vld [vmem:[#allocation9 + $0x2028] sm:$0xff]
    %v1459 = vld [vmem:[#allocation9 + $0x2030] sm:$0xff]
    %v1460 = vld [vmem:[#allocation9 + $0x2038] sm:$0xff]
    %v1461 = vld [vmem:[#allocation9 + $0x2040] sm:$0xff]
    %v1462 = vld [vmem:[#allocation9 + $0x2048] sm:$0xff]
    %v1463 = vld [vmem:[#allocation9 + $0x2050] sm:$0xff]
    %v1464 = vld [vmem:[#allocation9 + $0x2058] sm:$0xff]
    %v1465 = vld [vmem:[#allocation9 + $0x2060] sm:$0xff]
    %v1466 = vld [vmem:[#allocation9 + $0x2068] sm:$0xff]
    %v1467 = vld [vmem:[#allocation9 + $0x2070] sm:$0xff]
    %v1468 = vld [vmem:[#allocation9 + $0x2078] sm:$0xff]
    %v1469 = vld [vmem:[#allocation9 + $0x2080] sm:$0xff]
    %v1470 = vld [vmem:[#allocation9 + $0x2088] sm:$0xff]
    %v1471 = vld [vmem:[#allocation9 + $0x2090] sm:$0xff]
    %v1472 = vld [vmem:[#allocation9 + $0x2098] sm:$0xff]
    %v1473 = vld [vmem:[#allocation9 + $0x20a0] sm:$0xff]
    %v1474 = vld [vmem:[#allocation9 + $0x20a8] sm:$0xff]
    %v1475 = vld [vmem:[#allocation9 + $0x20b0] sm:$0xff]
    %v1476 = vld [vmem:[#allocation9 + $0x20b8] sm:$0xff]
    %v1477 = vld [vmem:[#allocation9 + $0x20c0] sm:$0xff]
    %v1478 = vld [vmem:[#allocation9 + $0x20c8] sm:$0xff]
    %v1479 = vld [vmem:[#allocation9 + $0x20d0] sm:$0xff]
    %v1480 = vld [vmem:[#allocation9 + $0x20d8] sm:$0xff]
    %v1481 = vld [vmem:[#allocation9 + $0x20e0] sm:$0xff]
    %v1482 = vld [vmem:[#allocation9 + $0x20e8] sm:$0xff]
    %v1483 = vld [vmem:[#allocation9 + $0x20f0] sm:$0xff]
    %v1484 = vld [vmem:[#allocation9 + $0x20f8] sm:$0xff]
    %v1485 = vld [vmem:[#allocation9 + $0x2100] sm:$0xff]
    %v1486 = vld [vmem:[#allocation9 + $0x2108] sm:$0xff]
    %v1487 = vld [vmem:[#allocation9 + $0x2110] sm:$0xff]
    %v1488 = vld [vmem:[#allocation9 + $0x2118] sm:$0xff]
    %v1489 = vld [vmem:[#allocation9 + $0x2120] sm:$0xff]
    %v1490 = vld [vmem:[#allocation9 + $0x2128] sm:$0xff]
    %v1491 = vld [vmem:[#allocation9 + $0x2130] sm:$0xff]
    %v1492 = vld [vmem:[#allocation9 + $0x2138] sm:$0xff]
    %v1493 = vld [vmem:[#allocation9 + $0x2140] sm:$0xff]
    %v1494 = vld [vmem:[#allocation9 + $0x2148] sm:$0xff]
    %v1495 = vld [vmem:[#allocation9 + $0x2150] sm:$0xff]
    %v1496 = vld [vmem:[#allocation9 + $0x2158] sm:$0xff]
    %v1497 = vld [vmem:[#allocation9 + $0x2160] sm:$0xff]
    %v1498 = vld [vmem:[#allocation9 + $0x2168] sm:$0xff]
    %v1499 = vld [vmem:[#allocation9 + $0x2170] sm:$0xff]
    %v1500 = vld [vmem:[#allocation9 + $0x2178] sm:$0xff]
    %v1501 = vld [vmem:[#allocation9 + $0x2180] sm:$0xff]
    %v1502 = vld [vmem:[#allocation9 + $0x2188] sm:$0xff]
    %v1503 = vld [vmem:[#allocation9 + $0x2190] sm:$0xff]
    %v1504 = vld [vmem:[#allocation9 + $0x2198] sm:$0xff]
    %v1505 = vld [vmem:[#allocation9 + $0x21a0] sm:$0xff]
    %v1506 = vld [vmem:[#allocation9 + $0x21a8] sm:$0xff]
    %v1507 = vld [vmem:[#allocation9 + $0x21b0] sm:$0xff]
    %v1508 = vld [vmem:[#allocation9 + $0x21b8] sm:$0xff]
    %v1509 = vld [vmem:[#allocation9 + $0x21c0] sm:$0xff]
    %v1510 = vld [vmem:[#allocation9 + $0x21c8] sm:$0xff]
    %v1511 = vld [vmem:[#allocation9 + $0x21d0] sm:$0xff]
    %v1512 = vld [vmem:[#allocation9 + $0x21d8] sm:$0xff]
    %v1513 = vld [vmem:[#allocation9 + $0x21e0] sm:$0xff]
    %v1514 = vld [vmem:[#allocation9 + $0x21e8] sm:$0xff]
    %v1515 = vld [vmem:[#allocation9 + $0x21f0] sm:$0xff]
    %v1516 = vld [vmem:[#allocation9 + $0x21f8] sm:$0xff]
    %v1517 = vld [vmem:[#allocation9 + $0x2200] sm:$0xff]
    %v1518 = vld [vmem:[#allocation9 + $0x2208] sm:$0xff]
    %v1519 = vld [vmem:[#allocation9 + $0x2210] sm:$0xff]
    %v1520 = vld [vmem:[#allocation9 + $0x2218] sm:$0xff]
    %v1521 = vld [vmem:[#allocation9 + $0x2220] sm:$0xff]
    %v1522 = vld [vmem:[#allocation9 + $0x2228] sm:$0xff]
    %v1523 = vld [vmem:[#allocation9 + $0x2230] sm:$0xff]
    %v1524 = vld [vmem:[#allocation9 + $0x2238] sm:$0xff]
    %v1525 = vld [vmem:[#allocation9 + $0x2240] sm:$0xff]
    %v1526 = vld [vmem:[#allocation9 + $0x2248] sm:$0xff]
    %v1527 = vld [vmem:[#allocation9 + $0x2250] sm:$0xff]
    %v1528 = vld [vmem:[#allocation9 + $0x2258] sm:$0xff]
    %v1529 = vld [vmem:[#allocation9 + $0x2260] sm:$0xff]
    %v1530 = vld [vmem:[#allocation9 + $0x2268] sm:$0xff]
    %v1531 = vld [vmem:[#allocation9 + $0x2270] sm:$0xff]
    %v1532 = vld [vmem:[#allocation9 + $0x2278] sm:$0xff]
    %v1533 = vld [vmem:[#allocation9 + $0x2280] sm:$0xff]
    %v1534 = vld [vmem:[#allocation9 + $0x2288] sm:$0xff]
    %v1535 = vld [vmem:[#allocation9 + $0x2290] sm:$0xff]
    %v1536 = vld [vmem:[#allocation9 + $0x2298] sm:$0xff]
    %v1537 = vld [vmem:[#allocation9 + $0x22a0] sm:$0xff]
    %v1538 = vld [vmem:[#allocation9 + $0x22a8] sm:$0xff]
    %v1539 = vld [vmem:[#allocation9 + $0x22b0] sm:$0xff]
    %v1540 = vld [vmem:[#allocation9 + $0x22b8] sm:$0xff]
    %v1541 = vld [vmem:[#allocation9 + $0x22c0] sm:$0xff]
    %v1542 = vld [vmem:[#allocation9 + $0x22c8] sm:$0xff]
    %v1543 = vld [vmem:[#allocation9 + $0x22d0] sm:$0xff]
    %v1544 = vld [vmem:[#allocation9 + $0x22d8] sm:$0xff]
    %v1545 = vld [vmem:[#allocation9 + $0x22e0] sm:$0xff]
    %v1546 = vld [vmem:[#allocation9 + $0x22e8] sm:$0xff]
    %v1547 = vld [vmem:[#allocation9 + $0x22f0] sm:$0xff]
    %v1548 = vld [vmem:[#allocation9 + $0x22f8] sm:$0xff]
    %v1549 = vld [vmem:[#allocation9 + $0x2300] sm:$0xff]
    %v1550 = vld [vmem:[#allocation9 + $0x2308] sm:$0xff]
    %v1551 = vld [vmem:[#allocation9 + $0x2310] sm:$0xff]
    %v1552 = vld [vmem:[#allocation9 + $0x2318] sm:$0xff]
    %v1553 = vld [vmem:[#allocation9 + $0x2320] sm:$0xff]
    %v1554 = vld [vmem:[#allocation9 + $0x2328] sm:$0xff]
    %v1555 = vld [vmem:[#allocation9 + $0x2330] sm:$0xff]
    %v1556 = vld [vmem:[#allocation9 + $0x2338] sm:$0xff]
    %v1557 = vld [vmem:[#allocation9 + $0x2340] sm:$0xff]
    %v1558 = vld [vmem:[#allocation9 + $0x2348] sm:$0xff]
    %v1559 = vld [vmem:[#allocation9 + $0x2350] sm:$0xff]
    %v1560 = vld [vmem:[#allocation9 + $0x2358] sm:$0xff]
    %v1561 = vld [vmem:[#allocation9 + $0x2360] sm:$0xff]
    %v1562 = vld [vmem:[#allocation9 + $0x2368] sm:$0xff]
    %v1563 = vld [vmem:[#allocation9 + $0x2370] sm:$0xff]
    %v1564 = vld [vmem:[#allocation9 + $0x2378] sm:$0xff]
    %v1565 = vld [vmem:[#allocation9 + $0x2380] sm:$0xff]
    %v1566 = vld [vmem:[#allocation9 + $0x2388] sm:$0xff]
    %v1567 = vld [vmem:[#allocation9 + $0x2390] sm:$0xff]
    %v1568 = vld [vmem:[#allocation9 + $0x2398] sm:$0xff]
    %v1569 = vld [vmem:[#allocation9 + $0x23a0] sm:$0xff]
    %v1570 = vld [vmem:[#allocation9 + $0x23a8] sm:$0xff]
    %v1571 = vld [vmem:[#allocation9 + $0x23b0] sm:$0xff]
    %v1572 = vld [vmem:[#allocation9 + $0x23b8] sm:$0xff]
    %v1573 = vld [vmem:[#allocation9 + $0x23c0] sm:$0xff]
    %v1574 = vld [vmem:[#allocation9 + $0x23c8] sm:$0xff]
    %v1575 = vld [vmem:[#allocation9 + $0x23d0] sm:$0xff]
    %v1576 = vld [vmem:[#allocation9 + $0x23d8] sm:$0xff]
    %v1577 = vld [vmem:[#allocation9 + $0x23e0] sm:$0xff]
    %v1578 = vld [vmem:[#allocation9 + $0x23e8] sm:$0xff]
    %v1579 = vld [vmem:[#allocation9 + $0x23f0] sm:$0xff]
    %v1580 = vld [vmem:[#allocation9 + $0x23f8] sm:$0xff]
    %v1581 = vld [vmem:[#allocation9 + $0x2400] sm:$0xff]
    %v1582 = vld [vmem:[#allocation9 + $0x2408] sm:$0xff]
    %v1583 = vld [vmem:[#allocation9 + $0x2410] sm:$0xff]
    %v1584 = vld [vmem:[#allocation9 + $0x2418] sm:$0xff]
    %v1585 = vld [vmem:[#allocation9 + $0x2420] sm:$0xff]
    %v1586 = vld [vmem:[#allocation9 + $0x2428] sm:$0xff]
    %v1587 = vld [vmem:[#allocation9 + $0x2430] sm:$0xff]
    %v1588 = vld [vmem:[#allocation9 + $0x2438] sm:$0xff]
    %v1589 = vld [vmem:[#allocation9 + $0x2440] sm:$0xff]
    %v1590 = vld [vmem:[#allocation9 + $0x2448] sm:$0xff]
    %v1591 = vld [vmem:[#allocation9 + $0x2450] sm:$0xff]
    %v1592 = vld [vmem:[#allocation9 + $0x2458] sm:$0xff]
    %v1593 = vld [vmem:[#allocation9 + $0x2460] sm:$0xff]
    %v1594 = vld [vmem:[#allocation9 + $0x2468] sm:$0xff]
    %v1595 = vld [vmem:[#allocation9 + $0x2470] sm:$0xff]
    %v1596 = vld [vmem:[#allocation9 + $0x2478] sm:$0xff]
    %v1597 = vld [vmem:[#allocation9 + $0x2480] sm:$0xff]
    %v1598 = vld [vmem:[#allocation9 + $0x2488] sm:$0xff]
    %v1599 = vld [vmem:[#allocation9 + $0x2490] sm:$0xff]
    %v1600 = vld [vmem:[#allocation9 + $0x2498] sm:$0xff]
    %v1601 = vld [vmem:[#allocation9 + $0x24a0] sm:$0xff]
    %v1602 = vld [vmem:[#allocation9 + $0x24a8] sm:$0xff]
    %v1603 = vld [vmem:[#allocation9 + $0x24b0] sm:$0xff]
    %v1604 = vld [vmem:[#allocation9 + $0x24b8] sm:$0xff]
    %v1605 = vld [vmem:[#allocation9 + $0x24c0] sm:$0xff]
    %v1606 = vld [vmem:[#allocation9 + $0x24c8] sm:$0xff]
    %v1607 = vld [vmem:[#allocation9 + $0x24d0] sm:$0xff]
    %v1608 = vld [vmem:[#allocation9 + $0x24d8] sm:$0xff]
    %v1609 = vld [vmem:[#allocation9 + $0x24e0] sm:$0xff]
    %v1610 = vld [vmem:[#allocation9 + $0x24e8] sm:$0xff]
    %v1611 = vld [vmem:[#allocation9 + $0x24f0] sm:$0xff]
    %v1612 = vld [vmem:[#allocation9 + $0x24f8] sm:$0xff]
    %v1613 = vld [vmem:[#allocation9 + $0x2500] sm:$0xff]
    %v1614 = vld [vmem:[#allocation9 + $0x2508] sm:$0xff]
    %v1615 = vld [vmem:[#allocation9 + $0x2510] sm:$0xff]
    %v1616 = vld [vmem:[#allocation9 + $0x2518] sm:$0xff]
    %v1617 = vld [vmem:[#allocation9 + $0x2520] sm:$0xff]
    %v1618 = vld [vmem:[#allocation9 + $0x2528] sm:$0xff]
    %v1619 = vld [vmem:[#allocation9 + $0x2530] sm:$0xff]
    %v1620 = vld [vmem:[#allocation9 + $0x2538] sm:$0xff]
    %v1621 = vld [vmem:[#allocation9 + $0x2540] sm:$0xff]
    %v1622 = vld [vmem:[#allocation9 + $0x2548] sm:$0xff]
    %v1623 = vld [vmem:[#allocation9 + $0x2550] sm:$0xff]
    %v1624 = vld [vmem:[#allocation9 + $0x2558] sm:$0xff]
    %v1625 = vld [vmem:[#allocation9 + $0x2560] sm:$0xff]
    %v1626 = vld [vmem:[#allocation9 + $0x2568] sm:$0xff]
    %v1627 = vld [vmem:[#allocation9 + $0x2570] sm:$0xff]
    %v1628 = vld [vmem:[#allocation9 + $0x2578] sm:$0xff]
    %v1629 = vld [vmem:[#allocation9 + $0x2580] sm:$0xff]
    %v1630 = vld [vmem:[#allocation9 + $0x2588] sm:$0xff]
    %v1631 = vld [vmem:[#allocation9 + $0x2590] sm:$0xff]
    %v1632 = vld [vmem:[#allocation9 + $0x2598] sm:$0xff]
    %v1633 = vld [vmem:[#allocation9 + $0x25a0] sm:$0xff]
    %v1634 = vld [vmem:[#allocation9 + $0x25a8] sm:$0xff]
    %v1635 = vld [vmem:[#allocation9 + $0x25b0] sm:$0xff]
    %v1636 = vld [vmem:[#allocation9 + $0x25b8] sm:$0xff]
    %v1637 = vld [vmem:[#allocation9 + $0x25c0] sm:$0xff]
    %v1638 = vld [vmem:[#allocation9 + $0x25c8] sm:$0xff]
    %v1639 = vld [vmem:[#allocation9 + $0x25d0] sm:$0xff]
    %v1640 = vld [vmem:[#allocation9 + $0x25d8] sm:$0xff]
    %v1641 = vld [vmem:[#allocation9 + $0x25e0] sm:$0xff]
    %v1642 = vld [vmem:[#allocation9 + $0x25e8] sm:$0xff]
    %v1643 = vld [vmem:[#allocation9 + $0x25f0] sm:$0xff]
    %v1644 = vld [vmem:[#allocation9 + $0x25f8] sm:$0xff]
    %v1645 = vld [vmem:[#allocation9 + $0x2600] sm:$0xff]
    %v1646 = vld [vmem:[#allocation9 + $0x2608] sm:$0xff]
    %v1647 = vld [vmem:[#allocation9 + $0x2610] sm:$0xff]
    %v1648 = vld [vmem:[#allocation9 + $0x2618] sm:$0xff]
    %v1649 = vld [vmem:[#allocation9 + $0x2620] sm:$0xff]
    %v1650 = vld [vmem:[#allocation9 + $0x2628] sm:$0xff]
    %v1651 = vld [vmem:[#allocation9 + $0x2630] sm:$0xff]
    %v1652 = vld [vmem:[#allocation9 + $0x2638] sm:$0xff]
    %v1653 = vld [vmem:[#allocation9 + $0x2640] sm:$0xff]
    %v1654 = vld [vmem:[#allocation9 + $0x2648] sm:$0xff]
    %v1655 = vld [vmem:[#allocation9 + $0x2650] sm:$0xff]
    %v1656 = vld [vmem:[#allocation9 + $0x2658] sm:$0xff]
    %v1657 = vld [vmem:[#allocation9 + $0x2660] sm:$0xff]
    %v1658 = vld [vmem:[#allocation9 + $0x2668] sm:$0xff]
    %v1659 = vld [vmem:[#allocation9 + $0x2670] sm:$0xff]
    %v1660 = vld [vmem:[#allocation9 + $0x2678] sm:$0xff]
    %v1661 = vld [vmem:[#allocation9 + $0x2680] sm:$0xff]
    %v1662 = vld [vmem:[#allocation9 + $0x2688] sm:$0xff]
    %v1663 = vld [vmem:[#allocation9 + $0x2690] sm:$0xff]
    %v1664 = vld [vmem:[#allocation9 + $0x2698] sm:$0xff]
    %v1665 = vld [vmem:[#allocation9 + $0x26a0] sm:$0xff]
    %v1666 = vld [vmem:[#allocation9 + $0x26a8] sm:$0xff]
    %v1667 = vld [vmem:[#allocation9 + $0x26b0] sm:$0xff]
    %v1668 = vld [vmem:[#allocation9 + $0x26b8] sm:$0xff]
    %v1669 = vld [vmem:[#allocation9 + $0x26c0] sm:$0xff]
    %v1670 = vld [vmem:[#allocation9 + $0x26c8] sm:$0xff]
    %v1671 = vld [vmem:[#allocation9 + $0x26d0] sm:$0xff]
    %v1672 = vld [vmem:[#allocation9 + $0x26d8] sm:$0xff]
    %v1673 = vld [vmem:[#allocation9 + $0x26e0] sm:$0xff]
    %v1674 = vld [vmem:[#allocation9 + $0x26e8] sm:$0xff]
    %v1675 = vld [vmem:[#allocation9 + $0x26f0] sm:$0xff]
    %v1676 = vld [vmem:[#allocation9 + $0x26f8] sm:$0xff]
    %v1677 = vld [vmem:[#allocation9 + $0x2700] sm:$0xff]
    %v1678 = vld [vmem:[#allocation9 + $0x2708] sm:$0xff]
    %v1679 = vld [vmem:[#allocation9 + $0x2710] sm:$0xff]
    %v1680 = vld [vmem:[#allocation9 + $0x2718] sm:$0xff]
    %v1681 = vld [vmem:[#allocation9 + $0x2720] sm:$0xff]
    %v1682 = vld [vmem:[#allocation9 + $0x2728] sm:$0xff]
    %v1683 = vld [vmem:[#allocation9 + $0x2730] sm:$0xff]
    %v1684 = vld [vmem:[#allocation9 + $0x2738] sm:$0xff]
    %v1685 = vld [vmem:[#allocation9 + $0x2740] sm:$0xff]
    %v1686 = vld [vmem:[#allocation9 + $0x2748] sm:$0xff]
    %v1687 = vld [vmem:[#allocation9 + $0x2750] sm:$0xff]
    %v1688 = vld [vmem:[#allocation9 + $0x2758] sm:$0xff]
    %v1689 = vld [vmem:[#allocation9 + $0x2760] sm:$0xff]
    %v1690 = vld [vmem:[#allocation9 + $0x2768] sm:$0xff]
    %v1691 = vld [vmem:[#allocation9 + $0x2770] sm:$0xff]
    %v1692 = vld [vmem:[#allocation9 + $0x2778] sm:$0xff]
    %v1693 = vld [vmem:[#allocation9 + $0x2780] sm:$0xff]
    %v1694 = vld [vmem:[#allocation9 + $0x2788] sm:$0xff]
    %v1695 = vld [vmem:[#allocation9 + $0x2790] sm:$0xff]
    %v1696 = vld [vmem:[#allocation9 + $0x2798] sm:$0xff]
    %v1697 = vld [vmem:[#allocation9 + $0x27a0] sm:$0xff]
    %v1698 = vld [vmem:[#allocation9 + $0x27a8] sm:$0xff]
    %v1699 = vld [vmem:[#allocation9 + $0x27b0] sm:$0xff]
    %v1700 = vld [vmem:[#allocation9 + $0x27b8] sm:$0xff]
    %v1701 = vld [vmem:[#allocation9 + $0x27c0] sm:$0xff]
    %v1702 = vld [vmem:[#allocation9 + $0x27c8] sm:$0xff]
    %v1703 = vld [vmem:[#allocation9 + $0x27d0] sm:$0xff]
    %v1704 = vld [vmem:[#allocation9 + $0x27d8] sm:$0xff]
    %v1705 = vld [vmem:[#allocation9 + $0x27e0] sm:$0xff]
    %v1706 = vld [vmem:[#allocation9 + $0x27e8] sm:$0xff]
    %v1707 = vld [vmem:[#allocation9 + $0x27f0] sm:$0xff]
    %v1708 = vld [vmem:[#allocation9 + $0x27f8] sm:$0xff]
    %v1709 = vld [vmem:[#allocation9 + $0x2800] sm:$0xff]
    %v1710 = vld [vmem:[#allocation9 + $0x2808] sm:$0xff]
    %v1711 = vld [vmem:[#allocation9 + $0x2810] sm:$0xff]
    %v1712 = vld [vmem:[#allocation9 + $0x2818] sm:$0xff]
    %v1713 = vld [vmem:[#allocation9 + $0x2820] sm:$0xff]
    %v1714 = vld [vmem:[#allocation9 + $0x2828] sm:$0xff]
    %v1715 = vld [vmem:[#allocation9 + $0x2830] sm:$0xff]
    %v1716 = vld [vmem:[#allocation9 + $0x2838] sm:$0xff]
    %v1717 = vld [vmem:[#allocation9 + $0x2840] sm:$0xff]
    %v1718 = vld [vmem:[#allocation9 + $0x2848] sm:$0xff]
    %v1719 = vld [vmem:[#allocation9 + $0x2850] sm:$0xff]
    %v1720 = vld [vmem:[#allocation9 + $0x2858] sm:$0xff]
    %v1721 = vld [vmem:[#allocation9 + $0x2860] sm:$0xff]
    %v1722 = vld [vmem:[#allocation9 + $0x2868] sm:$0xff]
    %v1723 = vld [vmem:[#allocation9 + $0x2870] sm:$0xff]
    %v1724 = vld [vmem:[#allocation9 + $0x2878] sm:$0xff]
    %v1725 = vld [vmem:[#allocation9 + $0x2880] sm:$0xff]
    %v1726 = vld [vmem:[#allocation9 + $0x2888] sm:$0xff]
    %v1727 = vld [vmem:[#allocation9 + $0x2890] sm:$0xff]
    %v1728 = vld [vmem:[#allocation9 + $0x2898] sm:$0xff]
    %v1729 = vld [vmem:[#allocation9 + $0x28a0] sm:$0xff]
    %v1730 = vld [vmem:[#allocation9 + $0x28a8] sm:$0xff]
    %v1731 = vld [vmem:[#allocation9 + $0x28b0] sm:$0xff]
    %v1732 = vld [vmem:[#allocation9 + $0x28b8] sm:$0xff]
    %v1733 = vld [vmem:[#allocation9 + $0x28c0] sm:$0xff]
    %v1734 = vld [vmem:[#allocation9 + $0x28c8] sm:$0xff]
    %v1735 = vld [vmem:[#allocation9 + $0x28d0] sm:$0xff]
    %v1736 = vld [vmem:[#allocation9 + $0x28d8] sm:$0xff]
    %v1737 = vld [vmem:[#allocation9 + $0x28e0] sm:$0xff]
    %v1738 = vld [vmem:[#allocation9 + $0x28e8] sm:$0xff]
    %v1739 = vld [vmem:[#allocation9 + $0x28f0] sm:$0xff]
    %v1740 = vld [vmem:[#allocation9 + $0x28f8] sm:$0xff]
    %v1741 = vld [vmem:[#allocation9 + $0x2900] sm:$0xff]
    %v1742 = vld [vmem:[#allocation9 + $0x2908] sm:$0xff]
    %v1743 = vld [vmem:[#allocation9 + $0x2910] sm:$0xff]
    %v1744 = vld [vmem:[#allocation9 + $0x2918] sm:$0xff]
    %v1745 = vld [vmem:[#allocation9 + $0x2920] sm:$0xff]
    %v1746 = vld [vmem:[#allocation9 + $0x2928] sm:$0xff]
    %v1747 = vld [vmem:[#allocation9 + $0x2930] sm:$0xff]
    %v1748 = vld [vmem:[#allocation9 + $0x2938] sm:$0xff]
    %v1749 = vld [vmem:[#allocation9 + $0x2940] sm:$0xff]
    %v1750 = vld [vmem:[#allocation9 + $0x2948] sm:$0xff]
    %v1751 = vld [vmem:[#allocation9 + $0x2950] sm:$0xff]
    %v1752 = vld [vmem:[#allocation9 + $0x2958] sm:$0xff]
    %v1753 = vld [vmem:[#allocation9 + $0x2960] sm:$0xff]
    %v1754 = vld [vmem:[#allocation9 + $0x2968] sm:$0xff]
    %v1755 = vld [vmem:[#allocation9 + $0x2970] sm:$0xff]
    %v1756 = vld [vmem:[#allocation9 + $0x2978] sm:$0xff]
    %v1757 = vld [vmem:[#allocation9 + $0x2980] sm:$0xff]
    %v1758 = vld [vmem:[#allocation9 + $0x2988] sm:$0xff]
    %v1759 = vld [vmem:[#allocation9 + $0x2990] sm:$0xff]
    %v1760 = vld [vmem:[#allocation9 + $0x2998] sm:$0xff]
    %v1761 = vld [vmem:[#allocation9 + $0x29a0] sm:$0xff]
    %v1762 = vld [vmem:[#allocation9 + $0x29a8] sm:$0xff]
    %v1763 = vld [vmem:[#allocation9 + $0x29b0] sm:$0xff]
    %v1764 = vld [vmem:[#allocation9 + $0x29b8] sm:$0xff]
    %v1765 = vld [vmem:[#allocation9 + $0x29c0] sm:$0xff]
    %v1766 = vld [vmem:[#allocation9 + $0x29c8] sm:$0xff]
    %v1767 = vld [vmem:[#allocation9 + $0x29d0] sm:$0xff]
    %v1768 = vld [vmem:[#allocation9 + $0x29d8] sm:$0xff]
    %v1769 = vld [vmem:[#allocation9 + $0x29e0] sm:$0xff]
    %v1770 = vld [vmem:[#allocation9 + $0x29e8] sm:$0xff]
    %v1771 = vld [vmem:[#allocation9 + $0x29f0] sm:$0xff]
    %v1772 = vld [vmem:[#allocation9 + $0x29f8] sm:$0xff]
    %v1773 = vld [vmem:[#allocation9 + $0x2a00] sm:$0xff]
    %v1774 = vld [vmem:[#allocation9 + $0x2a08] sm:$0xff]
    %v1775 = vld [vmem:[#allocation9 + $0x2a10] sm:$0xff]
    %v1776 = vld [vmem:[#allocation9 + $0x2a18] sm:$0xff]
    %v1777 = vld [vmem:[#allocation9 + $0x2a20] sm:$0xff]
    %v1778 = vld [vmem:[#allocation9 + $0x2a28] sm:$0xff]
    %v1779 = vld [vmem:[#allocation9 + $0x2a30] sm:$0xff]
    %v1780 = vld [vmem:[#allocation9 + $0x2a38] sm:$0xff]
    %v1781 = vld [vmem:[#allocation9 + $0x2a40] sm:$0xff]
    %v1782 = vld [vmem:[#allocation9 + $0x2a48] sm:$0xff]
    %v1783 = vld [vmem:[#allocation9 + $0x2a50] sm:$0xff]
    %v1784 = vld [vmem:[#allocation9 + $0x2a58] sm:$0xff]
    %v1785 = vld [vmem:[#allocation9 + $0x2a60] sm:$0xff]
    %v1786 = vld [vmem:[#allocation9 + $0x2a68] sm:$0xff]
    %v1787 = vld [vmem:[#allocation9 + $0x2a70] sm:$0xff]
    %v1788 = vld [vmem:[#allocation9 + $0x2a78] sm:$0xff]
    %v1789 = vld [vmem:[#allocation9 + $0x2a80] sm:$0xff]
    %v1790 = vld [vmem:[#allocation9 + $0x2a88] sm:$0xff]
    %v1791 = vld [vmem:[#allocation9 + $0x2a90] sm:$0xff]
    %v1792 = vld [vmem:[#allocation9 + $0x2a98] sm:$0xff]
    %v1793 = vld [vmem:[#allocation9 + $0x2aa0] sm:$0xff]
    %v1794 = vld [vmem:[#allocation9 + $0x2aa8] sm:$0xff]
    %v1795 = vld [vmem:[#allocation9 + $0x2ab0] sm:$0xff]
    %v1796 = vld [vmem:[#allocation9 + $0x2ab8] sm:$0xff]
    %v1797 = vld [vmem:[#allocation9 + $0x2ac0] sm:$0xff]
    %v1798 = vld [vmem:[#allocation9 + $0x2ac8] sm:$0xff]
    %v1799 = vld [vmem:[#allocation9 + $0x2ad0] sm:$0xff]
    %v1800 = vld [vmem:[#allocation9 + $0x2ad8] sm:$0xff]
    %v1801 = vld [vmem:[#allocation9 + $0x2ae0] sm:$0xff]
    %v1802 = vld [vmem:[#allocation9 + $0x2ae8] sm:$0xff]
    %v1803 = vld [vmem:[#allocation9 + $0x2af0] sm:$0xff]
    %v1804 = vld [vmem:[#allocation9 + $0x2af8] sm:$0xff]
    %v1805 = vld [vmem:[#allocation9 + $0x2b00] sm:$0xff]
    %v1806 = vld [vmem:[#allocation9 + $0x2b08] sm:$0xff]
    %v1807 = vld [vmem:[#allocation9 + $0x2b10] sm:$0xff]
    %v1808 = vld [vmem:[#allocation9 + $0x2b18] sm:$0xff]
    %v1809 = vld [vmem:[#allocation9 + $0x2b20] sm:$0xff]
    %v1810 = vld [vmem:[#allocation9 + $0x2b28] sm:$0xff]
    %v1811 = vld [vmem:[#allocation9 + $0x2b30] sm:$0xff]
    %v1812 = vld [vmem:[#allocation9 + $0x2b38] sm:$0xff]
    %v1813 = vld [vmem:[#allocation9 + $0x2b40] sm:$0xff]
    %v1814 = vld [vmem:[#allocation9 + $0x2b48] sm:$0xff]
    %v1815 = vld [vmem:[#allocation9 + $0x2b50] sm:$0xff]
    %v1816 = vld [vmem:[#allocation9 + $0x2b58] sm:$0xff]
    %v1817 = vld [vmem:[#allocation9 + $0x2b60] sm:$0xff]
    %v1818 = vld [vmem:[#allocation9 + $0x2b68] sm:$0xff]
    %v1819 = vld [vmem:[#allocation9 + $0x2b70] sm:$0xff]
    %v1820 = vld [vmem:[#allocation9 + $0x2b78] sm:$0xff]
    %v1821 = vld [vmem:[#allocation9 + $0x2b80] sm:$0xff]
    %v1822 = vld [vmem:[#allocation9 + $0x2b88] sm:$0xff]
    %v1823 = vld [vmem:[#allocation9 + $0x2b90] sm:$0xff]
    %v1824 = vld [vmem:[#allocation9 + $0x2b98] sm:$0xff]
    %v1825 = vld [vmem:[#allocation9 + $0x2ba0] sm:$0xff]
    %v1826 = vld [vmem:[#allocation9 + $0x2ba8] sm:$0xff]
    %v1827 = vld [vmem:[#allocation9 + $0x2bb0] sm:$0xff]
    %v1828 = vld [vmem:[#allocation9 + $0x2bb8] sm:$0xff]
    %v1829 = vld [vmem:[#allocation9 + $0x2bc0] sm:$0xff]
    %v1830 = vld [vmem:[#allocation9 + $0x2bc8] sm:$0xff]
    %v1831 = vld [vmem:[#allocation9 + $0x2bd0] sm:$0xff]
    %v1832 = vld [vmem:[#allocation9 + $0x2bd8] sm:$0xff]
    %v1833 = vld [vmem:[#allocation9 + $0x2be0] sm:$0xff]
    %v1834 = vld [vmem:[#allocation9 + $0x2be8] sm:$0xff]
    %v1835 = vld [vmem:[#allocation9 + $0x2bf0] sm:$0xff]
    %v1836 = vld [vmem:[#allocation9 + $0x2bf8] sm:$0xff]
    %v1837 = vld [vmem:[#allocation9 + $0x2c00] sm:$0xff]
    %v1838 = vld [vmem:[#allocation9 + $0x2c08] sm:$0xff]
    %v1839 = vld [vmem:[#allocation9 + $0x2c10] sm:$0xff]
    %v1840 = vld [vmem:[#allocation9 + $0x2c18] sm:$0xff]
    %v1841 = vld [vmem:[#allocation9 + $0x2c20] sm:$0xff]
    %v1842 = vld [vmem:[#allocation9 + $0x2c28] sm:$0xff]
    %v1843 = vld [vmem:[#allocation9 + $0x2c30] sm:$0xff]
    %v1844 = vld [vmem:[#allocation9 + $0x2c38] sm:$0xff]
    %v1845 = vld [vmem:[#allocation9 + $0x2c40] sm:$0xff]
    %v1846 = vld [vmem:[#allocation9 + $0x2c48] sm:$0xff]
    %v1847 = vld [vmem:[#allocation9 + $0x2c50] sm:$0xff]
    %v1848 = vld [vmem:[#allocation9 + $0x2c58] sm:$0xff]
    %v1849 = vld [vmem:[#allocation9 + $0x2c60] sm:$0xff]
    %v1850 = vld [vmem:[#allocation9 + $0x2c68] sm:$0xff]
    %v1851 = vld [vmem:[#allocation9 + $0x2c70] sm:$0xff]
    %v1852 = vld [vmem:[#allocation9 + $0x2c78] sm:$0xff]
    %v1853 = vld [vmem:[#allocation9 + $0x2c80] sm:$0xff]
    %v1854 = vld [vmem:[#allocation9 + $0x2c88] sm:$0xff]
    %v1855 = vld [vmem:[#allocation9 + $0x2c90] sm:$0xff]
    %v1856 = vld [vmem:[#allocation9 + $0x2c98] sm:$0xff]
    %v1857 = vld [vmem:[#allocation9 + $0x2ca0] sm:$0xff]
    %v1858 = vld [vmem:[#allocation9 + $0x2ca8] sm:$0xff]
    %v1859 = vld [vmem:[#allocation9 + $0x2cb0] sm:$0xff]
    %v1860 = vld [vmem:[#allocation9 + $0x2cb8] sm:$0xff]
    %v1861 = vld [vmem:[#allocation9 + $0x2cc0] sm:$0xff]
    %v1862 = vld [vmem:[#allocation9 + $0x2cc8] sm:$0xff]
    %v1863 = vld [vmem:[#allocation9 + $0x2cd0] sm:$0xff]
    %v1864 = vld [vmem:[#allocation9 + $0x2cd8] sm:$0xff]
    %v1865 = vld [vmem:[#allocation9 + $0x2ce0] sm:$0xff]
    %v1866 = vld [vmem:[#allocation9 + $0x2ce8] sm:$0xff]
    %v1867 = vld [vmem:[#allocation9 + $0x2cf0] sm:$0xff]
    %v1868 = vld [vmem:[#allocation9 + $0x2cf8] sm:$0xff]
    %v1869 = vld [vmem:[#allocation9 + $0x2d00] sm:$0xff]
    %v1870 = vld [vmem:[#allocation9 + $0x2d08] sm:$0xff]
    %v1871 = vld [vmem:[#allocation9 + $0x2d10] sm:$0xff]
    %v1872 = vld [vmem:[#allocation9 + $0x2d18] sm:$0xff]
    %v1873 = vld [vmem:[#allocation9 + $0x2d20] sm:$0xff]
    %v1874 = vld [vmem:[#allocation9 + $0x2d28] sm:$0xff]
    %v1875 = vld [vmem:[#allocation9 + $0x2d30] sm:$0xff]
    %v1876 = vld [vmem:[#allocation9 + $0x2d38] sm:$0xff]
    %v1877 = vld [vmem:[#allocation9 + $0x2d40] sm:$0xff]
    %v1878 = vld [vmem:[#allocation9 + $0x2d48] sm:$0xff]
    %v1879 = vld [vmem:[#allocation9 + $0x2d50] sm:$0xff]
    %v1880 = vld [vmem:[#allocation9 + $0x2d58] sm:$0xff]
    %v1881 = vld [vmem:[#allocation9 + $0x2d60] sm:$0xff]
    %v1882 = vld [vmem:[#allocation9 + $0x2d68] sm:$0xff]
    %v1883 = vld [vmem:[#allocation9 + $0x2d70] sm:$0xff]
    %v1884 = vld [vmem:[#allocation9 + $0x2d78] sm:$0xff]
    %v1885 = vld [vmem:[#allocation9 + $0x2d80] sm:$0xff]
    %v1886 = vld [vmem:[#allocation9 + $0x2d88] sm:$0xff]
    %v1887 = vld [vmem:[#allocation9 + $0x2d90] sm:$0xff]
    %v1888 = vld [vmem:[#allocation9 + $0x2d98] sm:$0xff]
    %v1889 = vld [vmem:[#allocation9 + $0x2da0] sm:$0xff]
    %v1890 = vld [vmem:[#allocation9 + $0x2da8] sm:$0xff]
    %v1891 = vld [vmem:[#allocation9 + $0x2db0] sm:$0xff]
    %v1892 = vld [vmem:[#allocation9 + $0x2db8] sm:$0xff]
    %v1893 = vld [vmem:[#allocation9 + $0x2dc0] sm:$0xff]
    %v1894 = vld [vmem:[#allocation9 + $0x2dc8] sm:$0xff]
    %v1895 = vld [vmem:[#allocation9 + $0x2dd0] sm:$0xff]
    %v1896 = vld [vmem:[#allocation9 + $0x2dd8] sm:$0xff]
    %v1897 = vld [vmem:[#allocation9 + $0x2de0] sm:$0xff]
    %v1898 = vld [vmem:[#allocation9 + $0x2de8] sm:$0xff]
    %v1899 = vld [vmem:[#allocation9 + $0x2df0] sm:$0xff]
    %v1900 = vld [vmem:[#allocation9 + $0x2df8] sm:$0xff]
    %v1901 = vld [vmem:[#allocation9 + $0x2e00] sm:$0xff]
    %v1902 = vld [vmem:[#allocation9 + $0x2e08] sm:$0xff]
    %v1903 = vld [vmem:[#allocation9 + $0x2e10] sm:$0xff]
    %v1904 = vld [vmem:[#allocation9 + $0x2e18] sm:$0xff]
    %v1905 = vld [vmem:[#allocation9 + $0x2e20] sm:$0xff]
    %v1906 = vld [vmem:[#allocation9 + $0x2e28] sm:$0xff]
    %v1907 = vld [vmem:[#allocation9 + $0x2e30] sm:$0xff]
    %v1908 = vld [vmem:[#allocation9 + $0x2e38] sm:$0xff]
    %v1909 = vld [vmem:[#allocation9 + $0x2e40] sm:$0xff]
    %v1910 = vld [vmem:[#allocation9 + $0x2e48] sm:$0xff]
    %v1911 = vld [vmem:[#allocation9 + $0x2e50] sm:$0xff]
    %v1912 = vld [vmem:[#allocation9 + $0x2e58] sm:$0xff]
    %v1913 = vld [vmem:[#allocation9 + $0x2e60] sm:$0xff]
    %v1914 = vld [vmem:[#allocation9 + $0x2e68] sm:$0xff]
    %v1915 = vld [vmem:[#allocation9 + $0x2e70] sm:$0xff]
    %v1916 = vld [vmem:[#allocation9 + $0x2e78] sm:$0xff]
    %v1917 = vld [vmem:[#allocation9 + $0x2e80] sm:$0xff]
    %v1918 = vld [vmem:[#allocation9 + $0x2e88] sm:$0xff]
    %v1919 = vld [vmem:[#allocation9 + $0x2e90] sm:$0xff]
    %v1920 = vld [vmem:[#allocation9 + $0x2e98] sm:$0xff]
    %v1921 = vld [vmem:[#allocation9 + $0x2ea0] sm:$0xff]
    %v1922 = vld [vmem:[#allocation9 + $0x2ea8] sm:$0xff]
    %v1923 = vld [vmem:[#allocation9 + $0x2eb0] sm:$0xff]
    %v1924 = vld [vmem:[#allocation9 + $0x2eb8] sm:$0xff]
    %v1925 = vld [vmem:[#allocation9 + $0x2ec0] sm:$0xff]
    %v1926 = vld [vmem:[#allocation9 + $0x2ec8] sm:$0xff]
    %v1927 = vld [vmem:[#allocation9 + $0x2ed0] sm:$0xff]
    %v1928 = vld [vmem:[#allocation9 + $0x2ed8] sm:$0xff]
    %v1929 = vld [vmem:[#allocation9 + $0x2ee0] sm:$0xff]
    %v1930 = vld [vmem:[#allocation9 + $0x2ee8] sm:$0xff]
    %v1931 = vld [vmem:[#allocation9 + $0x2ef0] sm:$0xff]
    %v1932 = vld [vmem:[#allocation9 + $0x2ef8] sm:$0xff]
    %v1933 = vld [vmem:[#allocation9 + $0x2f00] sm:$0xff]
    %v1934 = vld [vmem:[#allocation9 + $0x2f08] sm:$0xff]
    %v1935 = vld [vmem:[#allocation9 + $0x2f10] sm:$0xff]
    %v1936 = vld [vmem:[#allocation9 + $0x2f18] sm:$0xff]
    %v1937 = vld [vmem:[#allocation9 + $0x2f20] sm:$0xff]
    %v1938 = vld [vmem:[#allocation9 + $0x2f28] sm:$0xff]
    %v1939 = vld [vmem:[#allocation9 + $0x2f30] sm:$0xff]
    %v1940 = vld [vmem:[#allocation9 + $0x2f38] sm:$0xff]
    %v1941 = vld [vmem:[#allocation9 + $0x2f40] sm:$0xff]
    %v1942 = vld [vmem:[#allocation9 + $0x2f48] sm:$0xff]
    %v1943 = vld [vmem:[#allocation9 + $0x2f50] sm:$0xff]
    %v1944 = vld [vmem:[#allocation9 + $0x2f58] sm:$0xff]
    %v1945 = vld [vmem:[#allocation9 + $0x2f60] sm:$0xff]
    %v1946 = vld [vmem:[#allocation9 + $0x2f68] sm:$0xff]
    %v1947 = vld [vmem:[#allocation9 + $0x2f70] sm:$0xff]
    %v1948 = vld [vmem:[#allocation9 + $0x2f78] sm:$0xff]
    %v1949 = vld [vmem:[#allocation9 + $0x2f80] sm:$0xff]
    %v1950 = vld [vmem:[#allocation9 + $0x2f88] sm:$0xff]
    %v1951 = vld [vmem:[#allocation9 + $0x2f90] sm:$0xff]
    %v1952 = vld [vmem:[#allocation9 + $0x2f98] sm:$0xff]
    %v1953 = vld [vmem:[#allocation9 + $0x2fa0] sm:$0xff]
    %v1954 = vld [vmem:[#allocation9 + $0x2fa8] sm:$0xff]
    %v1955 = vld [vmem:[#allocation9 + $0x2fb0] sm:$0xff]
    %v1956 = vld [vmem:[#allocation9 + $0x2fb8] sm:$0xff]
    %v1957 = vld [vmem:[#allocation9 + $0x2fc0] sm:$0xff]
    %v1958 = vld [vmem:[#allocation9 + $0x2fc8] sm:$0xff]
    %v1959 = vld [vmem:[#allocation9 + $0x2fd0] sm:$0xff]
    %v1960 = vld [vmem:[#allocation9 + $0x2fd8] sm:$0xff]
    %v1961 = vld [vmem:[#allocation9 + $0x2fe0] sm:$0xff]
    %v1962 = vld [vmem:[#allocation9 + $0x2fe8] sm:$0xff]
    %v1963 = vld [vmem:[#allocation9 + $0x2ff0] sm:$0xff]
    %v1964 = vld [vmem:[#allocation9 + $0x2ff8] sm:$0xff]
    %v1965 = vld [vmem:[#allocation10] sm:$0x3f]
    %v1967 = vlaneseq
    %v1968 = vshrl.u32 %v1967, 7
    %v1969 = vsub.s32 0, %v1968
    %v1970 = vrot.slane %v1965, %v1969
    %v1971 = vlaneseq
    %v1972 = vshrl.u32 %v1971, 7
    %v1973 = vsub.s32 1, %v1972
    %v1974 = vrot.slane %v1965, %v1973
    %v1975 = vlaneseq
    %v1976 = vshrl.u32 %v1975, 7
    %v1977 = vsub.s32 2, %v1976
    %v1978 = vrot.slane %v1965, %v1977
    %v1979 = vlaneseq
    %v1980 = vshrl.u32 %v1979, 7
    %v1981 = vsub.s32 3, %v1980
    %v1982 = vrot.slane %v1965, %v1981
    %v1983 = vlaneseq
    %v1984 = vshrl.u32 %v1983, 7
    %v1985 = vsub.s32 4, %v1984
    %v1986 = vrot.slane %v1965, %v1985
    %v1987 = vlaneseq
    %v1988 = vshrl.u32 %v1987, 7
    %v1989 = vsub.s32 5, %v1988
    %v1990 = vrot.slane %v1965, %v1989
    %v2001 = vcombine.high %v425, %v425
    %v2003 = vunpack.c.l.s4 1983009808
    %v2004 = vunpack.c.0.s8 %v2003
    %v2005 = vlaneseq
    %v2006 = vshrl.u32 %v2005, 7
    %v2007 = vsub.s32 %v2004, %v2006
    %v2008 = vrot.slane %v425, %v2007
    %v2010 = vunpack.c.l.s4 1983009808
    %v2011 = vunpack.c.0.s8 %v2010
    %v2012 = vlaneseq
    %v2013 = vshrl.u32 %v2012, 7
    %v2014 = vsub.s32 %v2011, %v2013
    %v2015 = vrot.slane %v2001, %v2014
    %v2016 = vcombine.high %v2008, %v2008
    %v2017 = vcombine.high %v2015, %v2015
    %v2018 = vcombine.high %v426, %v426
    %v2020 = vunpack.c.l.s4 1983009808
    %v2021 = vunpack.c.0.s8 %v2020
    %v2022 = vlaneseq
    %v2023 = vshrl.u32 %v2022, 7
    %v2024 = vsub.s32 %v2021, %v2023
    %v2025 = vrot.slane %v426, %v2024
    %v2027 = vunpack.c.l.s4 1983009808
    %v2028 = vunpack.c.0.s8 %v2027
    %v2029 = vlaneseq
    %v2030 = vshrl.u32 %v2029, 7
    %v2031 = vsub.s32 %v2028, %v2030
    %v2032 = vrot.slane %v2018, %v2031
    %v2033 = vcombine.high %v2025, %v2025
    %v2034 = vcombine.high %v2032, %v2032
    %v2035 = vcombine.high %v427, %v427
    %v2037 = vunpack.c.l.s4 1983009808
    %v2038 = vunpack.c.0.s8 %v2037
    %v2039 = vlaneseq
    %v2040 = vshrl.u32 %v2039, 7
    %v2041 = vsub.s32 %v2038, %v2040
    %v2042 = vrot.slane %v427, %v2041
    %v2044 = vunpack.c.l.s4 1983009808
    %v2045 = vunpack.c.0.s8 %v2044
    %v2046 = vlaneseq
    %v2047 = vshrl.u32 %v2046, 7
    %v2048 = vsub.s32 %v2045, %v2047
    %v2049 = vrot.slane %v2035, %v2048
    %v2050 = vcombine.high %v2042, %v2042
    %v2051 = vcombine.high %v2049, %v2049
    %v2052 = vcombine.high %v428, %v428
    %v2054 = vunpack.c.l.s4 1983009808
    %v2055 = vunpack.c.0.s8 %v2054
    %v2056 = vlaneseq
    %v2057 = vshrl.u32 %v2056, 7
    %v2058 = vsub.s32 %v2055, %v2057
    %v2059 = vrot.slane %v428, %v2058
    %v2061 = vunpack.c.l.s4 1983009808
    %v2062 = vunpack.c.0.s8 %v2061
    %v2063 = vlaneseq
    %v2064 = vshrl.u32 %v2063, 7
    %v2065 = vsub.s32 %v2062, %v2064
    %v2066 = vrot.slane %v2052, %v2065
    %v2067 = vcombine.high %v2059, %v2059
    %v2068 = vcombine.high %v2066, %v2066
    %2085 = vmatprep.subr.mxu0 %v430
    %2086 = vmatpush1.msra.mxu0 %v429
    %2087 = vmatprep.subr.mxu0 %v436
    %2088 = vmatpush1.msra.mxu0 %v435
    %2089 = vmatprep.subr.mxu0 %v442
    %2090 = vmatpush1.msra.mxu0 %v441
    %2091 = vmatprep.subr.mxu0 %v448
    %2092 = vmatpush1.msra.mxu0 %v447
    %2093 = vmatprep.subr.mxu0 %v454
    %2094 = vmatpush1.msra.mxu0 %v453
    %2095 = vmatprep.subr.mxu0 %v460
    %2096 = vmatpush1.msra.mxu0 %v459
    %2097 = vmatprep.subr.mxu0 %v466
    %2098 = vmatpush1.msra.mxu0 %v465
    %2099 = vmatprep.subr.mxu0 %v472
    %2100 = vmatpush1.msra.mxu0 %v471
    %2101 = vmatprep.subr.mxu0 %v478
    %2102 = vmatpush1.msra.mxu0 %v477
    %2103 = vmatprep.subr.mxu0 %v484
    %2104 = vmatpush1.msra.mxu0 %v483
    %2105 = vmatprep.subr.mxu0 %v490
    %2106 = vmatpush1.msra.mxu0 %v489
    %2107 = vmatprep.subr.mxu0 %v496
    %2108 = vmatpush1.msra.mxu0 %v495
    %2109 = vmatprep.subr.mxu0 %v502
    %2110 = vmatpush1.msra.mxu0 %v501
    %2111 = vmatprep.subr.mxu0 %v508
    %2112 = vmatpush1.msra.mxu0 %v507
    %2113 = vmatprep.subr.mxu0 %v514
    %2114 = vmatpush1.msra.mxu0 %v513
    %2115 = vmatprep.subr.mxu0 %v520
    %2116 = vmatpush1.msra.mxu0 %v519
    %2117 = vmatprep.subr.mxu0 %v526
    %2118 = vmatpush1.msra.mxu0 %v525
    %2119 = vmatprep.subr.mxu0 %v532
    %2120 = vmatpush1.msra.mxu0 %v531
    %2121 = vmatprep.subr.mxu0 %v538
    %2122 = vmatpush1.msra.mxu0 %v537
    %2123 = vmatprep.subr.mxu0 %v544
    %2124 = vmatpush1.msra.mxu0 %v543
    %2125 = vmatprep.subr.mxu0 %v550
    %2126 = vmatpush1.msra.mxu0 %v549
    %2127 = vmatprep.subr.mxu0 %v556
    %2128 = vmatpush1.msra.mxu0 %v555
    %2129 = vmatprep.subr.mxu0 %v562
    %2130 = vmatpush1.msra.mxu0 %v561
    %2131 = vmatprep.subr.mxu0 %v568
    %2132 = vmatpush1.msra.mxu0 %v567
    %2133 = vmatprep.subr.mxu0 %v574
    %2134 = vmatpush1.msra.mxu0 %v573
    %2135 = vmatprep.subr.mxu0 %v580
    %2136 = vmatpush1.msra.mxu0 %v579
    %2137 = vmatprep.subr.mxu0 %v586
    %2138 = vmatpush1.msra.mxu0 %v585
    %2139 = vmatprep.subr.mxu0 %v592
    %2140 = vmatpush1.msra.mxu0 %v591
    %2141 = vmatprep.subr.mxu0 %v598
    %2142 = vmatpush1.msra.mxu0 %v597
    %2143 = vmatprep.subr.mxu0 %v604
    %2144 = vmatpush1.msra.mxu0 %v603
    %2145 = vmatprep.subr.mxu0 %v610
    %2146 = vmatpush1.msra.mxu0 %v609
    %2147 = vmatprep.subr.mxu0 %v616
    %2148 = vmatpush1.msra.mxu0 %v615
    %2149 = vmatprep.mubr.f32.mxu0 %v2016
    %2150 = vmatmul.mubr.f32.gmra.mrb[0].mxu0 %v2008
    %v2151 = vpop.f32.mrb[0].mxu0
    %v2152 = vadd.f32 %v1970, %v2151
    %v2153 = vpop.f32.mrb[0].mxu0
    %v2154 = vadd.f32 %v1974, %v2153
    %2155 = vdwg.mxu0
    %2156 = vmatprep.subr.mxu0 %v622
    %2157 = vmatpush1.msra.mxu0 %v621
    %2158 = vmatprep.subr.mxu0 %v628
    %2159 = vmatpush1.msra.mxu0 %v627
    %2160 = vmatprep.subr.mxu0 %v634
    %2161 = vmatpush1.msra.mxu0 %v633
    %2162 = vmatprep.subr.mxu0 %v640
    %2163 = vmatpush1.msra.mxu0 %v639
    %2164 = vmatprep.subr.mxu0 %v646
    %2165 = vmatpush1.msra.mxu0 %v645
    %2166 = vmatprep.subr.mxu0 %v652
    %2167 = vmatpush1.msra.mxu0 %v651
    %2168 = vmatprep.subr.mxu0 %v658
    %2169 = vmatpush1.msra.mxu0 %v657
    %2170 = vmatprep.subr.mxu0 %v664
    %2171 = vmatpush1.msra.mxu0 %v663
    %2172 = vmatprep.subr.mxu0 %v670
    %2173 = vmatpush1.msra.mxu0 %v669
    %2174 = vmatprep.subr.mxu0 %v676
    %2175 = vmatpush1.msra.mxu0 %v675
    %2176 = vmatprep.subr.mxu0 %v682
    %2177 = vmatpush1.msra.mxu0 %v681
    %2178 = vmatprep.subr.mxu0 %v688
    %2179 = vmatpush1.msra.mxu0 %v687
    %2180 = vmatprep.subr.mxu0 %v694
    %2181 = vmatpush1.msra.mxu0 %v693
    %2182 = vmatprep.subr.mxu0 %v700
    %2183 = vmatpush1.msra.mxu0 %v699
    %2184 = vmatprep.subr.mxu0 %v706
    %2185 = vmatpush1.msra.mxu0 %v705
    %2186 = vmatprep.subr.mxu0 %v712
    %2187 = vmatpush1.msra.mxu0 %v711
    %2188 = vmatprep.subr.mxu0 %v718
    %2189 = vmatpush1.msra.mxu0 %v717
    %2190 = vmatprep.subr.mxu0 %v724
    %2191 = vmatpush1.msra.mxu0 %v723
    %2192 = vmatprep.subr.mxu0 %v730
    %2193 = vmatpush1.msra.mxu0 %v729
    %2194 = vmatprep.subr.mxu0 %v736
    %2195 = vmatpush1.msra.mxu0 %v735
    %2196 = vmatprep.subr.mxu0 %v742
    %2197 = vmatpush1.msra.mxu0 %v741
    %2198 = vmatprep.subr.mxu0 %v748
    %2199 = vmatpush1.msra.mxu0 %v747
    %2200 = vmatprep.subr.mxu0 %v754
    %2201 = vmatpush1.msra.mxu0 %v753
    %2202 = vmatprep.subr.mxu0 %v760
    %2203 = vmatpush1.msra.mxu0 %v759
    %2204 = vmatprep.subr.mxu0 %v766
    %2205 = vmatpush1.msra.mxu0 %v765
    %2206 = vmatprep.subr.mxu0 %v772
    %2207 = vmatpush1.msra.mxu0 %v771
    %2208 = vmatprep.subr.mxu0 %v778
    %2209 = vmatpush1.msra.mxu0 %v777
    %2210 = vmatprep.subr.mxu0 %v784
    %2211 = vmatpush1.msra.mxu0 %v783
    %2212 = vmatprep.subr.mxu0 %v790
    %2213 = vmatpush1.msra.mxu0 %v789
    %2214 = vmatprep.subr.mxu0 %v796
    %2215 = vmatpush1.msra.mxu0 %v795
    %2216 = vmatprep.subr.mxu0 %v802
    %2217 = vmatpush1.msra.mxu0 %v801
    %2218 = vmatprep.subr.mxu0 %v808
    %2219 = vmatpush1.msra.mxu0 %v807
    %2220 = vmatprep.mubr.f32.mxu0 %v2017
    %2221 = vmatmul.mubr.f32.gmra.mrb[0].mxu0 %v2015
    %v2222 = vpop.f32.mrb[0].mxu0
    %v2223 = vadd.f32 %v2152, %v2222
    %v2224 = vpop.f32.mrb[0].mxu0
    %v2225 = vadd.f32 %v2154, %v2224
    %2226 = vdwg.mxu0
    %2227 = vmatprep.subr.mxu0 %v814
    %2228 = vmatpush1.msra.mxu0 %v813
    %2229 = vmatprep.subr.mxu0 %v820
    %2230 = vmatpush1.msra.mxu0 %v819
    %2231 = vmatprep.subr.mxu0 %v826
    %2232 = vmatpush1.msra.mxu0 %v825
    %2233 = vmatprep.subr.mxu0 %v832
    %2234 = vmatpush1.msra.mxu0 %v831
    %2235 = vmatprep.subr.mxu0 %v838
    %2236 = vmatpush1.msra.mxu0 %v837
    %2237 = vmatprep.subr.mxu0 %v844
    %2238 = vmatpush1.msra.mxu0 %v843
    %2239 = vmatprep.subr.mxu0 %v850
    %2240 = vmatpush1.msra.mxu0 %v849
    %2241 = vmatprep.subr.mxu0 %v856
    %2242 = vmatpush1.msra.mxu0 %v855
    %2243 = vmatprep.subr.mxu0 %v862
    %2244 = vmatpush1.msra.mxu0 %v861
    %2245 = vmatprep.subr.mxu0 %v868
    %2246 = vmatpush1.msra.mxu0 %v867
    %2247 = vmatprep.subr.mxu0 %v874
    %2248 = vmatpush1.msra.mxu0 %v873
    %2249 = vmatprep.subr.mxu0 %v880
    %2250 = vmatpush1.msra.mxu0 %v879
    %2251 = vmatprep.subr.mxu0 %v886
    %2252 = vmatpush1.msra.mxu0 %v885
    %2253 = vmatprep.subr.mxu0 %v892
    %2254 = vmatpush1.msra.mxu0 %v891
    %2255 = vmatprep.subr.mxu0 %v898
    %2256 = vmatpush1.msra.mxu0 %v897
    %2257 = vmatprep.subr.mxu0 %v904
    %2258 = vmatpush1.msra.mxu0 %v903
    %2259 = vmatprep.subr.mxu0 %v910
    %2260 = vmatpush1.msra.mxu0 %v909
    %2261 = vmatprep.subr.mxu0 %v916
    %2262 = vmatpush1.msra.mxu0 %v915
    %2263 = vmatprep.subr.mxu0 %v922
    %2264 = vmatpush1.msra.mxu0 %v921
    %2265 = vmatprep.subr.mxu0 %v928
    %2266 = vmatpush1.msra.mxu0 %v927
    %2267 = vmatprep.subr.mxu0 %v934
    %2268 = vmatpush1.msra.mxu0 %v933
    %2269 = vmatprep.subr.mxu0 %v940
    %2270 = vmatpush1.msra.mxu0 %v939
    %2271 = vmatprep.subr.mxu0 %v946
    %2272 = vmatpush1.msra.mxu0 %v945
    %2273 = vmatprep.subr.mxu0 %v952
    %2274 = vmatpush1.msra.mxu0 %v951
    %2275 = vmatprep.subr.mxu0 %v958
    %2276 = vmatpush1.msra.mxu0 %v957
    %2277 = vmatprep.subr.mxu0 %v964
    %2278 = vmatpush1.msra.mxu0 %v963
    %2279 = vmatprep.subr.mxu0 %v970
    %2280 = vmatpush1.msra.mxu0 %v969
    %2281 = vmatprep.subr.mxu0 %v976
    %2282 = vmatpush1.msra.mxu0 %v975
    %2283 = vmatprep.subr.mxu0 %v982
    %2284 = vmatpush1.msra.mxu0 %v981
    %2285 = vmatprep.subr.mxu0 %v988
    %2286 = vmatpush1.msra.mxu0 %v987
    %2287 = vmatprep.subr.mxu0 %v994
    %2288 = vmatpush1.msra.mxu0 %v993
    %2289 = vmatprep.subr.mxu0 %v1000
    %2290 = vmatpush1.msra.mxu0 %v999
    %2291 = vmatprep.mubr.f32.mxu0 %v2033
    %2292 = vmatmul.mubr.f32.gmra.mrb[0].mxu0 %v2025
    %v2293 = vpop.f32.mrb[0].mxu0
    %v2294 = vadd.f32 %v2223, %v2293
    %v2295 = vpop.f32.mrb[0].mxu0
    %v2296 = vadd.f32 %v2225, %v2295
    %2297 = vdwg.mxu0
    %2298 = vmatprep.subr.mxu0 %v1006
    %2299 = vmatpush1.msra.mxu0 %v1005
    %2300 = vmatprep.subr.mxu0 %v1012
    %2301 = vmatpush1.msra.mxu0 %v1011
    %2302 = vmatprep.subr.mxu0 %v1018
    %2303 = vmatpush1.msra.mxu0 %v1017
    %2304 = vmatprep.subr.mxu0 %v1024
    %2305 = vmatpush1.msra.mxu0 %v1023
    %2306 = vmatprep.subr.mxu0 %v1030
    %2307 = vmatpush1.msra.mxu0 %v1029
    %2308 = vmatprep.subr.mxu0 %v1036
    %2309 = vmatpush1.msra.mxu0 %v1035
    %2310 = vmatprep.subr.mxu0 %v1042
    %2311 = vmatpush1.msra.mxu0 %v1041
    %2312 = vmatprep.subr.mxu0 %v1048
    %2313 = vmatpush1.msra.mxu0 %v1047
    %2314 = vmatprep.subr.mxu0 %v1054
    %2315 = vmatpush1.msra.mxu0 %v1053
    %2316 = vmatprep.subr.mxu0 %v1060
    %2317 = vmatpush1.msra.mxu0 %v1059
    %2318 = vmatprep.subr.mxu0 %v1066
    %2319 = vmatpush1.msra.mxu0 %v1065
    %2320 = vmatprep.subr.mxu0 %v1072
    %2321 = vmatpush1.msra.mxu0 %v1071
    %2322 = vmatprep.subr.mxu0 %v1078
    %2323 = vmatpush1.msra.mxu0 %v1077
    %2324 = vmatprep.subr.mxu0 %v1084
    %2325 = vmatpush1.msra.mxu0 %v1083
    %2326 = vmatprep.subr.mxu0 %v1090
    %2327 = vmatpush1.msra.mxu0 %v1089
    %2328 = vmatprep.subr.mxu0 %v1096
    %2329 = vmatpush1.msra.mxu0 %v1095
    %2330 = vmatprep.subr.mxu0 %v1102
    %2331 = vmatpush1.msra.mxu0 %v1101
    %2332 = vmatprep.subr.mxu0 %v1108
    %2333 = vmatpush1.msra.mxu0 %v1107
    %2334 = vmatprep.subr.mxu0 %v1114
    %2335 = vmatpush1.msra.mxu0 %v1113
    %2336 = vmatprep.subr.mxu0 %v1120
    %2337 = vmatpush1.msra.mxu0 %v1119
    %2338 = vmatprep.subr.mxu0 %v1126
    %2339 = vmatpush1.msra.mxu0 %v1125
    %2340 = vmatprep.subr.mxu0 %v1132
    %2341 = vmatpush1.msra.mxu0 %v1131
    %2342 = vmatprep.subr.mxu0 %v1138
    %2343 = vmatpush1.msra.mxu0 %v1137
    %2344 = vmatprep.subr.mxu0 %v1144
    %2345 = vmatpush1.msra.mxu0 %v1143
    %2346 = vmatprep.subr.mxu0 %v1150
    %2347 = vmatpush1.msra.mxu0 %v1149
    %2348 = vmatprep.subr.mxu0 %v1156
    %2349 = vmatpush1.msra.mxu0 %v1155
    %2350 = vmatprep.subr.mxu0 %v1162
    %2351 = vmatpush1.msra.mxu0 %v1161
    %2352 = vmatprep.subr.mxu0 %v1168
    %2353 = vmatpush1.msra.mxu0 %v1167
    %2354 = vmatprep.subr.mxu0 %v1174
    %2355 = vmatpush1.msra.mxu0 %v1173
    %2356 = vmatprep.subr.mxu0 %v1180
    %2357 = vmatpush1.msra.mxu0 %v1179
    %2358 = vmatprep.subr.mxu0 %v1186
    %2359 = vmatpush1.msra.mxu0 %v1185
    %2360 = vmatprep.subr.mxu0 %v1192
    %2361 = vmatpush1.msra.mxu0 %v1191
    %2362 = vmatprep.mubr.f32.mxu0 %v2034
    %2363 = vmatmul.mubr.f32.gmra.mrb[0].mxu0 %v2032
    %v2364 = vpop.f32.mrb[0].mxu0
    %v2365 = vadd.f32 %v2294, %v2364
    %v2366 = vpop.f32.mrb[0].mxu0
    %v2367 = vadd.f32 %v2296, %v2366
    %2368 = vdwg.mxu0
    %2369 = vmatprep.subr.mxu0 %v1198
    %2370 = vmatpush1.msra.mxu0 %v1197
    %2371 = vmatprep.subr.mxu0 %v1204
    %2372 = vmatpush1.msra.mxu0 %v1203
    %2373 = vmatprep.subr.mxu0 %v1210
    %2374 = vmatpush1.msra.mxu0 %v1209
    %2375 = vmatprep.subr.mxu0 %v1216
    %2376 = vmatpush1.msra.mxu0 %v1215
    %2377 = vmatprep.subr.mxu0 %v1222
    %2378 = vmatpush1.msra.mxu0 %v1221
    %2379 = vmatprep.subr.mxu0 %v1228
    %2380 = vmatpush1.msra.mxu0 %v1227
    %2381 = vmatprep.subr.mxu0 %v1234
    %2382 = vmatpush1.msra.mxu0 %v1233
    %2383 = vmatprep.subr.mxu0 %v1240
    %2384 = vmatpush1.msra.mxu0 %v1239
    %2385 = vmatprep.subr.mxu0 %v1246
    %2386 = vmatpush1.msra.mxu0 %v1245
    %2387 = vmatprep.subr.mxu0 %v1252
    %2388 = vmatpush1.msra.mxu0 %v1251
    %2389 = vmatprep.subr.mxu0 %v1258
    %2390 = vmatpush1.msra.mxu0 %v1257
    %2391 = vmatprep.subr.mxu0 %v1264
    %2392 = vmatpush1.msra.mxu0 %v1263
    %2393 = vmatprep.subr.mxu0 %v1270
    %2394 = vmatpush1.msra.mxu0 %v1269
    %2395 = vmatprep.subr.mxu0 %v1276
    %2396 = vmatpush1.msra.mxu0 %v1275
    %2397 = vmatprep.subr.mxu0 %v1282
    %2398 = vmatpush1.msra.mxu0 %v1281
    %2399 = vmatprep.subr.mxu0 %v1288
    %2400 = vmatpush1.msra.mxu0 %v1287
    %2401 = vmatprep.subr.mxu0 %v1294
    %2402 = vmatpush1.msra.mxu0 %v1293
    %2403 = vmatprep.subr.mxu0 %v1300
    %2404 = vmatpush1.msra.mxu0 %v1299
    %2405 = vmatprep.subr.mxu0 %v1306
    %2406 = vmatpush1.msra.mxu0 %v1305
    %2407 = vmatprep.subr.mxu0 %v1312
    %2408 = vmatpush1.msra.mxu0 %v1311
    %2409 = vmatprep.subr.mxu0 %v1318
    %2410 = vmatpush1.msra.mxu0 %v1317
    %2411 = vmatprep.subr.mxu0 %v1324
    %2412 = vmatpush1.msra.mxu0 %v1323
    %2413 = vmatprep.subr.mxu0 %v1330
    %2414 = vmatpush1.msra.mxu0 %v1329
    %2415 = vmatprep.subr.mxu0 %v1336
    %2416 = vmatpush1.msra.mxu0 %v1335
    %2417 = vmatprep.subr.mxu0 %v1342
    %2418 = vmatpush1.msra.mxu0 %v1341
    %2419 = vmatprep.subr.mxu0 %v1348
    %2420 = vmatpush1.msra.mxu0 %v1347
    %2421 = vmatprep.subr.mxu0 %v1354
    %2422 = vmatpush1.msra.mxu0 %v1353
    %2423 = vmatprep.subr.mxu0 %v1360
    %2424 = vmatpush1.msra.mxu0 %v1359
    %2425 = vmatprep.subr.mxu0 %v1366
    %2426 = vmatpush1.msra.mxu0 %v1365
    %2427 = vmatprep.subr.mxu0 %v1372
    %2428 = vmatpush1.msra.mxu0 %v1371
    %2429 = vmatprep.subr.mxu0 %v1378
    %2430 = vmatpush1.msra.mxu0 %v1377
    %2431 = vmatprep.subr.mxu0 %v1384
    %2432 = vmatpush1.msra.mxu0 %v1383
    %2433 = vmatprep.mubr.f32.mxu0 %v2050
    %2434 = vmatmul.mubr.f32.gmra.mrb[0].mxu0 %v2042
    %v2435 = vpop.f32.mrb[0].mxu0
    %v2436 = vadd.f32 %v2365, %v2435
    %v2437 = vpop.f32.mrb[0].mxu0
    %v2438 = vadd.f32 %v2367, %v2437
    %2439 = vdwg.mxu0
    %2440 = vmatprep.subr.mxu0 %v1390
    %2441 = vmatpush1.msra.mxu0 %v1389
    %2442 = vmatprep.subr.mxu0 %v1396
    %2443 = vmatpush1.msra.mxu0 %v1395
    %2444 = vmatprep.subr.mxu0 %v1402
    %2445 = vmatpush1.msra.mxu0 %v1401
    %2446 = vmatprep.subr.mxu0 %v1408
    %2447 = vmatpush1.msra.mxu0 %v1407
    %2448 = vmatprep.subr.mxu0 %v1414
    %2449 = vmatpush1.msra.mxu0 %v1413
    %2450 = vmatprep.subr.mxu0 %v1420
    %2451 = vmatpush1.msra.mxu0 %v1419
    %2452 = vmatprep.subr.mxu0 %v1426
    %2453 = vmatpush1.msra.mxu0 %v1425
    %2454 = vmatprep.subr.mxu0 %v1432
    %2455 = vmatpush1.msra.mxu0 %v1431
    %2456 = vmatprep.subr.mxu0 %v1438
    %2457 = vmatpush1.msra.mxu0 %v1437
    %2458 = vmatprep.subr.mxu0 %v1444
    %2459 = vmatpush1.msra.mxu0 %v1443
    %2460 = vmatprep.subr.mxu0 %v1450
    %2461 = vmatpush1.msra.mxu0 %v1449
    %2462 = vmatprep.subr.mxu0 %v1456
    %2463 = vmatpush1.msra.mxu0 %v1455
    %2464 = vmatprep.subr.mxu0 %v1462
    %2465 = vmatpush1.msra.mxu0 %v1461
    %2466 = vmatprep.subr.mxu0 %v1468
    %2467 = vmatpush1.msra.mxu0 %v1467
    %2468 = vmatprep.subr.mxu0 %v1474
    %2469 = vmatpush1.msra.mxu0 %v1473
    %2470 = vmatprep.subr.mxu0 %v1480
    %2471 = vmatpush1.msra.mxu0 %v1479
    %2472 = vmatprep.subr.mxu0 %v1486
    %2473 = vmatpush1.msra.mxu0 %v1485
    %2474 = vmatprep.subr.mxu0 %v1492
    %2475 = vmatpush1.msra.mxu0 %v1491
    %2476 = vmatprep.subr.mxu0 %v1498
    %2477 = vmatpush1.msra.mxu0 %v1497
    %2478 = vmatprep.subr.mxu0 %v1504
    %2479 = vmatpush1.msra.mxu0 %v1503
    %2480 = vmatprep.subr.mxu0 %v1510
    %2481 = vmatpush1.msra.mxu0 %v1509
    %2482 = vmatprep.subr.mxu0 %v1516
    %2483 = vmatpush1.msra.mxu0 %v1515
    %2484 = vmatprep.subr.mxu0 %v1522
    %2485 = vmatpush1.msra.mxu0 %v1521
    %2486 = vmatprep.subr.mxu0 %v1528
    %2487 = vmatpush1.msra.mxu0 %v1527
    %2488 = vmatprep.subr.mxu0 %v1534
    %2489 = vmatpush1.msra.mxu0 %v1533
    %2490 = vmatprep.subr.mxu0 %v1540
    %2491 = vmatpush1.msra.mxu0 %v1539
    %2492 = vmatprep.subr.mxu0 %v1546
    %2493 = vmatpush1.msra.mxu0 %v1545
    %2494 = vmatprep.subr.mxu0 %v1552
    %2495 = vmatpush1.msra.mxu0 %v1551
    %2496 = vmatprep.subr.mxu0 %v1558
    %2497 = vmatpush1.msra.mxu0 %v1557
    %2498 = vmatprep.subr.mxu0 %v1564
    %2499 = vmatpush1.msra.mxu0 %v1563
    %2500 = vmatprep.subr.mxu0 %v1570
    %2501 = vmatpush1.msra.mxu0 %v1569
    %2502 = vmatprep.subr.mxu0 %v1576
    %2503 = vmatpush1.msra.mxu0 %v1575
    %2504 = vmatprep.mubr.f32.mxu0 %v2051
    %2505 = vmatmul.mubr.f32.gmra.mrb[0].mxu0 %v2049
    %v2506 = vpop.f32.mrb[0].mxu0
    %v2507 = vadd.f32 %v2436, %v2506
    %v2508 = vpop.f32.mrb[0].mxu0
    %v2509 = vadd.f32 %v2438, %v2508
    %2510 = vdwg.mxu0
    %2511 = vmatprep.subr.mxu0 %v1582
    %2512 = vmatpush1.msra.mxu0 %v1581
    %2513 = vmatprep.subr.mxu0 %v1588
    %2514 = vmatpush1.msra.mxu0 %v1587
    %2515 = vmatprep.subr.mxu0 %v1594
    %2516 = vmatpush1.msra.mxu0 %v1593
    %2517 = vmatprep.subr.mxu0 %v1600
    %2518 = vmatpush1.msra.mxu0 %v1599
    %2519 = vmatprep.subr.mxu0 %v1606
    %2520 = vmatpush1.msra.mxu0 %v1605
    %2521 = vmatprep.subr.mxu0 %v1612
    %2522 = vmatpush1.msra.mxu0 %v1611
    %2523 = vmatprep.subr.mxu0 %v1618
    %2524 = vmatpush1.msra.mxu0 %v1617
    %2525 = vmatprep.subr.mxu0 %v1624
    %2526 = vmatpush1.msra.mxu0 %v1623
    %2527 = vmatprep.subr.mxu0 %v1630
    %2528 = vmatpush1.msra.mxu0 %v1629
    %2529 = vmatprep.subr.mxu0 %v1636
    %2530 = vmatpush1.msra.mxu0 %v1635
    %2531 = vmatprep.subr.mxu0 %v1642
    %2532 = vmatpush1.msra.mxu0 %v1641
    %2533 = vmatprep.subr.mxu0 %v1648
    %2534 = vmatpush1.msra.mxu0 %v1647
    %2535 = vmatprep.subr.mxu0 %v1654
    %2536 = vmatpush1.msra.mxu0 %v1653
    %2537 = vmatprep.subr.mxu0 %v1660
    %2538 = vmatpush1.msra.mxu0 %v1659
    %2539 = vmatprep.subr.mxu0 %v1666
    %2540 = vmatpush1.msra.mxu0 %v1665
    %2541 = vmatprep.subr.mxu0 %v1672
    %2542 = vmatpush1.msra.mxu0 %v1671
    %2543 = vmatprep.subr.mxu0 %v1678
    %2544 = vmatpush1.msra.mxu0 %v1677
    %2545 = vmatprep.subr.mxu0 %v1684
    %2546 = vmatpush1.msra.mxu0 %v1683
    %2547 = vmatprep.subr.mxu0 %v1690
    %2548 = vmatpush1.msra.mxu0 %v1689
    %2549 = vmatprep.subr.mxu0 %v1696
    %2550 = vmatpush1.msra.mxu0 %v1695
    %2551 = vmatprep.subr.mxu0 %v1702
    %2552 = vmatpush1.msra.mxu0 %v1701
    %2553 = vmatprep.subr.mxu0 %v1708
    %2554 = vmatpush1.msra.mxu0 %v1707
    %2555 = vmatprep.subr.mxu0 %v1714
    %2556 = vmatpush1.msra.mxu0 %v1713
    %2557 = vmatprep.subr.mxu0 %v1720
    %2558 = vmatpush1.msra.mxu0 %v1719
    %2559 = vmatprep.subr.mxu0 %v1726
    %2560 = vmatpush1.msra.mxu0 %v1725
    %2561 = vmatprep.subr.mxu0 %v1732
    %2562 = vmatpush1.msra.mxu0 %v1731
    %2563 = vmatprep.subr.mxu0 %v1738
    %2564 = vmatpush1.msra.mxu0 %v1737
    %2565 = vmatprep.subr.mxu0 %v1744
    %2566 = vmatpush1.msra.mxu0 %v1743
    %2567 = vmatprep.subr.mxu0 %v1750
    %2568 = vmatpush1.msra.mxu0 %v1749
    %2569 = vmatprep.subr.mxu0 %v1756
    %2570 = vmatpush1.msra.mxu0 %v1755
    %2571 = vmatprep.subr.mxu0 %v1762
    %2572 = vmatpush1.msra.mxu0 %v1761
    %2573 = vmatprep.subr.mxu0 %v1768
    %2574 = vmatpush1.msra.mxu0 %v1767
    %2575 = vmatprep.mubr.f32.mxu0 %v2067
    %2576 = vmatmul.mubr.f32.gmra.mrb[0].mxu0 %v2059
    %v2577 = vpop.f32.mrb[0].mxu0
    %v2578 = vadd.f32 %v2507, %v2577
    %v2579 = vpop.f32.mrb[0].mxu0
    %v2580 = vadd.f32 %v2509, %v2579
    %2581 = vdwg.mxu0
    %2582 = vmatprep.subr.mxu0 %v1774
    %2583 = vmatpush1.msra.mxu0 %v1773
    %2584 = vmatprep.subr.mxu0 %v1780
    %2585 = vmatpush1.msra.mxu0 %v1779
    %2586 = vmatprep.subr.mxu0 %v1786
    %2587 = vmatpush1.msra.mxu0 %v1785
    %2588 = vmatprep.subr.mxu0 %v1792
    %2589 = vmatpush1.msra.mxu0 %v1791
    %2590 = vmatprep.subr.mxu0 %v1798
    %2591 = vmatpush1.msra.mxu0 %v1797
    %2592 = vmatprep.subr.mxu0 %v1804
    %2593 = vmatpush1.msra.mxu0 %v1803
    %2594 = vmatprep.subr.mxu0 %v1810
    %2595 = vmatpush1.msra.mxu0 %v1809
    %2596 = vmatprep.subr.mxu0 %v1816
    %2597 = vmatpush1.msra.mxu0 %v1815
    %2598 = vmatprep.subr.mxu0 %v1822
    %2599 = vmatpush1.msra.mxu0 %v1821
    %2600 = vmatprep.subr.mxu0 %v1828
    %2601 = vmatpush1.msra.mxu0 %v1827
    %2602 = vmatprep.subr.mxu0 %v1834
    %2603 = vmatpush1.msra.mxu0 %v1833
    %2604 = vmatprep.subr.mxu0 %v1840
    %2605 = vmatpush1.msra.mxu0 %v1839
    %2606 = vmatprep.subr.mxu0 %v1846
    %2607 = vmatpush1.msra.mxu0 %v1845
    %2608 = vmatprep.subr.mxu0 %v1852
    %2609 = vmatpush1.msra.mxu0 %v1851
    %2610 = vmatprep.subr.mxu0 %v1858
    %2611 = vmatpush1.msra.mxu0 %v1857
    %2612 = vmatprep.subr.mxu0 %v1864
    %2613 = vmatpush1.msra.mxu0 %v1863
    %2614 = vmatprep.subr.mxu0 %v1870
    %2615 = vmatpush1.msra.mxu0 %v1869
    %2616 = vmatprep.subr.mxu0 %v1876
    %2617 = vmatpush1.msra.mxu0 %v1875
    %2618 = vmatprep.subr.mxu0 %v1882
    %2619 = vmatpush1.msra.mxu0 %v1881
    %2620 = vmatprep.subr.mxu0 %v1888
    %2621 = vmatpush1.msra.mxu0 %v1887
    %2622 = vmatprep.subr.mxu0 %v1894
    %2623 = vmatpush1.msra.mxu0 %v1893
    %2624 = vmatprep.subr.mxu0 %v1900
    %2625 = vmatpush1.msra.mxu0 %v1899
    %2626 = vmatprep.subr.mxu0 %v1906
    %2627 = vmatpush1.msra.mxu0 %v1905
    %2628 = vmatprep.subr.mxu0 %v1912
    %2629 = vmatpush1.msra.mxu0 %v1911
    %2630 = vmatprep.subr.mxu0 %v1918
    %2631 = vmatpush1.msra.mxu0 %v1917
    %2632 = vmatprep.subr.mxu0 %v1924
    %2633 = vmatpush1.msra.mxu0 %v1923
    %2634 = vmatprep.subr.mxu0 %v1930
    %2635 = vmatpush1.msra.mxu0 %v1929
    %2636 = vmatprep.subr.mxu0 %v1936
    %2637 = vmatpush1.msra.mxu0 %v1935
    %2638 = vmatprep.subr.mxu0 %v1942
    %2639 = vmatpush1.msra.mxu0 %v1941
    %2640 = vmatprep.subr.mxu0 %v1948
    %2641 = vmatpush1.msra.mxu0 %v1947
    %2642 = vmatprep.subr.mxu0 %v1954
    %2643 = vmatpush1.msra.mxu0 %v1953
    %2644 = vmatprep.subr.mxu0 %v1960
    %2645 = vmatpush1.msra.mxu0 %v1959
    %2646 = vmatprep.mubr.f32.mxu0 %v2068
    %2647 = vmatmul.mubr.f32.gmra.mrb[0].mxu0 %v2066
    %v2648 = vpop.f32.mrb[0].mxu0
    %v2649 = vadd.f32 %v2578, %v2648
    %v2650 = vpop.f32.mrb[0].mxu0
    %v2651 = vadd.f32 %v2580, %v2650
    %2652 = vdwg.mxu0
    %2653 = vmatprep.subr.mxu0 %v432
    %2654 = vmatpush1.msra.mxu0 %v431
    %2655 = vmatprep.subr.mxu0 %v438
    %2656 = vmatpush1.msra.mxu0 %v437
    %2657 = vmatprep.subr.mxu0 %v444
    %2658 = vmatpush1.msra.mxu0 %v443
    %2659 = vmatprep.subr.mxu0 %v450
    %2660 = vmatpush1.msra.mxu0 %v449
    %2661 = vmatprep.subr.mxu0 %v456
    %2662 = vmatpush1.msra.mxu0 %v455
    %2663 = vmatprep.subr.mxu0 %v462
    %2664 = vmatpush1.msra.mxu0 %v461
    %2665 = vmatprep.subr.mxu0 %v468
    %2666 = vmatpush1.msra.mxu0 %v467
    %2667 = vmatprep.subr.mxu0 %v474
    %2668 = vmatpush1.msra.mxu0 %v473
    %2669 = vmatprep.subr.mxu0 %v480
    %2670 = vmatpush1.msra.mxu0 %v479
    %2671 = vmatprep.subr.mxu0 %v486
    %2672 = vmatpush1.msra.mxu0 %v485
    %2673 = vmatprep.subr.mxu0 %v492
    %2674 = vmatpush1.msra.mxu0 %v491
    %2675 = vmatprep.subr.mxu0 %v498
    %2676 = vmatpush1.msra.mxu0 %v497
    %2677 = vmatprep.subr.mxu0 %v504
    %2678 = vmatpush1.msra.mxu0 %v503
    %2679 = vmatprep.subr.mxu0 %v510
    %2680 = vmatpush1.msra.mxu0 %v509
    %2681 = vmatprep.subr.mxu0 %v516
    %2682 = vmatpush1.msra.mxu0 %v515
    %2683 = vmatprep.subr.mxu0 %v522
    %2684 = vmatpush1.msra.mxu0 %v521
    %2685 = vmatprep.subr.mxu0 %v528
    %2686 = vmatpush1.msra.mxu0 %v527
    %2687 = vmatprep.subr.mxu0 %v534
    %2688 = vmatpush1.msra.mxu0 %v533
    %2689 = vmatprep.subr.mxu0 %v540
    %2690 = vmatpush1.msra.mxu0 %v539
    %2691 = vmatprep.subr.mxu0 %v546
    %2692 = vmatpush1.msra.mxu0 %v545
    %2693 = vmatprep.subr.mxu0 %v552
    %2694 = vmatpush1.msra.mxu0 %v551
    %2695 = vmatprep.subr.mxu0 %v558
    %2696 = vmatpush1.msra.mxu0 %v557
    %2697 = vmatprep.subr.mxu0 %v564
    %2698 = vmatpush1.msra.mxu0 %v563
    %2699 = vmatprep.subr.mxu0 %v570
    %2700 = vmatpush1.msra.mxu0 %v569
    %2701 = vmatprep.subr.mxu0 %v576
    %2702 = vmatpush1.msra.mxu0 %v575
    %2703 = vmatprep.subr.mxu0 %v582
    %2704 = vmatpush1.msra.mxu0 %v581
    %2705 = vmatprep.subr.mxu0 %v588
    %2706 = vmatpush1.msra.mxu0 %v587
    %2707 = vmatprep.subr.mxu0 %v594
    %2708 = vmatpush1.msra.mxu0 %v593
    %2709 = vmatprep.subr.mxu0 %v600
    %2710 = vmatpush1.msra.mxu0 %v599
    %2711 = vmatprep.subr.mxu0 %v606
    %2712 = vmatpush1.msra.mxu0 %v605
    %2713 = vmatprep.subr.mxu0 %v612
    %2714 = vmatpush1.msra.mxu0 %v611
    %2715 = vmatprep.subr.mxu0 %v618
    %2716 = vmatpush1.msra.mxu0 %v617
    %2717 = vmatprep.mubr.f32.mxu0 %v2016
    %2718 = vmatmul.mubr.f32.gmra.mrb[0].mxu0 %v2008
    %v2719 = vpop.f32.mrb[0].mxu0
    %v2720 = vadd.f32 %v1978, %v2719
    %v2721 = vpop.f32.mrb[0].mxu0
    %v2722 = vadd.f32 %v1982, %v2721
    %2723 = vdwg.mxu0
    %2724 = vmatprep.subr.mxu0 %v624
    %2725 = vmatpush1.msra.mxu0 %v623
    %2726 = vmatprep.subr.mxu0 %v630
    %2727 = vmatpush1.msra.mxu0 %v629
    %2728 = vmatprep.subr.mxu0 %v636
    %2729 = vmatpush1.msra.mxu0 %v635
    %2730 = vmatprep.subr.mxu0 %v642
    %2731 = vmatpush1.msra.mxu0 %v641
    %2732 = vmatprep.subr.mxu0 %v648
    %2733 = vmatpush1.msra.mxu0 %v647
    %2734 = vmatprep.subr.mxu0 %v654
    %2735 = vmatpush1.msra.mxu0 %v653
    %2736 = vmatprep.subr.mxu0 %v660
    %2737 = vmatpush1.msra.mxu0 %v659
    %2738 = vmatprep.subr.mxu0 %v666
    %2739 = vmatpush1.msra.mxu0 %v665
    %2740 = vmatprep.subr.mxu0 %v672
    %2741 = vmatpush1.msra.mxu0 %v671
    %2742 = vmatprep.subr.mxu0 %v678
    %2743 = vmatpush1.msra.mxu0 %v677
    %2744 = vmatprep.subr.mxu0 %v684
    %2745 = vmatpush1.msra.mxu0 %v683
    %2746 = vmatprep.subr.mxu0 %v690
    %2747 = vmatpush1.msra.mxu0 %v689
    %2748 = vmatprep.subr.mxu0 %v696
    %2749 = vmatpush1.msra.mxu0 %v695
    %2750 = vmatprep.subr.mxu0 %v702
    %2751 = vmatpush1.msra.mxu0 %v701
    %2752 = vmatprep.subr.mxu0 %v708
    %2753 = vmatpush1.msra.mxu0 %v707
    %2754 = vmatprep.subr.mxu0 %v714
    %2755 = vmatpush1.msra.mxu0 %v713
    %2756 = vmatprep.subr.mxu0 %v720
    %2757 = vmatpush1.msra.mxu0 %v719
    %2758 = vmatprep.subr.mxu0 %v726
    %2759 = vmatpush1.msra.mxu0 %v725
    %2760 = vmatprep.subr.mxu0 %v732
    %2761 = vmatpush1.msra.mxu0 %v731
    %2762 = vmatprep.subr.mxu0 %v738
    %2763 = vmatpush1.msra.mxu0 %v737
    %2764 = vmatprep.subr.mxu0 %v744
    %2765 = vmatpush1.msra.mxu0 %v743
    %2766 = vmatprep.subr.mxu0 %v750
    %2767 = vmatpush1.msra.mxu0 %v749
    %2768 = vmatprep.subr.mxu0 %v756
    %2769 = vmatpush1.msra.mxu0 %v755
    %2770 = vmatprep.subr.mxu0 %v762
    %2771 = vmatpush1.msra.mxu0 %v761
    %2772 = vmatprep.subr.mxu0 %v768
    %2773 = vmatpush1.msra.mxu0 %v767
    %2774 = vmatprep.subr.mxu0 %v774
    %2775 = vmatpush1.msra.mxu0 %v773
    %2776 = vmatprep.subr.mxu0 %v780
    %2777 = vmatpush1.msra.mxu0 %v779
    %2778 = vmatprep.subr.mxu0 %v786
    %2779 = vmatpush1.msra.mxu0 %v785
    %2780 = vmatprep.subr.mxu0 %v792
    %2781 = vmatpush1.msra.mxu0 %v791
    %2782 = vmatprep.subr.mxu0 %v798
    %2783 = vmatpush1.msra.mxu0 %v797
    %2784 = vmatprep.subr.mxu0 %v804
    %2785 = vmatpush1.msra.mxu0 %v803
    %2786 = vmatprep.subr.mxu0 %v810
    %2787 = vmatpush1.msra.mxu0 %v809
    %2788 = vmatprep.mubr.f32.mxu0 %v2017
    %2789 = vmatmul.mubr.f32.gmra.mrb[0].mxu0 %v2015
    %v2790 = vpop.f32.mrb[0].mxu0
    %v2791 = vadd.f32 %v2720, %v2790
    %v2792 = vpop.f32.mrb[0].mxu0
    %v2793 = vadd.f32 %v2722, %v2792
    %2794 = vdwg.mxu0
    %2795 = vmatprep.subr.mxu0 %v816
    %2796 = vmatpush1.msra.mxu0 %v815
    %2797 = vmatprep.subr.mxu0 %v822
    %2798 = vmatpush1.msra.mxu0 %v821
    %2799 = vmatprep.subr.mxu0 %v828
    %2800 = vmatpush1.msra.mxu0 %v827
    %2801 = vmatprep.subr.mxu0 %v834
    %2802 = vmatpush1.msra.mxu0 %v833
    %2803 = vmatprep.subr.mxu0 %v840
    %2804 = vmatpush1.msra.mxu0 %v839
    %2805 = vmatprep.subr.mxu0 %v846
    %2806 = vmatpush1.msra.mxu0 %v845
    %2807 = vmatprep.subr.mxu0 %v852
    %2808 = vmatpush1.msra.mxu0 %v851
    %2809 = vmatprep.subr.mxu0 %v858
    %2810 = vmatpush1.msra.mxu0 %v857
    %2811 = vmatprep.subr.mxu0 %v864
    %2812 = vmatpush1.msra.mxu0 %v863
    %2813 = vmatprep.subr.mxu0 %v870
    %2814 = vmatpush1.msra.mxu0 %v869
    %2815 = vmatprep.subr.mxu0 %v876
    %2816 = vmatpush1.msra.mxu0 %v875
    %2817 = vmatprep.subr.mxu0 %v882
    %2818 = vmatpush1.msra.mxu0 %v881
    %2819 = vmatprep.subr.mxu0 %v888
    %2820 = vmatpush1.msra.mxu0 %v887
    %2821 = vmatprep.subr.mxu0 %v894
    %2822 = vmatpush1.msra.mxu0 %v893
    %2823 = vmatprep.subr.mxu0 %v900
    %2824 = vmatpush1.msra.mxu0 %v899
    %2825 = vmatprep.subr.mxu0 %v906
    %2826 = vmatpush1.msra.mxu0 %v905
    %2827 = vmatprep.subr.mxu0 %v912
    %2828 = vmatpush1.msra.mxu0 %v911
    %2829 = vmatprep.subr.mxu0 %v918
    %2830 = vmatpush1.msra.mxu0 %v917
    %2831 = vmatprep.subr.mxu0 %v924
    %2832 = vmatpush1.msra.mxu0 %v923
    %2833 = vmatprep.subr.mxu0 %v930
    %2834 = vmatpush1.msra.mxu0 %v929
    %2835 = vmatprep.subr.mxu0 %v936
    %2836 = vmatpush1.msra.mxu0 %v935
    %2837 = vmatprep.subr.mxu0 %v942
    %2838 = vmatpush1.msra.mxu0 %v941
    %2839 = vmatprep.subr.mxu0 %v948
    %2840 = vmatpush1.msra.mxu0 %v947
    %2841 = vmatprep.subr.mxu0 %v954
    %2842 = vmatpush1.msra.mxu0 %v953
    %2843 = vmatprep.subr.mxu0 %v960
    %2844 = vmatpush1.msra.mxu0 %v959
    %2845 = vmatprep.subr.mxu0 %v966
    %2846 = vmatpush1.msra.mxu0 %v965
    %2847 = vmatprep.subr.mxu0 %v972
    %2848 = vmatpush1.msra.mxu0 %v971
    %2849 = vmatprep.subr.mxu0 %v978
    %2850 = vmatpush1.msra.mxu0 %v977
    %2851 = vmatprep.subr.mxu0 %v984
    %2852 = vmatpush1.msra.mxu0 %v983
    %2853 = vmatprep.subr.mxu0 %v990
    %2854 = vmatpush1.msra.mxu0 %v989
    %2855 = vmatprep.subr.mxu0 %v996
    %2856 = vmatpush1.msra.mxu0 %v995
    %2857 = vmatprep.subr.mxu0 %v1002
    %2858 = vmatpush1.msra.mxu0 %v1001
    %2859 = vmatprep.mubr.f32.mxu0 %v2033
    %2860 = vmatmul.mubr.f32.gmra.mrb[0].mxu0 %v2025
    %v2861 = vpop.f32.mrb[0].mxu0
    %v2862 = vadd.f32 %v2791, %v2861
    %v2863 = vpop.f32.mrb[0].mxu0
    %v2864 = vadd.f32 %v2793, %v2863
    %2865 = vdwg.mxu0
    %2866 = vmatprep.subr.mxu0 %v1008
    %2867 = vmatpush1.msra.mxu0 %v1007
    %2868 = vmatprep.subr.mxu0 %v1014
    %2869 = vmatpush1.msra.mxu0 %v1013
    %2870 = vmatprep.subr.mxu0 %v1020
    %2871 = vmatpush1.msra.mxu0 %v1019
    %2872 = vmatprep.subr.mxu0 %v1026
    %2873 = vmatpush1.msra.mxu0 %v1025
    %2874 = vmatprep.subr.mxu0 %v1032
    %2875 = vmatpush1.msra.mxu0 %v1031
    %2876 = vmatprep.subr.mxu0 %v1038
    %2877 = vmatpush1.msra.mxu0 %v1037
    %2878 = vmatprep.subr.mxu0 %v1044
    %2879 = vmatpush1.msra.mxu0 %v1043
    %2880 = vmatprep.subr.mxu0 %v1050
    %2881 = vmatpush1.msra.mxu0 %v1049
    %2882 = vmatprep.subr.mxu0 %v1056
    %2883 = vmatpush1.msra.mxu0 %v1055
    %2884 = vmatprep.subr.mxu0 %v1062
    %2885 = vmatpush1.msra.mxu0 %v1061
    %2886 = vmatprep.subr.mxu0 %v1068
    %2887 = vmatpush1.msra.mxu0 %v1067
    %2888 = vmatprep.subr.mxu0 %v1074
    %2889 = vmatpush1.msra.mxu0 %v1073
    %2890 = vmatprep.subr.mxu0 %v1080
    %2891 = vmatpush1.msra.mxu0 %v1079
    %2892 = vmatprep.subr.mxu0 %v1086
    %2893 = vmatpush1.msra.mxu0 %v1085
    %2894 = vmatprep.subr.mxu0 %v1092
    %2895 = vmatpush1.msra.mxu0 %v1091
    %2896 = vmatprep.subr.mxu0 %v1098
    %2897 = vmatpush1.msra.mxu0 %v1097
    %2898 = vmatprep.subr.mxu0 %v1104
    %2899 = vmatpush1.msra.mxu0 %v1103
    %2900 = vmatprep.subr.mxu0 %v1110
    %2901 = vmatpush1.msra.mxu0 %v1109
    %2902 = vmatprep.subr.mxu0 %v1116
    %2903 = vmatpush1.msra.mxu0 %v1115
    %2904 = vmatprep.subr.mxu0 %v1122
    %2905 = vmatpush1.msra.mxu0 %v1121
    %2906 = vmatprep.subr.mxu0 %v1128
    %2907 = vmatpush1.msra.mxu0 %v1127
    %2908 = vmatprep.subr.mxu0 %v1134
    %2909 = vmatpush1.msra.mxu0 %v1133
    %2910 = vmatprep.subr.mxu0 %v1140
    %2911 = vmatpush1.msra.mxu0 %v1139
    %2912 = vmatprep.subr.mxu0 %v1146
    %2913 = vmatpush1.msra.mxu0 %v1145
    %2914 = vmatprep.subr.mxu0 %v1152
    %2915 = vmatpush1.msra.mxu0 %v1151
    %2916 = vmatprep.subr.mxu0 %v1158
    %2917 = vmatpush1.msra.mxu0 %v1157
    %2918 = vmatprep.subr.mxu0 %v1164
    %2919 = vmatpush1.msra.mxu0 %v1163
    %2920 = vmatprep.subr.mxu0 %v1170
    %2921 = vmatpush1.msra.mxu0 %v1169
    %2922 = vmatprep.subr.mxu0 %v1176
    %2923 = vmatpush1.msra.mxu0 %v1175
    %2924 = vmatprep.subr.mxu0 %v1182
    %2925 = vmatpush1.msra.mxu0 %v1181
    %2926 = vmatprep.subr.mxu0 %v1188
    %2927 = vmatpush1.msra.mxu0 %v1187
    %2928 = vmatprep.subr.mxu0 %v1194
    %2929 = vmatpush1.msra.mxu0 %v1193
    %2930 = vmatprep.mubr.f32.mxu0 %v2034
    %2931 = vmatmul.mubr.f32.gmra.mrb[0].mxu0 %v2032
    %v2932 = vpop.f32.mrb[0].mxu0
    %v2933 = vadd.f32 %v2862, %v2932
    %v2934 = vpop.f32.mrb[0].mxu0
    %v2935 = vadd.f32 %v2864, %v2934
    %2936 = vdwg.mxu0
    %2937 = vmatprep.subr.mxu0 %v1200
    %2938 = vmatpush1.msra.mxu0 %v1199
    %2939 = vmatprep.subr.mxu0 %v1206
    %2940 = vmatpush1.msra.mxu0 %v1205
    %2941 = vmatprep.subr.mxu0 %v1212
    %2942 = vmatpush1.msra.mxu0 %v1211
    %2943 = vmatprep.subr.mxu0 %v1218
    %2944 = vmatpush1.msra.mxu0 %v1217
    %2945 = vmatprep.subr.mxu0 %v1224
    %2946 = vmatpush1.msra.mxu0 %v1223
    %2947 = vmatprep.subr.mxu0 %v1230
    %2948 = vmatpush1.msra.mxu0 %v1229
    %2949 = vmatprep.subr.mxu0 %v1236
    %2950 = vmatpush1.msra.mxu0 %v1235
    %2951 = vmatprep.subr.mxu0 %v1242
    %2952 = vmatpush1.msra.mxu0 %v1241
    %2953 = vmatprep.subr.mxu0 %v1248
    %2954 = vmatpush1.msra.mxu0 %v1247
    %2955 = vmatprep.subr.mxu0 %v1254
    %2956 = vmatpush1.msra.mxu0 %v1253
    %2957 = vmatprep.subr.mxu0 %v1260
    %2958 = vmatpush1.msra.mxu0 %v1259
    %2959 = vmatprep.subr.mxu0 %v1266
    %2960 = vmatpush1.msra.mxu0 %v1265
    %2961 = vmatprep.subr.mxu0 %v1272
    %2962 = vmatpush1.msra.mxu0 %v1271
    %2963 = vmatprep.subr.mxu0 %v1278
    %2964 = vmatpush1.msra.mxu0 %v1277
    %2965 = vmatprep.subr.mxu0 %v1284
    %2966 = vmatpush1.msra.mxu0 %v1283
    %2967 = vmatprep.subr.mxu0 %v1290
    %2968 = vmatpush1.msra.mxu0 %v1289
    %2969 = vmatprep.subr.mxu0 %v1296
    %2970 = vmatpush1.msra.mxu0 %v1295
    %2971 = vmatprep.subr.mxu0 %v1302
    %2972 = vmatpush1.msra.mxu0 %v1301
    %2973 = vmatprep.subr.mxu0 %v1308
    %2974 = vmatpush1.msra.mxu0 %v1307
    %2975 = vmatprep.subr.mxu0 %v1314
    %2976 = vmatpush1.msra.mxu0 %v1313
    %2977 = vmatprep.subr.mxu0 %v1320
    %2978 = vmatpush1.msra.mxu0 %v1319
    %2979 = vmatprep.subr.mxu0 %v1326
    %2980 = vmatpush1.msra.mxu0 %v1325
    %2981 = vmatprep.subr.mxu0 %v1332
    %2982 = vmatpush1.msra.mxu0 %v1331
    %2983 = vmatprep.subr.mxu0 %v1338
    %2984 = vmatpush1.msra.mxu0 %v1337
    %2985 = vmatprep.subr.mxu0 %v1344
    %2986 = vmatpush1.msra.mxu0 %v1343
    %2987 = vmatprep.subr.mxu0 %v1350
    %2988 = vmatpush1.msra.mxu0 %v1349
    %2989 = vmatprep.subr.mxu0 %v1356
    %2990 = vmatpush1.msra.mxu0 %v1355
    %2991 = vmatprep.subr.mxu0 %v1362
    %2992 = vmatpush1.msra.mxu0 %v1361
    %2993 = vmatprep.subr.mxu0 %v1368
    %2994 = vmatpush1.msra.mxu0 %v1367
    %2995 = vmatprep.subr.mxu0 %v1374
    %2996 = vmatpush1.msra.mxu0 %v1373
    %2997 = vmatprep.subr.mxu0 %v1380
    %2998 = vmatpush1.msra.mxu0 %v1379
    %2999 = vmatprep.subr.mxu0 %v1386
    %3000 = vmatpush1.msra.mxu0 %v1385
    %3001 = vmatprep.mubr.f32.mxu0 %v2050
    %3002 = vmatmul.mubr.f32.gmra.mrb[0].mxu0 %v2042
    %v3003 = vpop.f32.mrb[0].mxu0
    %v3004 = vadd.f32 %v2933, %v3003
    %v3005 = vpop.f32.mrb[0].mxu0
    %v3006 = vadd.f32 %v2935, %v3005
    %3007 = vdwg.mxu0
    %3008 = vmatprep.subr.mxu0 %v1392
    %3009 = vmatpush1.msra.mxu0 %v1391
    %3010 = vmatprep.subr.mxu0 %v1398
    %3011 = vmatpush1.msra.mxu0 %v1397
    %3012 = vmatprep.subr.mxu0 %v1404
    %3013 = vmatpush1.msra.mxu0 %v1403
    %3014 = vmatprep.subr.mxu0 %v1410
    %3015 = vmatpush1.msra.mxu0 %v1409
    %3016 = vmatprep.subr.mxu0 %v1416
    %3017 = vmatpush1.msra.mxu0 %v1415
    %3018 = vmatprep.subr.mxu0 %v1422
    %3019 = vmatpush1.msra.mxu0 %v1421
    %3020 = vmatprep.subr.mxu0 %v1428
    %3021 = vmatpush1.msra.mxu0 %v1427
    %3022 = vmatprep.subr.mxu0 %v1434
    %3023 = vmatpush1.msra.mxu0 %v1433
    %3024 = vmatprep.subr.mxu0 %v1440
    %3025 = vmatpush1.msra.mxu0 %v1439
    %3026 = vmatprep.subr.mxu0 %v1446
    %3027 = vmatpush1.msra.mxu0 %v1445
    %3028 = vmatprep.subr.mxu0 %v1452
    %3029 = vmatpush1.msra.mxu0 %v1451
    %3030 = vmatprep.subr.mxu0 %v1458
    %3031 = vmatpush1.msra.mxu0 %v1457
    %3032 = vmatprep.subr.mxu0 %v1464
    %3033 = vmatpush1.msra.mxu0 %v1463
    %3034 = vmatprep.subr.mxu0 %v1470
    %3035 = vmatpush1.msra.mxu0 %v1469
    %3036 = vmatprep.subr.mxu0 %v1476
    %3037 = vmatpush1.msra.mxu0 %v1475
    %3038 = vmatprep.subr.mxu0 %v1482
    %3039 = vmatpush1.msra.mxu0 %v1481
    %3040 = vmatprep.subr.mxu0 %v1488
    %3041 = vmatpush1.msra.mxu0 %v1487
    %3042 = vmatprep.subr.mxu0 %v1494
    %3043 = vmatpush1.msra.mxu0 %v1493
    %3044 = vmatprep.subr.mxu0 %v1500
    %3045 = vmatpush1.msra.mxu0 %v1499
    %3046 = vmatprep.subr.mxu0 %v1506
    %3047 = vmatpush1.msra.mxu0 %v1505
    %3048 = vmatprep.subr.mxu0 %v1512
    %3049 = vmatpush1.msra.mxu0 %v1511
    %3050 = vmatprep.subr.mxu0 %v1518
    %3051 = vmatpush1.msra.mxu0 %v1517
    %3052 = vmatprep.subr.mxu0 %v1524
    %3053 = vmatpush1.msra.mxu0 %v1523
    %3054 = vmatprep.subr.mxu0 %v1530
    %3055 = vmatpush1.msra.mxu0 %v1529
    %3056 = vmatprep.subr.mxu0 %v1536
    %3057 = vmatpush1.msra.mxu0 %v1535
    %3058 = vmatprep.subr.mxu0 %v1542
    %3059 = vmatpush1.msra.mxu0 %v1541
    %3060 = vmatprep.subr.mxu0 %v1548
    %3061 = vmatpush1.msra.mxu0 %v1547
    %3062 = vmatprep.subr.mxu0 %v1554
    %3063 = vmatpush1.msra.mxu0 %v1553
    %3064 = vmatprep.subr.mxu0 %v1560
    %3065 = vmatpush1.msra.mxu0 %v1559
    %3066 = vmatprep.subr.mxu0 %v1566
    %3067 = vmatpush1.msra.mxu0 %v1565
    %3068 = vmatprep.subr.mxu0 %v1572
    %3069 = vmatpush1.msra.mxu0 %v1571
    %3070 = vmatprep.subr.mxu0 %v1578
    %3071 = vmatpush1.msra.mxu0 %v1577
    %3072 = vmatprep.mubr.f32.mxu0 %v2051
    %3073 = vmatmul.mubr.f32.gmra.mrb[0].mxu0 %v2049
    %v3074 = vpop.f32.mrb[0].mxu0
    %v3075 = vadd.f32 %v3004, %v3074
    %v3076 = vpop.f32.mrb[0].mxu0
    %v3077 = vadd.f32 %v3006, %v3076
    %3078 = vdwg.mxu0
    %3079 = vmatprep.subr.mxu0 %v1584
    %3080 = vmatpush1.msra.mxu0 %v1583
    %3081 = vmatprep.subr.mxu0 %v1590
    %3082 = vmatpush1.msra.mxu0 %v1589
    %3083 = vmatprep.subr.mxu0 %v1596
    %3084 = vmatpush1.msra.mxu0 %v1595
    %3085 = vmatprep.subr.mxu0 %v1602
    %3086 = vmatpush1.msra.mxu0 %v1601
    %3087 = vmatprep.subr.mxu0 %v1608
    %3088 = vmatpush1.msra.mxu0 %v1607
    %3089 = vmatprep.subr.mxu0 %v1614
    %3090 = vmatpush1.msra.mxu0 %v1613
    %3091 = vmatprep.subr.mxu0 %v1620
    %3092 = vmatpush1.msra.mxu0 %v1619
    %3093 = vmatprep.subr.mxu0 %v1626
    %3094 = vmatpush1.msra.mxu0 %v1625
    %3095 = vmatprep.subr.mxu0 %v1632
    %3096 = vmatpush1.msra.mxu0 %v1631
    %3097 = vmatprep.subr.mxu0 %v1638
    %3098 = vmatpush1.msra.mxu0 %v1637
    %3099 = vmatprep.subr.mxu0 %v1644
    %3100 = vmatpush1.msra.mxu0 %v1643
    %3101 = vmatprep.subr.mxu0 %v1650
    %3102 = vmatpush1.msra.mxu0 %v1649
    %3103 = vmatprep.subr.mxu0 %v1656
    %3104 = vmatpush1.msra.mxu0 %v1655
    %3105 = vmatprep.subr.mxu0 %v1662
    %3106 = vmatpush1.msra.mxu0 %v1661
    %3107 = vmatprep.subr.mxu0 %v1668
    %3108 = vmatpush1.msra.mxu0 %v1667
    %3109 = vmatprep.subr.mxu0 %v1674
    %3110 = vmatpush1.msra.mxu0 %v1673
    %3111 = vmatprep.subr.mxu0 %v1680
    %3112 = vmatpush1.msra.mxu0 %v1679
    %3113 = vmatprep.subr.mxu0 %v1686
    %3114 = vmatpush1.msra.mxu0 %v1685
    %3115 = vmatprep.subr.mxu0 %v1692
    %3116 = vmatpush1.msra.mxu0 %v1691
    %3117 = vmatprep.subr.mxu0 %v1698
    %3118 = vmatpush1.msra.mxu0 %v1697
    %3119 = vmatprep.subr.mxu0 %v1704
    %3120 = vmatpush1.msra.mxu0 %v1703
    %3121 = vmatprep.subr.mxu0 %v1710
    %3122 = vmatpush1.msra.mxu0 %v1709
    %3123 = vmatprep.subr.mxu0 %v1716
    %3124 = vmatpush1.msra.mxu0 %v1715
    %3125 = vmatprep.subr.mxu0 %v1722
    %3126 = vmatpush1.msra.mxu0 %v1721
    %3127 = vmatprep.subr.mxu0 %v1728
    %3128 = vmatpush1.msra.mxu0 %v1727
    %3129 = vmatprep.subr.mxu0 %v1734
    %3130 = vmatpush1.msra.mxu0 %v1733
    %3131 = vmatprep.subr.mxu0 %v1740
    %3132 = vmatpush1.msra.mxu0 %v1739
    %3133 = vmatprep.subr.mxu0 %v1746
    %3134 = vmatpush1.msra.mxu0 %v1745
    %3135 = vmatprep.subr.mxu0 %v1752
    %3136 = vmatpush1.msra.mxu0 %v1751
    %3137 = vmatprep.subr.mxu0 %v1758
    %3138 = vmatpush1.msra.mxu0 %v1757
    %3139 = vmatprep.subr.mxu0 %v1764
    %3140 = vmatpush1.msra.mxu0 %v1763
    %3141 = vmatprep.subr.mxu0 %v1770
    %3142 = vmatpush1.msra.mxu0 %v1769
    %3143 = vmatprep.mubr.f32.mxu0 %v2067
    %3144 = vmatmul.mubr.f32.gmra.mrb[0].mxu0 %v2059
    %v3145 = vpop.f32.mrb[0].mxu0
    %v3146 = vadd.f32 %v3075, %v3145
    %v3147 = vpop.f32.mrb[0].mxu0
    %v3148 = vadd.f32 %v3077, %v3147
    %3149 = vdwg.mxu0
    %3150 = vmatprep.subr.mxu0 %v1776
    %3151 = vmatpush1.msra.mxu0 %v1775
    %3152 = vmatprep.subr.mxu0 %v1782
    %3153 = vmatpush1.msra.mxu0 %v1781
    %3154 = vmatprep.subr.mxu0 %v1788
    %3155 = vmatpush1.msra.mxu0 %v1787
    %3156 = vmatprep.subr.mxu0 %v1794
    %3157 = vmatpush1.msra.mxu0 %v1793
    %3158 = vmatprep.subr.mxu0 %v1800
    %3159 = vmatpush1.msra.mxu0 %v1799
    %3160 = vmatprep.subr.mxu0 %v1806
    %3161 = vmatpush1.msra.mxu0 %v1805
    %3162 = vmatprep.subr.mxu0 %v1812
    %3163 = vmatpush1.msra.mxu0 %v1811
    %3164 = vmatprep.subr.mxu0 %v1818
    %3165 = vmatpush1.msra.mxu0 %v1817
    %3166 = vmatprep.subr.mxu0 %v1824
    %3167 = vmatpush1.msra.mxu0 %v1823
    %3168 = vmatprep.subr.mxu0 %v1830
    %3169 = vmatpush1.msra.mxu0 %v1829
    %3170 = vmatprep.subr.mxu0 %v1836
    %3171 = vmatpush1.msra.mxu0 %v1835
    %3172 = vmatprep.subr.mxu0 %v1842
    %3173 = vmatpush1.msra.mxu0 %v1841
    %3174 = vmatprep.subr.mxu0 %v1848
    %3175 = vmatpush1.msra.mxu0 %v1847
    %3176 = vmatprep.subr.mxu0 %v1854
    %3177 = vmatpush1.msra.mxu0 %v1853
    %3178 = vmatprep.subr.mxu0 %v1860
    %3179 = vmatpush1.msra.mxu0 %v1859
    %3180 = vmatprep.subr.mxu0 %v1866
    %3181 = vmatpush1.msra.mxu0 %v1865
    %3182 = vmatprep.subr.mxu0 %v1872
    %3183 = vmatpush1.msra.mxu0 %v1871
    %3184 = vmatprep.subr.mxu0 %v1878
    %3185 = vmatpush1.msra.mxu0 %v1877
    %3186 = vmatprep.subr.mxu0 %v1884
    %3187 = vmatpush1.msra.mxu0 %v1883
    %3188 = vmatprep.subr.mxu0 %v1890
    %3189 = vmatpush1.msra.mxu0 %v1889
    %3190 = vmatprep.subr.mxu0 %v1896
    %3191 = vmatpush1.msra.mxu0 %v1895
    %3192 = vmatprep.subr.mxu0 %v1902
    %3193 = vmatpush1.msra.mxu0 %v1901
    %3194 = vmatprep.subr.mxu0 %v1908
    %3195 = vmatpush1.msra.mxu0 %v1907
    %3196 = vmatprep.subr.mxu0 %v1914
    %3197 = vmatpush1.msra.mxu0 %v1913
    %3198 = vmatprep.subr.mxu0 %v1920
    %3199 = vmatpush1.msra.mxu0 %v1919
    %3200 = vmatprep.subr.mxu0 %v1926
    %3201 = vmatpush1.msra.mxu0 %v1925
    %3202 = vmatprep.subr.mxu0 %v1932
    %3203 = vmatpush1.msra.mxu0 %v1931
    %3204 = vmatprep.subr.mxu0 %v1938
    %3205 = vmatpush1.msra.mxu0 %v1937
    %3206 = vmatprep.subr.mxu0 %v1944
    %3207 = vmatpush1.msra.mxu0 %v1943
    %3208 = vmatprep.subr.mxu0 %v1950
    %3209 = vmatpush1.msra.mxu0 %v1949
    %3210 = vmatprep.subr.mxu0 %v1956
    %3211 = vmatpush1.msra.mxu0 %v1955
    %3212 = vmatprep.subr.mxu0 %v1962
    %3213 = vmatpush1.msra.mxu0 %v1961
    %3214 = vmatprep.mubr.f32.mxu0 %v2068
    %3215 = vmatmul.mubr.f32.gmra.mrb[0].mxu0 %v2066
    %v3216 = vpop.f32.mrb[0].mxu0
    %v3217 = vadd.f32 %v3146, %v3216
    %v3218 = vpop.f32.mrb[0].mxu0
    %v3219 = vadd.f32 %v3148, %v3218
    %3220 = vdwg.mxu0
    %3221 = vmatprep.subr.mxu0 %v434
    %3222 = vmatpush1.msra.mxu0 %v433
    %3223 = vmatprep.subr.mxu0 %v440
    %3224 = vmatpush1.msra.mxu0 %v439
    %3225 = vmatprep.subr.mxu0 %v446
    %3226 = vmatpush1.msra.mxu0 %v445
    %3227 = vmatprep.subr.mxu0 %v452
    %3228 = vmatpush1.msra.mxu0 %v451
    %3229 = vmatprep.subr.mxu0 %v458
    %3230 = vmatpush1.msra.mxu0 %v457
    %3231 = vmatprep.subr.mxu0 %v464
    %3232 = vmatpush1.msra.mxu0 %v463
    %3233 = vmatprep.subr.mxu0 %v470
    %3234 = vmatpush1.msra.mxu0 %v469
    %3235 = vmatprep.subr.mxu0 %v476
    %3236 = vmatpush1.msra.mxu0 %v475
    %3237 = vmatprep.subr.mxu0 %v482
    %3238 = vmatpush1.msra.mxu0 %v481
    %3239 = vmatprep.subr.mxu0 %v488
    %3240 = vmatpush1.msra.mxu0 %v487
    %3241 = vmatprep.subr.mxu0 %v494
    %3242 = vmatpush1.msra.mxu0 %v493
    %3243 = vmatprep.subr.mxu0 %v500
    %3244 = vmatpush1.msra.mxu0 %v499
    %3245 = vmatprep.subr.mxu0 %v506
    %3246 = vmatpush1.msra.mxu0 %v505
    %3247 = vmatprep.subr.mxu0 %v512
    %3248 = vmatpush1.msra.mxu0 %v511
    %3249 = vmatprep.subr.mxu0 %v518
    %3250 = vmatpush1.msra.mxu0 %v517
    %3251 = vmatprep.subr.mxu0 %v524
    %3252 = vmatpush1.msra.mxu0 %v523
    %3253 = vmatprep.subr.mxu0 %v530
    %3254 = vmatpush1.msra.mxu0 %v529
    %3255 = vmatprep.subr.mxu0 %v536
    %3256 = vmatpush1.msra.mxu0 %v535
    %3257 = vmatprep.subr.mxu0 %v542
    %3258 = vmatpush1.msra.mxu0 %v541
    %3259 = vmatprep.subr.mxu0 %v548
    %3260 = vmatpush1.msra.mxu0 %v547
    %3261 = vmatprep.subr.mxu0 %v554
    %3262 = vmatpush1.msra.mxu0 %v553
    %3263 = vmatprep.subr.mxu0 %v560
    %3264 = vmatpush1.msra.mxu0 %v559
    %3265 = vmatprep.subr.mxu0 %v566
    %3266 = vmatpush1.msra.mxu0 %v565
    %3267 = vmatprep.subr.mxu0 %v572
    %3268 = vmatpush1.msra.mxu0 %v571
    %3269 = vmatprep.subr.mxu0 %v578
    %3270 = vmatpush1.msra.mxu0 %v577
    %3271 = vmatprep.subr.mxu0 %v584
    %3272 = vmatpush1.msra.mxu0 %v583
    %3273 = vmatprep.subr.mxu0 %v590
    %3274 = vmatpush1.msra.mxu0 %v589
    %3275 = vmatprep.subr.mxu0 %v596
    %3276 = vmatpush1.msra.mxu0 %v595
    %3277 = vmatprep.subr.mxu0 %v602
    %3278 = vmatpush1.msra.mxu0 %v601
    %3279 = vmatprep.subr.mxu0 %v608
    %3280 = vmatpush1.msra.mxu0 %v607
    %3281 = vmatprep.subr.mxu0 %v614
    %3282 = vmatpush1.msra.mxu0 %v613
    %3283 = vmatprep.subr.mxu0 %v620
    %3284 = vmatpush1.msra.mxu0 %v619
    %3285 = vmatprep.mubr.f32.mxu0 %v2016
    %3286 = vmatmul.mubr.f32.gmra.mrb[0].mxu0 %v2008
    %v3287 = vpop.f32.mrb[0].mxu0
    %v3288 = vadd.f32 %v1986, %v3287
    %v3289 = vpop.f32.mrb[0].mxu0
    %v3290 = vadd.f32 %v1990, %v3289
    %3291 = vdwg.mxu0
    %3292 = vmatprep.subr.mxu0 %v626
    %3293 = vmatpush1.msra.mxu0 %v625
    %3294 = vmatprep.subr.mxu0 %v632
    %3295 = vmatpush1.msra.mxu0 %v631
    %3296 = vmatprep.subr.mxu0 %v638
    %3297 = vmatpush1.msra.mxu0 %v637
    %3298 = vmatprep.subr.mxu0 %v644
    %3299 = vmatpush1.msra.mxu0 %v643
    %3300 = vmatprep.subr.mxu0 %v650
    %3301 = vmatpush1.msra.mxu0 %v649
    %3302 = vmatprep.subr.mxu0 %v656
    %3303 = vmatpush1.msra.mxu0 %v655
    %3304 = vmatprep.subr.mxu0 %v662
    %3305 = vmatpush1.msra.mxu0 %v661
    %3306 = vmatprep.subr.mxu0 %v668
    %3307 = vmatpush1.msra.mxu0 %v667
    %3308 = vmatprep.subr.mxu0 %v674
    %3309 = vmatpush1.msra.mxu0 %v673
    %3310 = vmatprep.subr.mxu0 %v680
    %3311 = vmatpush1.msra.mxu0 %v679
    %3312 = vmatprep.subr.mxu0 %v686
    %3313 = vmatpush1.msra.mxu0 %v685
    %3314 = vmatprep.subr.mxu0 %v692
    %3315 = vmatpush1.msra.mxu0 %v691
    %3316 = vmatprep.subr.mxu0 %v698
    %3317 = vmatpush1.msra.mxu0 %v697
    %3318 = vmatprep.subr.mxu0 %v704
    %3319 = vmatpush1.msra.mxu0 %v703
    %3320 = vmatprep.subr.mxu0 %v710
    %3321 = vmatpush1.msra.mxu0 %v709
    %3322 = vmatprep.subr.mxu0 %v716
    %3323 = vmatpush1.msra.mxu0 %v715
    %3324 = vmatprep.subr.mxu0 %v722
    %3325 = vmatpush1.msra.mxu0 %v721
    %3326 = vmatprep.subr.mxu0 %v728
    %3327 = vmatpush1.msra.mxu0 %v727
    %3328 = vmatprep.subr.mxu0 %v734
    %3329 = vmatpush1.msra.mxu0 %v733
    %3330 = vmatprep.subr.mxu0 %v740
    %3331 = vmatpush1.msra.mxu0 %v739
    %3332 = vmatprep.subr.mxu0 %v746
    %3333 = vmatpush1.msra.mxu0 %v745
    %3334 = vmatprep.subr.mxu0 %v752
    %3335 = vmatpush1.msra.mxu0 %v751
    %3336 = vmatprep.subr.mxu0 %v758
    %3337 = vmatpush1.msra.mxu0 %v757
    %3338 = vmatprep.subr.mxu0 %v764
    %3339 = vmatpush1.msra.mxu0 %v763
    %3340 = vmatprep.subr.mxu0 %v770
    %3341 = vmatpush1.msra.mxu0 %v769
    %3342 = vmatprep.subr.mxu0 %v776
    %3343 = vmatpush1.msra.mxu0 %v775
    %3344 = vmatprep.subr.mxu0 %v782
    %3345 = vmatpush1.msra.mxu0 %v781
    %3346 = vmatprep.subr.mxu0 %v788
    %3347 = vmatpush1.msra.mxu0 %v787
    %3348 = vmatprep.subr.mxu0 %v794
    %3349 = vmatpush1.msra.mxu0 %v793
    %3350 = vmatprep.subr.mxu0 %v800
    %3351 = vmatpush1.msra.mxu0 %v799
    %3352 = vmatprep.subr.mxu0 %v806
    %3353 = vmatpush1.msra.mxu0 %v805
    %3354 = vmatprep.subr.mxu0 %v812
    %3355 = vmatpush1.msra.mxu0 %v811
    %3356 = vmatprep.mubr.f32.mxu0 %v2017
    %3357 = vmatmul.mubr.f32.gmra.mrb[0].mxu0 %v2015
    %v3358 = vpop.f32.mrb[0].mxu0
    %v3359 = vadd.f32 %v3288, %v3358
    %v3360 = vpop.f32.mrb[0].mxu0
    %v3361 = vadd.f32 %v3290, %v3360
    %3362 = vdwg.mxu0
    %3363 = vmatprep.subr.mxu0 %v818
    %3364 = vmatpush1.msra.mxu0 %v817
    %3365 = vmatprep.subr.mxu0 %v824
    %3366 = vmatpush1.msra.mxu0 %v823
    %3367 = vmatprep.subr.mxu0 %v830
    %3368 = vmatpush1.msra.mxu0 %v829
    %3369 = vmatprep.subr.mxu0 %v836
    %3370 = vmatpush1.msra.mxu0 %v835
    %3371 = vmatprep.subr.mxu0 %v842
    %3372 = vmatpush1.msra.mxu0 %v841
    %3373 = vmatprep.subr.mxu0 %v848
    %3374 = vmatpush1.msra.mxu0 %v847
    %3375 = vmatprep.subr.mxu0 %v854
    %3376 = vmatpush1.msra.mxu0 %v853
    %3377 = vmatprep.subr.mxu0 %v860
    %3378 = vmatpush1.msra.mxu0 %v859
    %3379 = vmatprep.subr.mxu0 %v866
    %3380 = vmatpush1.msra.mxu0 %v865
    %3381 = vmatprep.subr.mxu0 %v872
    %3382 = vmatpush1.msra.mxu0 %v871
    %3383 = vmatprep.subr.mxu0 %v878
    %3384 = vmatpush1.msra.mxu0 %v877
    %3385 = vmatprep.subr.mxu0 %v884
    %3386 = vmatpush1.msra.mxu0 %v883
    %3387 = vmatprep.subr.mxu0 %v890
    %3388 = vmatpush1.msra.mxu0 %v889
    %3389 = vmatprep.subr.mxu0 %v896
    %3390 = vmatpush1.msra.mxu0 %v895
    %3391 = vmatprep.subr.mxu0 %v902
    %3392 = vmatpush1.msra.mxu0 %v901
    %3393 = vmatprep.subr.mxu0 %v908
    %3394 = vmatpush1.msra.mxu0 %v907
    %3395 = vmatprep.subr.mxu0 %v914
    %3396 = vmatpush1.msra.mxu0 %v913
    %3397 = vmatprep.subr.mxu0 %v920
    %3398 = vmatpush1.msra.mxu0 %v919
    %3399 = vmatprep.subr.mxu0 %v926
    %3400 = vmatpush1.msra.mxu0 %v925
    %3401 = vmatprep.subr.mxu0 %v932
    %3402 = vmatpush1.msra.mxu0 %v931
    %3403 = vmatprep.subr.mxu0 %v938
    %3404 = vmatpush1.msra.mxu0 %v937
    %3405 = vmatprep.subr.mxu0 %v944
    %3406 = vmatpush1.msra.mxu0 %v943
    %3407 = vmatprep.subr.mxu0 %v950
    %3408 = vmatpush1.msra.mxu0 %v949
    %3409 = vmatprep.subr.mxu0 %v956
    %3410 = vmatpush1.msra.mxu0 %v955
    %3411 = vmatprep.subr.mxu0 %v962
    %3412 = vmatpush1.msra.mxu0 %v961
    %3413 = vmatprep.subr.mxu0 %v968
    %3414 = vmatpush1.msra.mxu0 %v967
    %3415 = vmatprep.subr.mxu0 %v974
    %3416 = vmatpush1.msra.mxu0 %v973
    %3417 = vmatprep.subr.mxu0 %v980
    %3418 = vmatpush1.msra.mxu0 %v979
    %3419 = vmatprep.subr.mxu0 %v986
    %3420 = vmatpush1.msra.mxu0 %v985
    %3421 = vmatprep.subr.mxu0 %v992
    %3422 = vmatpush1.msra.mxu0 %v991
    %3423 = vmatprep.subr.mxu0 %v998
    %3424 = vmatpush1.msra.mxu0 %v997
    %3425 = vmatprep.subr.mxu0 %v1004
    %3426 = vmatpush1.msra.mxu0 %v1003
    %3427 = vmatprep.mubr.f32.mxu0 %v2033
    %3428 = vmatmul.mubr.f32.gmra.mrb[0].mxu0 %v2025
    %v3429 = vpop.f32.mrb[0].mxu0
    %v3430 = vadd.f32 %v3359, %v3429
    %v3431 = vpop.f32.mrb[0].mxu0
    %v3432 = vadd.f32 %v3361, %v3431
    %3433 = vdwg.mxu0
    %3434 = vmatprep.subr.mxu0 %v1010
    %3435 = vmatpush1.msra.mxu0 %v1009
    %3436 = vmatprep.subr.mxu0 %v1016
    %3437 = vmatpush1.msra.mxu0 %v1015
    %3438 = vmatprep.subr.mxu0 %v1022
    %3439 = vmatpush1.msra.mxu0 %v1021
    %3440 = vmatprep.subr.mxu0 %v1028
    %3441 = vmatpush1.msra.mxu0 %v1027
    %3442 = vmatprep.subr.mxu0 %v1034
    %3443 = vmatpush1.msra.mxu0 %v1033
    %3444 = vmatprep.subr.mxu0 %v1040
    %3445 = vmatpush1.msra.mxu0 %v1039
    %3446 = vmatprep.subr.mxu0 %v1046
    %3447 = vmatpush1.msra.mxu0 %v1045
    %3448 = vmatprep.subr.mxu0 %v1052
    %3449 = vmatpush1.msra.mxu0 %v1051
    %3450 = vmatprep.subr.mxu0 %v1058
    %3451 = vmatpush1.msra.mxu0 %v1057
    %3452 = vmatprep.subr.mxu0 %v1064
    %3453 = vmatpush1.msra.mxu0 %v1063
    %3454 = vmatprep.subr.mxu0 %v1070
    %3455 = vmatpush1.msra.mxu0 %v1069
    %3456 = vmatprep.subr.mxu0 %v1076
    %3457 = vmatpush1.msra.mxu0 %v1075
    %3458 = vmatprep.subr.mxu0 %v1082
    %3459 = vmatpush1.msra.mxu0 %v1081
    %3460 = vmatprep.subr.mxu0 %v1088
    %3461 = vmatpush1.msra.mxu0 %v1087
    %3462 = vmatprep.subr.mxu0 %v1094
    %3463 = vmatpush1.msra.mxu0 %v1093
    %3464 = vmatprep.subr.mxu0 %v1100
    %3465 = vmatpush1.msra.mxu0 %v1099
    %3466 = vmatprep.subr.mxu0 %v1106
    %3467 = vmatpush1.msra.mxu0 %v1105
    %3468 = vmatprep.subr.mxu0 %v1112
    %3469 = vmatpush1.msra.mxu0 %v1111
    %3470 = vmatprep.subr.mxu0 %v1118
    %3471 = vmatpush1.msra.mxu0 %v1117
    %3472 = vmatprep.subr.mxu0 %v1124
    %3473 = vmatpush1.msra.mxu0 %v1123
    %3474 = vmatprep.subr.mxu0 %v1130
    %3475 = vmatpush1.msra.mxu0 %v1129
    %3476 = vmatprep.subr.mxu0 %v1136
    %3477 = vmatpush1.msra.mxu0 %v1135
    %3478 = vmatprep.subr.mxu0 %v1142
    %3479 = vmatpush1.msra.mxu0 %v1141
    %3480 = vmatprep.subr.mxu0 %v1148
    %3481 = vmatpush1.msra.mxu0 %v1147
    %3482 = vmatprep.subr.mxu0 %v1154
    %3483 = vmatpush1.msra.mxu0 %v1153
    %3484 = vmatprep.subr.mxu0 %v1160
    %3485 = vmatpush1.msra.mxu0 %v1159
    %3486 = vmatprep.subr.mxu0 %v1166
    %3487 = vmatpush1.msra.mxu0 %v1165
    %3488 = vmatprep.subr.mxu0 %v1172
    %3489 = vmatpush1.msra.mxu0 %v1171
    %3490 = vmatprep.subr.mxu0 %v1178
    %3491 = vmatpush1.msra.mxu0 %v1177
    %3492 = vmatprep.subr.mxu0 %v1184
    %3493 = vmatpush1.msra.mxu0 %v1183
    %3494 = vmatprep.subr.mxu0 %v1190
    %3495 = vmatpush1.msra.mxu0 %v1189
    %3496 = vmatprep.subr.mxu0 %v1196
    %3497 = vmatpush1.msra.mxu0 %v1195
    %3498 = vmatprep.mubr.f32.mxu0 %v2034
    %3499 = vmatmul.mubr.f32.gmra.mrb[0].mxu0 %v2032
    %v3500 = vpop.f32.mrb[0].mxu0
    %v3501 = vadd.f32 %v3430, %v3500
    %v3502 = vpop.f32.mrb[0].mxu0
    %v3503 = vadd.f32 %v3432, %v3502
    %3504 = vdwg.mxu0
    %3505 = vmatprep.subr.mxu0 %v1202
    %3506 = vmatpush1.msra.mxu0 %v1201
    %3507 = vmatprep.subr.mxu0 %v1208
    %3508 = vmatpush1.msra.mxu0 %v1207
    %3509 = vmatprep.subr.mxu0 %v1214
    %3510 = vmatpush1.msra.mxu0 %v1213
    %3511 = vmatprep.subr.mxu0 %v1220
    %3512 = vmatpush1.msra.mxu0 %v1219
    %3513 = vmatprep.subr.mxu0 %v1226
    %3514 = vmatpush1.msra.mxu0 %v1225
    %3515 = vmatprep.subr.mxu0 %v1232
    %3516 = vmatpush1.msra.mxu0 %v1231
    %3517 = vmatprep.subr.mxu0 %v1238
    %3518 = vmatpush1.msra.mxu0 %v1237
    %3519 = vmatprep.subr.mxu0 %v1244
    %3520 = vmatpush1.msra.mxu0 %v1243
    %3521 = vmatprep.subr.mxu0 %v1250
    %3522 = vmatpush1.msra.mxu0 %v1249
    %3523 = vmatprep.subr.mxu0 %v1256
    %3524 = vmatpush1.msra.mxu0 %v1255
    %3525 = vmatprep.subr.mxu0 %v1262
    %3526 = vmatpush1.msra.mxu0 %v1261
    %3527 = vmatprep.subr.mxu0 %v1268
    %3528 = vmatpush1.msra.mxu0 %v1267
    %3529 = vmatprep.subr.mxu0 %v1274
    %3530 = vmatpush1.msra.mxu0 %v1273
    %3531 = vmatprep.subr.mxu0 %v1280
    %3532 = vmatpush1.msra.mxu0 %v1279
    %3533 = vmatprep.subr.mxu0 %v1286
    %3534 = vmatpush1.msra.mxu0 %v1285
    %3535 = vmatprep.subr.mxu0 %v1292
    %3536 = vmatpush1.msra.mxu0 %v1291
    %3537 = vmatprep.subr.mxu0 %v1298
    %3538 = vmatpush1.msra.mxu0 %v1297
    %3539 = vmatprep.subr.mxu0 %v1304
    %3540 = vmatpush1.msra.mxu0 %v1303
    %3541 = vmatprep.subr.mxu0 %v1310
    %3542 = vmatpush1.msra.mxu0 %v1309
    %3543 = vmatprep.subr.mxu0 %v1316
    %3544 = vmatpush1.msra.mxu0 %v1315
    %3545 = vmatprep.subr.mxu0 %v1322
    %3546 = vmatpush1.msra.mxu0 %v1321
    %3547 = vmatprep.subr.mxu0 %v1328
    %3548 = vmatpush1.msra.mxu0 %v1327
    %3549 = vmatprep.subr.mxu0 %v1334
    %3550 = vmatpush1.msra.mxu0 %v1333
    %3551 = vmatprep.subr.mxu0 %v1340
    %3552 = vmatpush1.msra.mxu0 %v1339
    %3553 = vmatprep.subr.mxu0 %v1346
    %3554 = vmatpush1.msra.mxu0 %v1345
    %3555 = vmatprep.subr.mxu0 %v1352
    %3556 = vmatpush1.msra.mxu0 %v1351
    %3557 = vmatprep.subr.mxu0 %v1358
    %3558 = vmatpush1.msra.mxu0 %v1357
    %3559 = vmatprep.subr.mxu0 %v1364
    %3560 = vmatpush1.msra.mxu0 %v1363
    %3561 = vmatprep.subr.mxu0 %v1370
    %3562 = vmatpush1.msra.mxu0 %v1369
    %3563 = vmatprep.subr.mxu0 %v1376
    %3564 = vmatpush1.msra.mxu0 %v1375
    %3565 = vmatprep.subr.mxu0 %v1382
    %3566 = vmatpush1.msra.mxu0 %v1381
    %3567 = vmatprep.subr.mxu0 %v1388
    %3568 = vmatpush1.msra.mxu0 %v1387
    %3569 = vmatprep.mubr.f32.mxu0 %v2050
    %3570 = vmatmul.mubr.f32.gmra.mrb[0].mxu0 %v2042
    %v3571 = vpop.f32.mrb[0].mxu0
    %v3572 = vadd.f32 %v3501, %v3571
    %v3573 = vpop.f32.mrb[0].mxu0
    %v3574 = vadd.f32 %v3503, %v3573
    %3575 = vdwg.mxu0
    %3576 = vmatprep.subr.mxu0 %v1394
    %3577 = vmatpush1.msra.mxu0 %v1393
    %3578 = vmatprep.subr.mxu0 %v1400
    %3579 = vmatpush1.msra.mxu0 %v1399
    %3580 = vmatprep.subr.mxu0 %v1406
    %3581 = vmatpush1.msra.mxu0 %v1405
    %3582 = vmatprep.subr.mxu0 %v1412
    %3583 = vmatpush1.msra.mxu0 %v1411
    %3584 = vmatprep.subr.mxu0 %v1418
    %3585 = vmatpush1.msra.mxu0 %v1417
    %3586 = vmatprep.subr.mxu0 %v1424
    %3587 = vmatpush1.msra.mxu0 %v1423
    %3588 = vmatprep.subr.mxu0 %v1430
    %3589 = vmatpush1.msra.mxu0 %v1429
    %3590 = vmatprep.subr.mxu0 %v1436
    %3591 = vmatpush1.msra.mxu0 %v1435
    %3592 = vmatprep.subr.mxu0 %v1442
    %3593 = vmatpush1.msra.mxu0 %v1441
    %3594 = vmatprep.subr.mxu0 %v1448
    %3595 = vmatpush1.msra.mxu0 %v1447
    %3596 = vmatprep.subr.mxu0 %v1454
    %3597 = vmatpush1.msra.mxu0 %v1453
    %3598 = vmatprep.subr.mxu0 %v1460
    %3599 = vmatpush1.msra.mxu0 %v1459
    %3600 = vmatprep.subr.mxu0 %v1466
    %3601 = vmatpush1.msra.mxu0 %v1465
    %3602 = vmatprep.subr.mxu0 %v1472
    %3603 = vmatpush1.msra.mxu0 %v1471
    %3604 = vmatprep.subr.mxu0 %v1478
    %3605 = vmatpush1.msra.mxu0 %v1477
    %3606 = vmatprep.subr.mxu0 %v1484
    %3607 = vmatpush1.msra.mxu0 %v1483
    %3608 = vmatprep.subr.mxu0 %v1490
    %3609 = vmatpush1.msra.mxu0 %v1489
    %3610 = vmatprep.subr.mxu0 %v1496
    %3611 = vmatpush1.msra.mxu0 %v1495
    %3612 = vmatprep.subr.mxu0 %v1502
    %3613 = vmatpush1.msra.mxu0 %v1501
    %3614 = vmatprep.subr.mxu0 %v1508
    %3615 = vmatpush1.msra.mxu0 %v1507
    %3616 = vmatprep.subr.mxu0 %v1514
    %3617 = vmatpush1.msra.mxu0 %v1513
    %3618 = vmatprep.subr.mxu0 %v1520
    %3619 = vmatpush1.msra.mxu0 %v1519
    %3620 = vmatprep.subr.mxu0 %v1526
    %3621 = vmatpush1.msra.mxu0 %v1525
    %3622 = vmatprep.subr.mxu0 %v1532
    %3623 = vmatpush1.msra.mxu0 %v1531
    %3624 = vmatprep.subr.mxu0 %v1538
    %3625 = vmatpush1.msra.mxu0 %v1537
    %3626 = vmatprep.subr.mxu0 %v1544
    %3627 = vmatpush1.msra.mxu0 %v1543
    %3628 = vmatprep.subr.mxu0 %v1550
    %3629 = vmatpush1.msra.mxu0 %v1549
    %3630 = vmatprep.subr.mxu0 %v1556
    %3631 = vmatpush1.msra.mxu0 %v1555
    %3632 = vmatprep.subr.mxu0 %v1562
    %3633 = vmatpush1.msra.mxu0 %v1561
    %3634 = vmatprep.subr.mxu0 %v1568
    %3635 = vmatpush1.msra.mxu0 %v1567
    %3636 = vmatprep.subr.mxu0 %v1574
    %3637 = vmatpush1.msra.mxu0 %v1573
    %3638 = vmatprep.subr.mxu0 %v1580
    %3639 = vmatpush1.msra.mxu0 %v1579
    %3640 = vmatprep.mubr.f32.mxu0 %v2051
    %3641 = vmatmul.mubr.f32.gmra.mrb[0].mxu0 %v2049
    %v3642 = vpop.f32.mrb[0].mxu0
    %v3643 = vadd.f32 %v3572, %v3642
    %v3644 = vpop.f32.mrb[0].mxu0
    %v3645 = vadd.f32 %v3574, %v3644
    %3646 = vdwg.mxu0
    %3647 = vmatprep.subr.mxu0 %v1586
    %3648 = vmatpush1.msra.mxu0 %v1585
    %3649 = vmatprep.subr.mxu0 %v1592
    %3650 = vmatpush1.msra.mxu0 %v1591
    %3651 = vmatprep.subr.mxu0 %v1598
    %3652 = vmatpush1.msra.mxu0 %v1597
    %3653 = vmatprep.subr.mxu0 %v1604
    %3654 = vmatpush1.msra.mxu0 %v1603
    %3655 = vmatprep.subr.mxu0 %v1610
    %3656 = vmatpush1.msra.mxu0 %v1609
    %3657 = vmatprep.subr.mxu0 %v1616
    %3658 = vmatpush1.msra.mxu0 %v1615
    %3659 = vmatprep.subr.mxu0 %v1622
    %3660 = vmatpush1.msra.mxu0 %v1621
    %3661 = vmatprep.subr.mxu0 %v1628
    %3662 = vmatpush1.msra.mxu0 %v1627
    %3663 = vmatprep.subr.mxu0 %v1634
    %3664 = vmatpush1.msra.mxu0 %v1633
    %3665 = vmatprep.subr.mxu0 %v1640
    %3666 = vmatpush1.msra.mxu0 %v1639
    %3667 = vmatprep.subr.mxu0 %v1646
    %3668 = vmatpush1.msra.mxu0 %v1645
    %3669 = vmatprep.subr.mxu0 %v1652
    %3670 = vmatpush1.msra.mxu0 %v1651
    %3671 = vmatprep.subr.mxu0 %v1658
    %3672 = vmatpush1.msra.mxu0 %v1657
    %3673 = vmatprep.subr.mxu0 %v1664
    %3674 = vmatpush1.msra.mxu0 %v1663
    %3675 = vmatprep.subr.mxu0 %v1670
    %3676 = vmatpush1.msra.mxu0 %v1669
    %3677 = vmatprep.subr.mxu0 %v1676
    %3678 = vmatpush1.msra.mxu0 %v1675
    %3679 = vmatprep.subr.mxu0 %v1682
    %3680 = vmatpush1.msra.mxu0 %v1681
    %3681 = vmatprep.subr.mxu0 %v1688
    %3682 = vmatpush1.msra.mxu0 %v1687
    %3683 = vmatprep.subr.mxu0 %v1694
    %3684 = vmatpush1.msra.mxu0 %v1693
    %3685 = vmatprep.subr.mxu0 %v1700
    %3686 = vmatpush1.msra.mxu0 %v1699
    %3687 = vmatprep.subr.mxu0 %v1706
    %3688 = vmatpush1.msra.mxu0 %v1705
    %3689 = vmatprep.subr.mxu0 %v1712
    %3690 = vmatpush1.msra.mxu0 %v1711
    %3691 = vmatprep.subr.mxu0 %v1718
    %3692 = vmatpush1.msra.mxu0 %v1717
    %3693 = vmatprep.subr.mxu0 %v1724
    %3694 = vmatpush1.msra.mxu0 %v1723
    %3695 = vmatprep.subr.mxu0 %v1730
    %3696 = vmatpush1.msra.mxu0 %v1729
    %3697 = vmatprep.subr.mxu0 %v1736
    %3698 = vmatpush1.msra.mxu0 %v1735
    %3699 = vmatprep.subr.mxu0 %v1742
    %3700 = vmatpush1.msra.mxu0 %v1741
    %3701 = vmatprep.subr.mxu0 %v1748
    %3702 = vmatpush1.msra.mxu0 %v1747
    %3703 = vmatprep.subr.mxu0 %v1754
    %3704 = vmatpush1.msra.mxu0 %v1753
    %3705 = vmatprep.subr.mxu0 %v1760
    %3706 = vmatpush1.msra.mxu0 %v1759
    %3707 = vmatprep.subr.mxu0 %v1766
    %3708 = vmatpush1.msra.mxu0 %v1765
    %3709 = vmatprep.subr.mxu0 %v1772
    %3710 = vmatpush1.msra.mxu0 %v1771
    %3711 = vmatprep.mubr.f32.mxu0 %v2067
    %3712 = vmatmul.mubr.f32.gmra.mrb[0].mxu0 %v2059
    %v3713 = vpop.f32.mrb[0].mxu0
    %v3714 = vadd.f32 %v3643, %v3713
    %v3715 = vpop.f32.mrb[0].mxu0
    %v3716 = vadd.f32 %v3645, %v3715
    %3717 = vdwg.mxu0
    %3718 = vmatprep.subr.mxu0 %v1778
    %3719 = vmatpush1.msra.mxu0 %v1777
    %3720 = vmatprep.subr.mxu0 %v1784
    %3721 = vmatpush1.msra.mxu0 %v1783
    %3722 = vmatprep.subr.mxu0 %v1790
    %3723 = vmatpush1.msra.mxu0 %v1789
    %3724 = vmatprep.subr.mxu0 %v1796
    %3725 = vmatpush1.msra.mxu0 %v1795
    %3726 = vmatprep.subr.mxu0 %v1802
    %3727 = vmatpush1.msra.mxu0 %v1801
    %3728 = vmatprep.subr.mxu0 %v1808
    %3729 = vmatpush1.msra.mxu0 %v1807
    %3730 = vmatprep.subr.mxu0 %v1814
    %3731 = vmatpush1.msra.mxu0 %v1813
    %3732 = vmatprep.subr.mxu0 %v1820
    %3733 = vmatpush1.msra.mxu0 %v1819
    %3734 = vmatprep.subr.mxu0 %v1826
    %3735 = vmatpush1.msra.mxu0 %v1825
    %3736 = vmatprep.subr.mxu0 %v1832
    %3737 = vmatpush1.msra.mxu0 %v1831
    %3738 = vmatprep.subr.mxu0 %v1838
    %3739 = vmatpush1.msra.mxu0 %v1837
    %3740 = vmatprep.subr.mxu0 %v1844
    %3741 = vmatpush1.msra.mxu0 %v1843
    %3742 = vmatprep.subr.mxu0 %v1850
    %3743 = vmatpush1.msra.mxu0 %v1849
    %3744 = vmatprep.subr.mxu0 %v1856
    %3745 = vmatpush1.msra.mxu0 %v1855
    %3746 = vmatprep.subr.mxu0 %v1862
    %3747 = vmatpush1.msra.mxu0 %v1861
    %3748 = vmatprep.subr.mxu0 %v1868
    %3749 = vmatpush1.msra.mxu0 %v1867
    %3750 = vmatprep.subr.mxu0 %v1874
    %3751 = vmatpush1.msra.mxu0 %v1873
    %3752 = vmatprep.subr.mxu0 %v1880
    %3753 = vmatpush1.msra.mxu0 %v1879
    %3754 = vmatprep.subr.mxu0 %v1886
    %3755 = vmatpush1.msra.mxu0 %v1885
    %3756 = vmatprep.subr.mxu0 %v1892
    %3757 = vmatpush1.msra.mxu0 %v1891
    %3758 = vmatprep.subr.mxu0 %v1898
    %3759 = vmatpush1.msra.mxu0 %v1897
    %3760 = vmatprep.subr.mxu0 %v1904
    %3761 = vmatpush1.msra.mxu0 %v1903
    %3762 = vmatprep.subr.mxu0 %v1910
    %3763 = vmatpush1.msra.mxu0 %v1909
    %3764 = vmatprep.subr.mxu0 %v1916
    %3765 = vmatpush1.msra.mxu0 %v1915
    %3766 = vmatprep.subr.mxu0 %v1922
    %3767 = vmatpush1.msra.mxu0 %v1921
    %3768 = vmatprep.subr.mxu0 %v1928
    %3769 = vmatpush1.msra.mxu0 %v1927
    %3770 = vmatprep.subr.mxu0 %v1934
    %3771 = vmatpush1.msra.mxu0 %v1933
    %3772 = vmatprep.subr.mxu0 %v1940
    %3773 = vmatpush1.msra.mxu0 %v1939
    %3774 = vmatprep.subr.mxu0 %v1946
    %3775 = vmatpush1.msra.mxu0 %v1945
    %3776 = vmatprep.subr.mxu0 %v1952
    %3777 = vmatpush1.msra.mxu0 %v1951
    %3778 = vmatprep.subr.mxu0 %v1958
    %3779 = vmatpush1.msra.mxu0 %v1957
    %3780 = vmatprep.subr.mxu0 %v1964
    %3781 = vmatpush1.msra.mxu0 %v1963
    %3782 = vmatprep.mubr.f32.mxu0 %v2068
    %3783 = vmatmul.mubr.f32.gmra.mrb[0].mxu0 %v2066
    %v3784 = vpop.f32.mrb[0].mxu0
    %v3785 = vadd.f32 %v3714, %v3784
    %v3786 = vpop.f32.mrb[0].mxu0
    %v3787 = vadd.f32 %v3716, %v3786
    %3788 = vdwg.mxu0
    %v3789 = vxor.u32 %v2649, 2147483648
    %v3790 = vxor.u32 %v2651, 2147483648
    %v3791 = vmul.f32 %v3789, 1.442695
    %v3792 = vpow.pop %v3791
    %v3793 = vmul.f32 %v3790, 1.442695
    %v3794 = vpow.pop %v3793
    %v3795 = vadd.f32 %v3792, 1.0
    %v3796 = vadd.f32 %v3794, 1.0
    %v3797 = vrcp.pop %v3795
    %v3798 = vmul.f32 1.0, %v3797
    %v3799 = vrcp.pop %v3796
    %v3800 = vmul.f32 1.0, %v3799
    %v3801 = vtanh.pop %v3217
    %v3802 = vtanh.pop %v3219
    %v3803 = vxor.u32 %v3785, 2147483648
    %v3804 = vxor.u32 %v3787, 2147483648
    %v3805 = vmul.f32 %v3803, 1.442695
    %v3806 = vpow.pop %v3805
    %v3807 = vmul.f32 %v3804, 1.442695
    %v3808 = vpow.pop %v3807
    %v3809 = vadd.f32 %v3806, 1.0
    %v3810 = vadd.f32 %v3808, 1.0
    %v3811 = vrcp.pop %v3809
    %v3812 = vmul.f32 1.0, %v3811
    %v3813 = vrcp.pop %v3810
    %v3814 = vmul.f32 1.0, %v3813
    %v3815 = vmul.f32 %v3798, %v3801
    %v3816 = vmul.f32 %v3800, %v3802
    %v3817 = vtanh.pop %v3815
    %v3818 = vtanh.pop %v3816
    %v3819 = vmul.f32 %v3812, %v3817
    %v3820 = vmul.f32 %v3814, %v3818
    %v3821 = vmax.f32 %v3819, 0.0
    %v3822 = vmax.f32 %v3820, 0.0
    %v3823 = vld [vmem:[%s5] sm:$0xff]
    %v3824 = vld [vmem:[%s5 + $0x8] sm:$0xff]
    %v3825 = vld [vmem:[%s5 + $0x10] sm:$0xff]
    %v3826 = vld [vmem:[%s5 + $0x18] sm:$0xff]
    %v3827 = vld [vmem:[%s5 + $0x20] sm:$0xff]
    %v3828 = vld [vmem:[%s5 + $0x28] sm:$0xff]
    %v3829 = vld [vmem:[%s5 + $0x30] sm:$0xff]
    %v3830 = vld [vmem:[%s5 + $0x38] sm:$0xff]
    %v3831 = vld [vmem:[%s5 + $0x40] sm:$0xff]
    %v3832 = vld [vmem:[%s5 + $0x48] sm:$0xff]
    %v3833 = vld [vmem:[%s5 + $0x50] sm:$0xff]
    %v3834 = vld [vmem:[%s5 + $0x58] sm:$0xff]
    %v3835 = vld [vmem:[%s5 + $0x60] sm:$0xff]
    %v3836 = vld [vmem:[%s5 + $0x68] sm:$0xff]
    %v3837 = vld [vmem:[%s5 + $0x70] sm:$0xff]
    %v3838 = vld [vmem:[%s5 + $0x78] sm:$0xff]
    %v3839 = vld [vmem:[%s5 + $0x80] sm:$0xff]
    %v3840 = vld [vmem:[%s5 + $0x88] sm:$0xff]
    %v3841 = vld [vmem:[%s5 + $0x90] sm:$0xff]
    %v3842 = vld [vmem:[%s5 + $0x98] sm:$0xff]
    %v3843 = vld [vmem:[%s5 + $0xa0] sm:$0xff]
    %v3844 = vld [vmem:[%s5 + $0xa8] sm:$0xff]
    %v3845 = vld [vmem:[%s5 + $0xb0] sm:$0xff]
    %v3846 = vld [vmem:[%s5 + $0xb8] sm:$0xff]
    %v3847 = vld [vmem:[%s5 + $0xc0] sm:$0xff]
    %v3848 = vld [vmem:[%s5 + $0xc8] sm:$0xff]
    %v3849 = vld [vmem:[%s5 + $0xd0] sm:$0xff]
    %v3850 = vld [vmem:[%s5 + $0xd8] sm:$0xff]
    %v3851 = vld [vmem:[%s5 + $0xe0] sm:$0xff]
    %v3852 = vld [vmem:[%s5 + $0xe8] sm:$0xff]
    %v3853 = vld [vmem:[%s5 + $0xf0] sm:$0xff]
    %v3854 = vld [vmem:[%s5 + $0xf8] sm:$0xff]
    %v3855 = vld [vmem:[#allocation12] sm:$0x1]
    %v3857 = vlaneseq
    %v3858 = vshrl.u32 %v3857, 7
    %v3859 = vsub.s32 0, %v3858
    %v3860 = vrot.slane %v3855, %v3859
    %3862 = vmatprep.subr.mxu0 0.0
    %3863 = vmatpush1.msra.mxu0 %v3823
    %3864 = vmatprep.subr.mxu0 0.0
    %3865 = vmatpush1.msra.mxu0 %v3824
    %3866 = vmatprep.subr.mxu0 0.0
    %3867 = vmatpush1.msra.mxu0 %v3825
    %3868 = vmatprep.subr.mxu0 0.0
    %3869 = vmatpush1.msra.mxu0 %v3826
    %3870 = vmatprep.subr.mxu0 0.0
    %3871 = vmatpush1.msra.mxu0 %v3827
    %3872 = vmatprep.subr.mxu0 0.0
    %3873 = vmatpush1.msra.mxu0 %v3828
    %3874 = vmatprep.subr.mxu0 0.0
    %3875 = vmatpush1.msra.mxu0 %v3829
    %3876 = vmatprep.subr.mxu0 0.0
    %3877 = vmatpush1.msra.mxu0 %v3830
    %3878 = vmatprep.subr.mxu0 0.0
    %3879 = vmatpush1.msra.mxu0 %v3831
    %3880 = vmatprep.subr.mxu0 0.0
    %3881 = vmatpush1.msra.mxu0 %v3832
    %3882 = vmatprep.subr.mxu0 0.0
    %3883 = vmatpush1.msra.mxu0 %v3833
    %3884 = vmatprep.subr.mxu0 0.0
    %3885 = vmatpush1.msra.mxu0 %v3834
    %3886 = vmatprep.subr.mxu0 0.0
    %3887 = vmatpush1.msra.mxu0 %v3835
    %3888 = vmatprep.subr.mxu0 0.0
    %3889 = vmatpush1.msra.mxu0 %v3836
    %3890 = vmatprep.subr.mxu0 0.0
    %3891 = vmatpush1.msra.mxu0 %v3837
    %3892 = vmatprep.subr.mxu0 0.0
    %3893 = vmatpush1.msra.mxu0 %v3838
    %3894 = vmatprep.subr.mxu0 0.0
    %3895 = vmatpush1.msra.mxu0 %v3839
    %3896 = vmatprep.subr.mxu0 0.0
    %3897 = vmatpush1.msra.mxu0 %v3840
    %3898 = vmatprep.subr.mxu0 0.0
    %3899 = vmatpush1.msra.mxu0 %v3841
    %3900 = vmatprep.subr.mxu0 0.0
    %3901 = vmatpush1.msra.mxu0 %v3842
    %3902 = vmatprep.subr.mxu0 0.0
    %3903 = vmatpush1.msra.mxu0 %v3843
    %3904 = vmatprep.subr.mxu0 0.0
    %3905 = vmatpush1.msra.mxu0 %v3844
    %3906 = vmatprep.subr.mxu0 0.0
    %3907 = vmatpush1.msra.mxu0 %v3845
    %3908 = vmatprep.subr.mxu0 0.0
    %3909 = vmatpush1.msra.mxu0 %v3846
    %3910 = vmatprep.subr.mxu0 0.0
    %3911 = vmatpush1.msra.mxu0 %v3847
    %3912 = vmatprep.subr.mxu0 0.0
    %3913 = vmatpush1.msra.mxu0 %v3848
    %3914 = vmatprep.subr.mxu0 0.0
    %3915 = vmatpush1.msra.mxu0 %v3849
    %3916 = vmatprep.subr.mxu0 0.0
    %3917 = vmatpush1.msra.mxu0 %v3850
    %3918 = vmatprep.subr.mxu0 0.0
    %3919 = vmatpush1.msra.mxu0 %v3851
    %3920 = vmatprep.subr.mxu0 0.0
    %3921 = vmatpush1.msra.mxu0 %v3852
    %3922 = vmatprep.subr.mxu0 0.0
    %3923 = vmatpush1.msra.mxu0 %v3853
    %3924 = vmatprep.subr.mxu0 0.0
    %3925 = vmatpush1.msra.mxu0 %v3854
    %3926 = vmatprep.mubr.f32.mxu0 %v3822
    %3927 = vmatmul.mubr.f32.gmra.mrb[0].mxu0 %v3821
    %v3928 = vpop.f32.mrb[0].mxu0
    %v3929 = vadd.f32 %v3860, %v3928
    %v3930 = vpop.f32.mrb[0].mxu0
    %3931 = vdwg.mxu0
    %v3932 = vld [vmem:[%s7] sm:$0xff]
    %v3933 = vld [vmem:[%s7 + $0x8] sm:$0xff]
    %v3934 = vld [vmem:[%s7 + $0x10] sm:$0xff]
    %v3935 = vld [vmem:[%s7 + $0x18] sm:$0xff]
    %v3936 = vld [vmem:[%s7 + $0x20] sm:$0xff]
    %v3937 = vld [vmem:[%s7 + $0x28] sm:$0xff]
    %v3938 = vld [vmem:[%s7 + $0x30] sm:$0xff]
    %v3939 = vld [vmem:[%s7 + $0x38] sm:$0xff]
    %v3940 = vld [vmem:[#allocation13] sm:$0x1]
    %v3942 = vlaneseq
    %v3943 = vshrl.u32 %v3942, 7
    %v3944 = vsub.s32 0, %v3943
    %v3945 = vrot.slane %v3940, %v3944
    %vm3947 = vcmask 523264
    %v3949 = vsel %vm3947, %v3929, 0
    %3951 = vmatprep.subr.mxu0 0.0
    %3952 = vmatpush1.msra.mxu0 %v3932
    %3953 = vmatprep.subr.mxu0 0.0
    %3954 = vmatpush1.msra.mxu0 %v3933
    %3955 = vmatprep.subr.mxu0 0.0
    %3956 = vmatpush1.msra.mxu0 %v3934
    %3957 = vmatprep.subr.mxu0 0.0
    %3958 = vmatpush1.msra.mxu0 %v3935
    %3959 = vmatprep.subr.mxu0 0.0
    %3960 = vmatpush1.msra.mxu0 %v3936
    %3961 = vmatprep.subr.mxu0 0.0
    %3962 = vmatpush1.msra.mxu0 %v3937
    %3963 = vmatprep.subr.mxu0 0.0
    %3964 = vmatpush1.msra.mxu0 %v3938
    %3965 = vmatprep.subr.mxu0 0.0
    %3966 = vmatpush1.msra.mxu0 %v3939
    %3967 = vmatprep.subr.mxu0 0.0
    %3968 = vmatpush1.msra.mxu0 0.0
    %3969 = vmatprep.subr.mxu0 0.0
    %3970 = vmatpush1.msra.mxu0 0.0
    %3971 = vmatprep.subr.mxu0 0.0
    %3972 = vmatpush1.msra.mxu0 0.0
    %3973 = vmatprep.subr.mxu0 0.0
    %3974 = vmatpush1.msra.mxu0 0.0
    %3975 = vmatprep.subr.mxu0 0.0
    %3976 = vmatpush1.msra.mxu0 0.0
    %3977 = vmatprep.subr.mxu0 0.0
    %3978 = vmatpush1.msra.mxu0 0.0
    %3979 = vmatprep.subr.mxu0 0.0
    %3980 = vmatpush1.msra.mxu0 0.0
    %3981 = vmatprep.subr.mxu0 0.0
    %3982 = vmatpush1.msra.mxu0 0.0
    %3983 = vmatprep.subr.mxu0 0.0
    %3984 = vmatpush1.msra.mxu0 0.0
    %3985 = vmatprep.subr.mxu0 0.0
    %3986 = vmatpush1.msra.mxu0 0.0
    %3987 = vmatprep.subr.mxu0 0.0
    %3988 = vmatpush1.msra.mxu0 0.0
    %3989 = vmatprep.subr.mxu0 0.0
    %3990 = vmatpush1.msra.mxu0 0.0
    %3991 = vmatprep.subr.mxu0 0.0
    %3992 = vmatpush1.msra.mxu0 0.0
    %3993 = vmatprep.subr.mxu0 0.0
    %3994 = vmatpush1.msra.mxu0 0.0
    %3995 = vmatprep.subr.mxu0 0.0
    %3996 = vmatpush1.msra.mxu0 0.0
    %3997 = vmatprep.subr.mxu0 0.0
    %3998 = vmatpush1.msra.mxu0 0.0
    %3999 = vmatprep.subr.mxu0 0.0
    %4000 = vmatpush1.msra.mxu0 0.0
    %4001 = vmatprep.subr.mxu0 0.0
    %4002 = vmatpush1.msra.mxu0 0.0
    %4003 = vmatprep.subr.mxu0 0.0
    %4004 = vmatpush1.msra.mxu0 0.0
    %4005 = vmatprep.subr.mxu0 0.0
    %4006 = vmatpush1.msra.mxu0 0.0
    %4007 = vmatprep.subr.mxu0 0.0
    %4008 = vmatpush1.msra.mxu0 0.0
    %4009 = vmatprep.subr.mxu0 0.0
    %4010 = vmatpush1.msra.mxu0 0.0
    %4011 = vmatprep.subr.mxu0 0.0
    %4012 = vmatpush1.msra.mxu0 0.0
    %4013 = vmatprep.subr.mxu0 0.0
    %4014 = vmatpush1.msra.mxu0 0.0
    %4015 = vmatprep.mubr.f32.mxu0 0.0
    %4016 = vmatmul.mubr.f32.gmra.mrb[0].mxu0 %v3949
    %v4017 = vpop.f32.mrb[0].mxu0
    %v4018 = vadd.f32 %v3945, %v4017
    %v4019 = vpop.f32.mrb[0].mxu0
    %4020 = vdwg.mxu0
    %vm4021 = vcmask 33792
    %4022 = vst.msk [vmem:[#allocation15] sm:$0x3] %vm4021, %v4018
    %v4023 = vsel %vm4021, %v4018, -inf
    %4024 = vmax.xlane.f32.xlu0 %v4023
    %v4025 = vpop.xlane.xlu0 %4024
    %v4026 = vsub.f32 %v4018, %v4025
    %v4027 = vmul.f32 %v4026, 1.442695
    %v4028 = vpow.pop %v4027
    %v4029 = vsel %vm4021, %v4028, 0.0
    %4030 = vadd.xlane.f32.xlu0 %v4029
    %v4031 = vpop.xlane.xlu0 %4030
    %v4032 = vrcp.pop %v4031
    %v4033 = vmul.f32 %v4028, %v4032
    %4034 = vst.msk [vmem:[#allocation16] sm:$0x3] %vm4021, %v4033
    // Predicated region
    $region62: #{net_forward.1} parent=1 // pred_check
      _
    $region63: #{net_forward.1} parent=1 // pred_check_branch
      %4036 = sbr.rel (0) target = $region65
    $region64: #{net_forward.1} parent=1 // pred_region
      %s4038 = ssub.s32 32, 32
      %4039 = vsyncadd [#allocation6], %s4038
      %s4041 = sshll.u32 [#allocation15], 4
      %s4042 = int_to_ptr.vmem [resolvable:$true] %s4041
      %4044 = dma.vmem_to_hbm [thread:$0]  %s4042, 32, %s9, [#allocation6]
    $region65: #{net_forward.1} parent=1 // pred_fallthru
      _
    // Predicated region
    $region66: #{net_forward.1} parent=1 // pred_check
      _
    $region67: #{net_forward.1} parent=1 // pred_check_branch
      %4046 = sbr.rel (0) target = $region69
    $region68: #{net_forward.1} parent=1 // pred_region
      %s4048 = ssub.s32 32, 32
      %4049 = vsyncadd [#allocation17], %s4048
      %s4051 = sshll.u32 [#allocation16], 4
      %s4052 = int_to_ptr.vmem [resolvable:$true] %s4051
      %4054 = dma.vmem_to_hbm [thread:$0]  %s4052, 32, %s10, [#allocation17]
    $region69: #{net_forward.1} parent=1 // pred_fallthru
      _
    // Predicated region
    $region70: #{net_forward.1} parent=1 // pred_check
      _
    $region71: #{net_forward.1} parent=1 // pred_check_branch
      %4056 = sbr.rel (0) target = $region73
    $region72: #{net_forward.1} parent=1 // pred_region
      %4057 = dma.done [#allocation6], 32
    $region73: #{net_forward.1} parent=1 // pred_fallthru
      _
    // Predicated region
    $region74: #{net_forward.1} parent=1 // pred_check
      _
    $region75: #{net_forward.1} parent=1 // pred_check_branch
      %4059 = sbr.rel (0) target = $region77
    $region76: #{net_forward.1} parent=1 // pred_region
      %4060 = dma.done [#allocation17], 32
    $region77: #{net_forward.1} parent=1 // pred_fallthru
      _
    %4061 = vsyncpa [#allocation5], 1
    %4062 = vsyncpa [#allocation8], 1
    %4063 = vsyncpa [#allocation11], 1
    %4064 = vsyncpa [#allocation14], 1
    %4065 = vsyncpa [#allocation6], 1
    %4066 = vsyncpa [#allocation17], 1

</llo_original>
